<compile_context>
chip_gen: v5e
topology: v5e:2x2
jax: 0.10.0
libtpu: 0.0.40
codegen_flags: <defaults>
</compile_context>

<pallas_src>
import functools

import jax
import jax.numpy as jnp
from jax.experimental import pallas as pl
from jax.experimental.pallas import tpu as pltpu


# ---------------------------------------------------------------------------
# Fused kernel: in-proj -> multi-head attention -> out-proj, single grid step.
# Everything stays in VMEM; all matmuls accumulate in f32.
# ---------------------------------------------------------------------------
def _fused_mha_kernel(x_ref, w_in_ref, b_in_ref, w_out_ref, b_out_ref,
                      o_ref, attn_ref, *, num_heads, batch):
    x = x_ref[...]                                  # (N*L, C) f32
    NL, C = x.shape
    L = NL // batch
    Dh = C // num_heads

    # In-projection once over the whole slab (weights pre-transposed to
    # (C, 3C) in the wrapper; softmax scale already folded into Q columns).
    qkv = (jnp.dot(x, w_in_ref[...], preferred_element_type=jnp.float32)
           + b_in_ref[...])                         # (N*L, 3C)

    # Leading-dim split only (sublane-aligned since L % 8 == 0): no relayout.
    qkv3 = qkv.reshape(batch, L, 3 * C)             # (N, L, 3C)

    # Per-head attention, batched over N.  Head outputs go straight into the
    # (N*L, C) VMEM scratch at static lane offsets (no concatenate).
    for h in range(num_heads):
        qh = qkv3[:, :, h * Dh:(h + 1) * Dh]                    # (N, L, Dh)
        kh = qkv3[:, :, C + h * Dh:C + (h + 1) * Dh]            # (N, L, Dh)
        vh = qkv3[:, :, 2 * C + h * Dh:2 * C + (h + 1) * Dh]    # (N, L, Dh)

        # NT contraction on the last dims (no materialized K transpose).
        s = jnp.einsum('bqd,bkd->bqk', qh, kh,
                       preferred_element_type=jnp.float32)      # (N, L, L)

        # Numerically-stable softmax, exact division (all f32).
        s = s - jnp.max(s, axis=-1, keepdims=True)
        p = jnp.exp(s)
        p = p / jnp.sum(p, axis=-1, keepdims=True)

        oh = jnp.einsum('bqk,bkd->bqd', p, vh,
                        preferred_element_type=jnp.float32)     # (N, L, Dh)
        attn_ref[:, h * Dh:(h + 1) * Dh] = oh.reshape(NL, Dh)

    # Out-projection once on the full (N*L, C) slab.
    o_ref[...] = (jnp.dot(attn_ref[...], w_out_ref[...],
                          preferred_element_type=jnp.float32)
                  + b_out_ref[...])


# ---------------------------------------------------------------------------
# Module-equivalent forward
# ---------------------------------------------------------------------------
def multihead_attention_forward(x_nchw, params, num_heads):
    """Equivalent of MultiheadAttention.forward for NCHW input."""
    in_w = params["in_proj_weight"]    # (3C, C)
    in_b = params["in_proj_bias"]      # (3C,)
    out_w = params["out_proj_weight"]  # (C, C)
    out_b = params["out_proj_bias"]    # (C,)

    n, c, h, w = x_nchw.shape
    L = h * w
    head_dim = c // num_heads
    scale = 1.0 / (head_dim ** 0.5)

    # (N, C, H, W) -> (N*L, C).  Attention is independent per batch element,
    # so the per-batch (L, C) raster order matches PyTorch's
    # permute(2, 3, 0, 1).reshape(h*w, n, c) layout exactly.
    x_flat = jnp.transpose(x_nchw, (0, 2, 3, 1)).reshape(n * L, c)

    # Pre-transpose weights once (XLA) and fold the 1/sqrt(Dh) softmax scale
    # into the Q columns of the in-projection (free: tiny constants).
    w_in_t = in_w.T                                   # (C, 3C)
    w_in_t = w_in_t.at[:, :c].multiply(scale)
    b_in2 = in_b.at[:c].multiply(scale).reshape(1, 3 * c)
    w_out_t = out_w.T                                 # (C, C)
    b_out2 = out_b.reshape(1, c)

    kernel = functools.partial(_fused_mha_kernel,
                               num_heads=num_heads, batch=n)

    out_flat = pl.pallas_call(
        kernel,
        out_shape=jax.ShapeDtypeStruct((n * L, c), jnp.float32),
        # No grid / BlockSpecs: whole (tiny) arrays live in VMEM for the
        # single invocation; default scoped VMEM limit is ample.
        scratch_shapes=[pltpu.VMEM((n * L, c), jnp.float32)],
    )(x_flat, w_in_t, b_in2, w_out_t, b_out2)

    # (N*L, C) -> (N, C, H, W)
    return out_flat.reshape(n, h, w, c).transpose(0, 3, 1, 2)


# ---------------------------------------------------------------------------
# Pure-JAX f32 reference (mirrors torch nn.MultiheadAttention exactly)
# ---------------------------------------------------------------------------
def _reference(x_nchw, params, num_heads):
    in_w = params["in_proj_weight"]
    in_b = params["in_proj_bias"]
    out_w = params["out_proj_weight"]
    out_b = params["out_proj_bias"]
    n, c, h, w = x_nchw.shape
    L = h * w
    hd = c // num_heads
    x = jnp.transpose(x_nchw, (2, 3, 0, 1)).reshape(L, n, c)
    qkv = x.reshape(L * n, c) @ in_w.T + in_b
    q, k, v = jnp.split(qkv, 3, axis=-1)
    q = q.reshape(L, n * num_heads, hd).transpose(1, 0, 2)
    k = k.reshape(L, n * num_heads, hd).transpose(1, 0, 2)
    v = v.reshape(L, n * num_heads, hd).transpose(1, 0, 2)
    s = jnp.einsum("bqd,bkd->bqk", q, k) / (hd ** 0.5)
    p = jax.nn.softmax(s, axis=-1)
    o = jnp.einsum("bqk,bkd->bqd", p, v)
    o = o.transpose(1, 0, 2).reshape(L * n, c) @ out_w.T + out_b
    return o.reshape(h, w, n, c).transpose(2, 3, 0, 1)


# ---------------------------------------------------------------------------
# Main
# ---------------------------------------------------------------------------
if __name__ == "__main__":
    # Small shapes consistent with the module's forward.
    N, C, H, W = 2, 32, 8, 8
    NUM_HEADS = 4

    key = jax.random.PRNGKey(0)
    k_x, k_in_w, k_in_b, k_out_w, k_out_b = jax.random.split(key, 5)

    x = jax.random.normal(k_x, (N, C, H, W), dtype=jnp.float32)

    # Deterministic parameter init (same shapes as torch nn.MultiheadAttention).
    params = {
        "in_proj_weight": jax.random.normal(k_in_w, (3 * C, C), jnp.float32)
        * (1.0 / C ** 0.5),
        "in_proj_bias": jax.random.normal(k_in_b, (3 * C,), jnp.float32) * 0.1,
        "out_proj_weight": jax.random.normal(k_out_w, (C, C), jnp.float32)
        * (1.0 / C ** 0.5),
        "out_proj_bias": jax.random.normal(k_out_b, (C,), jnp.float32) * 0.1,
    }

    out = multihead_attention_forward(x, params, NUM_HEADS)
    out = jax.block_until_ready(out)

    ref = _reference(x, params, NUM_HEADS)
    assert out.shape == (N, C, H, W)
    # Full-f32 attention path + exact softmax division -> tight tolerance
    # (only residual difference is MXU f32 accumulation order vs. XLA).
    max_err = float(jnp.max(jnp.abs(out - ref)))
    assert jnp.allclose(out, ref, atol=2e-3, rtol=2e-3), (
        f"mismatch vs reference (max abs err {max_err})"
    )

    print("KERNEL_OK")
</pallas_src>

<mosaic_0001>
module attributes {stable_mosaic.version = 11 : i64} {
  func.func @_fused_mha_kernel(%arg0: memref<128x32xf32, #tpu.memory_space<vmem>>, %arg1: memref<32x96xf32, #tpu.memory_space<vmem>>, %arg2: memref<1x96xf32, #tpu.memory_space<vmem>>, %arg3: memref<32x32xf32, #tpu.memory_space<vmem>>, %arg4: memref<1x32xf32, #tpu.memory_space<vmem>>, %arg5: memref<128x32xf32, #tpu.memory_space<vmem>>, %arg6: memref<128x32xf32, #tpu.memory_space<vmem>>) attributes {dimension_semantics = [], scalar_prefetch = 0 : i64, scratch_operands = 1 : i64, tpu.core_type = #tpu.core_type<tc>} {
    %c0 = arith.constant 0 : index
    %c0_0 = arith.constant 0 : index
    %0 = vector.load %arg0[%c0, %c0_0] : memref<128x32xf32, #tpu.memory_space<vmem>>, vector<128x32xf32>
    %c0_1 = arith.constant 0 : index
    %c0_2 = arith.constant 0 : index
    %1 = vector.load %arg1[%c0_1, %c0_2] : memref<32x96xf32, #tpu.memory_space<vmem>>, vector<32x96xf32>
    %cst = arith.constant dense<0.000000e+00> : vector<128x96xf32>
    %2 = tpu.matmul %0, %1, %cst {dimension_numbers = #tpu.dot_dimension_numbers<[1], [0], [0], [1], [0, 0, 1, 1], [], []>} : vector<128x32xf32>, vector<32x96xf32>, vector<128x96xf32> -> vector<128x96xf32>
    %c0_3 = arith.constant 0 : index
    %c0_4 = arith.constant 0 : index
    %3 = vector.load %arg2[%c0_3, %c0_4] : memref<1x96xf32, #tpu.memory_space<vmem>>, vector<1x96xf32>
    %4 = vector.broadcast %3 : vector<1x96xf32> to vector<128x96xf32>
    %5 = arith.addf %2, %4 : vector<128x96xf32>
    %6 = vector.shape_cast %5 : vector<128x96xf32> to vector<2x64x96xf32>
    %7 = vector.extract_strided_slice %6 {offsets = [0, 0, 0], sizes = [2, 64, 8], strides = [1, 1, 1]} : vector<2x64x96xf32> to vector<2x64x8xf32>
    %8 = vector.extract_strided_slice %6 {offsets = [0, 0, 32], sizes = [2, 64, 8], strides = [1, 1, 1]} : vector<2x64x96xf32> to vector<2x64x8xf32>
    %9 = vector.extract_strided_slice %6 {offsets = [0, 0, 64], sizes = [2, 64, 8], strides = [1, 1, 1]} : vector<2x64x96xf32> to vector<2x64x8xf32>
    "tpu.trace_start"() <{level = 10 : i32, message = "bqd,bkd->bqk"}> : () -> ()
    %cst_5 = arith.constant dense<0.000000e+00> : vector<2x64x64xf32>
    %10 = tpu.matmul %7, %8, %cst_5 {dimension_numbers = #tpu.dot_dimension_numbers<[2], [2], [1], [1], [0, 0, 0, 1, 1, 1], [0], [0]>} : vector<2x64x8xf32>, vector<2x64x8xf32>, vector<2x64x64xf32> -> vector<2x64x64xf32>
    "tpu.trace_stop"() : () -> ()
    %cst_6 = arith.constant dense<0xFF800000> : vector<2x64xf32>
    %11 = vector.multi_reduction <maximumf>, %10, %cst_6 [2] : vector<2x64x64xf32> to vector<2x64xf32>
    %12 = vector.shape_cast %11 : vector<2x64xf32> to vector<2x64x1xf32>
    %13 = vector.broadcast %12 : vector<2x64x1xf32> to vector<2x64x64xf32>
    %14 = arith.subf %10, %13 : vector<2x64x64xf32>
    %15 = math.exp %14 : vector<2x64x64xf32>
    %cst_7 = arith.constant dense<0.000000e+00> : vector<2x64xf32>
    %16 = vector.multi_reduction <add>, %15, %cst_7 [2] : vector<2x64x64xf32> to vector<2x64xf32>
    %17 = vector.shape_cast %16 : vector<2x64xf32> to vector<2x64x1xf32>
    %18 = vector.broadcast %17 : vector<2x64x1xf32> to vector<2x64x64xf32>
    %19 = arith.divf %15, %18 : vector<2x64x64xf32>
    "tpu.trace_start"() <{level = 10 : i32, message = "bqk,bkd->bqd"}> : () -> ()
    %cst_8 = arith.constant dense<0.000000e+00> : vector<2x64x8xf32>
    %20 = tpu.matmul %19, %9, %cst_8 {dimension_numbers = #tpu.dot_dimension_numbers<[2], [1], [1], [2], [0, 0, 0, 1, 1, 2], [0], [0]>} : vector<2x64x64xf32>, vector<2x64x8xf32>, vector<2x64x8xf32> -> vector<2x64x8xf32>
    "tpu.trace_stop"() : () -> ()
    %21 = vector.shape_cast %20 : vector<2x64x8xf32> to vector<128x8xf32>
    %c0_9 = arith.constant 0 : index
    %c0_10 = arith.constant 0 : index
    %22 = vector.load %arg6[%c0_9, %c0_10] : memref<128x32xf32, #tpu.memory_space<vmem>>, vector<128x8xf32>
    tpu.vector_store %arg6[%c0_9, %c0_10], %21 {strides = array<i32>} : memref<128x32xf32, #tpu.memory_space<vmem>>, vector<128x8xf32>,
    %23 = vector.extract_strided_slice %6 {offsets = [0, 0, 8], sizes = [2, 64, 8], strides = [1, 1, 1]} : vector<2x64x96xf32> to vector<2x64x8xf32>
    %24 = vector.extract_strided_slice %6 {offsets = [0, 0, 40], sizes = [2, 64, 8], strides = [1, 1, 1]} : vector<2x64x96xf32> to vector<2x64x8xf32>
    %25 = vector.extract_strided_slice %6 {offsets = [0, 0, 72], sizes = [2, 64, 8], strides = [1, 1, 1]} : vector<2x64x96xf32> to vector<2x64x8xf32>
    "tpu.trace_start"() <{level = 10 : i32, message = "bqd,bkd->bqk"}> : () -> ()
    %cst_11 = arith.constant dense<0.000000e+00> : vector<2x64x64xf32>
    %26 = tpu.matmul %23, %24, %cst_11 {dimension_numbers = #tpu.dot_dimension_numbers<[2], [2], [1], [1], [0, 0, 0, 1, 1, 1], [0], [0]>} : vector<2x64x8xf32>, vector<2x64x8xf32>, vector<2x64x64xf32> -> vector<2x64x64xf32>
    "tpu.trace_stop"() : () -> ()
    %cst_12 = arith.constant dense<0xFF800000> : vector<2x64xf32>
    %27 = vector.multi_reduction <maximumf>, %26, %cst_12 [2] : vector<2x64x64xf32> to vector<2x64xf32>
    %28 = vector.shape_cast %27 : vector<2x64xf32> to vector<2x64x1xf32>
    %29 = vector.broadcast %28 : vector<2x64x1xf32> to vector<2x64x64xf32>
    %30 = arith.subf %26, %29 : vector<2x64x64xf32>
    %31 = math.exp %30 : vector<2x64x64xf32>
    %cst_13 = arith.constant dense<0.000000e+00> : vector<2x64xf32>
    %32 = vector.multi_reduction <add>, %31, %cst_13 [2] : vector<2x64x64xf32> to vector<2x64xf32>
    %33 = vector.shape_cast %32 : vector<2x64xf32> to vector<2x64x1xf32>
    %34 = vector.broadcast %33 : vector<2x64x1xf32> to vector<2x64x64xf32>
    %35 = arith.divf %31, %34 : vector<2x64x64xf32>
    "tpu.trace_start"() <{level = 10 : i32, message = "bqk,bkd->bqd"}> : () -> ()
    %cst_14 = arith.constant dense<0.000000e+00> : vector<2x64x8xf32>
    %36 = tpu.matmul %35, %25, %cst_14 {dimension_numbers = #tpu.dot_dimension_numbers<[2], [1], [1], [2], [0, 0, 0, 1, 1, 2], [0], [0]>} : vector<2x64x64xf32>, vector<2x64x8xf32>, vector<2x64x8xf32> -> vector<2x64x8xf32>
    "tpu.trace_stop"() : () -> ()
    %37 = vector.shape_cast %36 : vector<2x64x8xf32> to vector<128x8xf32>
    %c0_15 = arith.constant 0 : index
    %c8 = arith.constant 8 : index
    %38 = vector.load %arg6[%c0_15, %c8] : memref<128x32xf32, #tpu.memory_space<vmem>>, vector<128x8xf32>
    tpu.vector_store %arg6[%c0_15, %c8], %37 {strides = array<i32>} : memref<128x32xf32, #tpu.memory_space<vmem>>, vector<128x8xf32>,
    %39 = vector.extract_strided_slice %6 {offsets = [0, 0, 16], sizes = [2, 64, 8], strides = [1, 1, 1]} : vector<2x64x96xf32> to vector<2x64x8xf32>
    %40 = vector.extract_strided_slice %6 {offsets = [0, 0, 48], sizes = [2, 64, 8], strides = [1, 1, 1]} : vector<2x64x96xf32> to vector<2x64x8xf32>
    %41 = vector.extract_strided_slice %6 {offsets = [0, 0, 80], sizes = [2, 64, 8], strides = [1, 1, 1]} : vector<2x64x96xf32> to vector<2x64x8xf32>
    "tpu.trace_start"() <{level = 10 : i32, message = "bqd,bkd->bqk"}> : () -> ()
    %cst_16 = arith.constant dense<0.000000e+00> : vector<2x64x64xf32>
    %42 = tpu.matmul %39, %40, %cst_16 {dimension_numbers = #tpu.dot_dimension_numbers<[2], [2], [1], [1], [0, 0, 0, 1, 1, 1], [0], [0]>} : vector<2x64x8xf32>, vector<2x64x8xf32>, vector<2x64x64xf32> -> vector<2x64x64xf32>
    "tpu.trace_stop"() : () -> ()
    %cst_17 = arith.constant dense<0xFF800000> : vector<2x64xf32>
    %43 = vector.multi_reduction <maximumf>, %42, %cst_17 [2] : vector<2x64x64xf32> to vector<2x64xf32>
    %44 = vector.shape_cast %43 : vector<2x64xf32> to vector<2x64x1xf32>
    %45 = vector.broadcast %44 : vector<2x64x1xf32> to vector<2x64x64xf32>
    %46 = arith.subf %42, %45 : vector<2x64x64xf32>
    %47 = math.exp %46 : vector<2x64x64xf32>
    %cst_18 = arith.constant dense<0.000000e+00> : vector<2x64xf32>
    %48 = vector.multi_reduction <add>, %47, %cst_18 [2] : vector<2x64x64xf32> to vector<2x64xf32>
    %49 = vector.shape_cast %48 : vector<2x64xf32> to vector<2x64x1xf32>
    %50 = vector.broadcast %49 : vector<2x64x1xf32> to vector<2x64x64xf32>
    %51 = arith.divf %47, %50 : vector<2x64x64xf32>
    "tpu.trace_start"() <{level = 10 : i32, message = "bqk,bkd->bqd"}> : () -> ()
    %cst_19 = arith.constant dense<0.000000e+00> : vector<2x64x8xf32>
    %52 = tpu.matmul %51, %41, %cst_19 {dimension_numbers = #tpu.dot_dimension_numbers<[2], [1], [1], [2], [0, 0, 0, 1, 1, 2], [0], [0]>} : vector<2x64x64xf32>, vector<2x64x8xf32>, vector<2x64x8xf32> -> vector<2x64x8xf32>
    "tpu.trace_stop"() : () -> ()
    %53 = vector.shape_cast %52 : vector<2x64x8xf32> to vector<128x8xf32>
    %c0_20 = arith.constant 0 : index
    %c16 = arith.constant 16 : index
    %54 = vector.load %arg6[%c0_20, %c16] : memref<128x32xf32, #tpu.memory_space<vmem>>, vector<128x8xf32>
    tpu.vector_store %arg6[%c0_20, %c16], %53 {strides = array<i32>} : memref<128x32xf32, #tpu.memory_space<vmem>>, vector<128x8xf32>,
    %55 = vector.extract_strided_slice %6 {offsets = [0, 0, 24], sizes = [2, 64, 8], strides = [1, 1, 1]} : vector<2x64x96xf32> to vector<2x64x8xf32>
    %56 = vector.extract_strided_slice %6 {offsets = [0, 0, 56], sizes = [2, 64, 8], strides = [1, 1, 1]} : vector<2x64x96xf32> to vector<2x64x8xf32>
    %57 = vector.extract_strided_slice %6 {offsets = [0, 0, 88], sizes = [2, 64, 8], strides = [1, 1, 1]} : vector<2x64x96xf32> to vector<2x64x8xf32>
    "tpu.trace_start"() <{level = 10 : i32, message = "bqd,bkd->bqk"}> : () -> ()
    %cst_21 = arith.constant dense<0.000000e+00> : vector<2x64x64xf32>
    %58 = tpu.matmul %55, %56, %cst_21 {dimension_numbers = #tpu.dot_dimension_numbers<[2], [2], [1], [1], [0, 0, 0, 1, 1, 1], [0], [0]>} : vector<2x64x8xf32>, vector<2x64x8xf32>, vector<2x64x64xf32> -> vector<2x64x64xf32>
    "tpu.trace_stop"() : () -> ()
    %cst_22 = arith.constant dense<0xFF800000> : vector<2x64xf32>
    %59 = vector.multi_reduction <maximumf>, %58, %cst_22 [2] : vector<2x64x64xf32> to vector<2x64xf32>
    %60 = vector.shape_cast %59 : vector<2x64xf32> to vector<2x64x1xf32>
    %61 = vector.broadcast %60 : vector<2x64x1xf32> to vector<2x64x64xf32>
    %62 = arith.subf %58, %61 : vector<2x64x64xf32>
    %63 = math.exp %62 : vector<2x64x64xf32>
    %cst_23 = arith.constant dense<0.000000e+00> : vector<2x64xf32>
    %64 = vector.multi_reduction <add>, %63, %cst_23 [2] : vector<2x64x64xf32> to vector<2x64xf32>
    %65 = vector.shape_cast %64 : vector<2x64xf32> to vector<2x64x1xf32>
    %66 = vector.broadcast %65 : vector<2x64x1xf32> to vector<2x64x64xf32>
    %67 = arith.divf %63, %66 : vector<2x64x64xf32>
    "tpu.trace_start"() <{level = 10 : i32, message = "bqk,bkd->bqd"}> : () -> ()
    %cst_24 = arith.constant dense<0.000000e+00> : vector<2x64x8xf32>
    %68 = tpu.matmul %67, %57, %cst_24 {dimension_numbers = #tpu.dot_dimension_numbers<[2], [1], [1], [2], [0, 0, 0, 1, 1, 2], [0], [0]>} : vector<2x64x64xf32>, vector<2x64x8xf32>, vector<2x64x8xf32> -> vector<2x64x8xf32>
    "tpu.trace_stop"() : () -> ()
    %69 = vector.shape_cast %68 : vector<2x64x8xf32> to vector<128x8xf32>
    %c0_25 = arith.constant 0 : index
    %c24 = arith.constant 24 : index
    %70 = vector.load %arg6[%c0_25, %c24] : memref<128x32xf32, #tpu.memory_space<vmem>>, vector<128x8xf32>
    tpu.vector_store %arg6[%c0_25, %c24], %69 {strides = array<i32>} : memref<128x32xf32, #tpu.memory_space<vmem>>, vector<128x8xf32>,
    %c0_26 = arith.constant 0 : index
    %c0_27 = arith.constant 0 : index
    %71 = vector.load %arg6[%c0_26, %c0_27] : memref<128x32xf32, #tpu.memory_space<vmem>>, vector<128x32xf32>
    %c0_28 = arith.constant 0 : index
    %c0_29 = arith.constant 0 : index
    %72 = vector.load %arg3[%c0_28, %c0_29] : memref<32x32xf32, #tpu.memory_space<vmem>>, vector<32x32xf32>
    %cst_30 = arith.constant dense<0.000000e+00> : vector<128x32xf32>
    %73 = tpu.matmul %71, %72, %cst_30 {dimension_numbers = #tpu.dot_dimension_numbers<[1], [0], [0], [1], [0, 0, 1, 1], [], []>} : vector<128x32xf32>, vector<32x32xf32>, vector<128x32xf32> -> vector<128x32xf32>
    %c0_31 = arith.constant 0 : index
    %c0_32 = arith.constant 0 : index
    %74 = vector.load %arg4[%c0_31, %c0_32] : memref<1x32xf32, #tpu.memory_space<vmem>>, vector<1x32xf32>
    %75 = vector.broadcast %74 : vector<1x32xf32> to vector<128x32xf32>
    %76 = arith.addf %73, %75 : vector<128x32xf32>
    %c0_33 = arith.constant 0 : index
    %c0_34 = arith.constant 0 : index
    %77 = vector.load %arg5[%c0_33, %c0_34] : memref<128x32xf32, #tpu.memory_space<vmem>>, vector<128x32xf32>
    tpu.vector_store %arg5[%c0_33, %c0_34], %76 {strides = array<i32>} : memref<128x32xf32, #tpu.memory_space<vmem>>, vector<128x32xf32>,
    return
  }
}

</mosaic_0001>

<llo_original>
// kernel: tpu_custom_call.1
$region0: #{tpu_custom_call.1}
  #allocation0 [shape = 'u32[]', space=smem, size = 0x4, offset = 0x4, fixed_abs, tag = 'smem constant byte address 0x4 - core index']
  #allocation1 [shape = 'u32[72,128]{1,0:T(1,128)}', space=vmem, size = 0x9000, scoped, tag = 'internal scratch']
  #allocation2 [shape = 'f32[128,32]{1,0:T(8,128)}', space=vmem, size = 0x10000, scoped, tag = 'scratch operand']
  %s0 = inlined_call_operand.vmem [shape: f32[128,32], index: 0, kind: input, shape index: {}]
  %s1 = inlined_call_operand.vmem [shape: f32[32,96], index: 1, kind: input, shape index: {}]
  %s2 = inlined_call_operand.vmem [shape: f32[1,96], index: 2, kind: input, shape index: {}]
  %s3 = inlined_call_operand.vmem [shape: f32[32,32], index: 3, kind: input, shape index: {}]
  %s4 = inlined_call_operand.vmem [shape: f32[1,32], index: 4, kind: input, shape index: {}]
  %s5 = inlined_call_operand.vmem [shape: f32[128,32], index: 5, kind: output, shape index: {}]
  %s6 = sld [smem:[#allocation0]]
  $region30: #{tpu_custom_call.1} parent=0
    _
  %s8 = ssub.s32 1, %s6
  %s9 = scalar_select 0, %s8, %s6
  // Predicated region
  $region2: #{tpu_custom_call.1} parent=0 // pred_check
    _
  $region3: #{tpu_custom_call.1} parent=0 // pred_check_branch
    %11 = sbr.rel (0) target = $region5
  $region4: #{tpu_custom_call.1} parent=0 // pred_region
    _
  $region5: #{tpu_custom_call.1} parent=0 // pred_fallthru
    _
  // Predicated region
  $region6: #{tpu_custom_call.1} parent=0 // pred_check
    _
  $region7: #{tpu_custom_call.1} parent=0 // pred_check_branch
    %13 = sbr.rel (0) target = $region9
  $region8: #{tpu_custom_call.1} parent=0 // pred_region
    _
  $region9: #{tpu_custom_call.1} parent=0 // pred_fallthru
    _
  // Predicated region
  $region10: #{tpu_custom_call.1} parent=0 // pred_check
    _
  $region11: #{tpu_custom_call.1} parent=0 // pred_check_branch
    %15 = sbr.rel (0) target = $region13
  $region12: #{tpu_custom_call.1} parent=0 // pred_region
    _
  $region13: #{tpu_custom_call.1} parent=0 // pred_fallthru
    _
  // Predicated region
  $region14: #{tpu_custom_call.1} parent=0 // pred_check
    _
  $region15: #{tpu_custom_call.1} parent=0 // pred_check_branch
    %17 = sbr.rel (0) target = $region17
  $region16: #{tpu_custom_call.1} parent=0 // pred_region
    _
  $region17: #{tpu_custom_call.1} parent=0 // pred_fallthru
    _
  // Predicated region
  $region18: #{tpu_custom_call.1} parent=0 // pred_check
    _
  $region19: #{tpu_custom_call.1} parent=0 // pred_check_branch
    %19 = sbr.rel (0) target = $region21
  $region20: #{tpu_custom_call.1} parent=0 // pred_region
    _
  $region21: #{tpu_custom_call.1} parent=0 // pred_fallthru
    _
  %v20 = vld [vmem:[%s0] sm:$0xff]
  %v21 = vld [vmem:[%s0 + $0x8] sm:$0xff]
  %v22 = vld [vmem:[%s0 + $0x10] sm:$0xff]
  %v23 = vld [vmem:[%s0 + $0x18] sm:$0xff]
  %v24 = vld [vmem:[%s0 + $0x20] sm:$0xff]
  %v25 = vld [vmem:[%s0 + $0x28] sm:$0xff]
  %v26 = vld [vmem:[%s0 + $0x30] sm:$0xff]
  %v27 = vld [vmem:[%s0 + $0x38] sm:$0xff]
  %v28 = vld [vmem:[%s0 + $0x40] sm:$0xff]
  %v29 = vld [vmem:[%s0 + $0x48] sm:$0xff]
  %v30 = vld [vmem:[%s0 + $0x50] sm:$0xff]
  %v31 = vld [vmem:[%s0 + $0x58] sm:$0xff]
  %v32 = vld [vmem:[%s0 + $0x60] sm:$0xff]
  %v33 = vld [vmem:[%s0 + $0x68] sm:$0xff]
  %v34 = vld [vmem:[%s0 + $0x70] sm:$0xff]
  %v35 = vld [vmem:[%s0 + $0x78] sm:$0xff]
  %v36 = vld [vmem:[%s1] sm:$0xff]
  %v37 = vld [vmem:[%s1 + $0x8] sm:$0xff]
  %v38 = vld [vmem:[%s1 + $0x10] sm:$0xff]
  %v39 = vld [vmem:[%s1 + $0x18] sm:$0xff]
  %v40 = vld [vmem:[%s2] sm:$0x1]
  %v42 = vperm.slane %v40, 0
  %vm44 = vcmask 261120
  %v46 = vsel %vm44, %v20, 0
  %v49 = vsel %vm44, %v21, 0
  %v52 = vsel %vm44, %v22, 0
  %v55 = vsel %vm44, %v23, 0
  %v58 = vsel %vm44, %v24, 0
  %v61 = vsel %vm44, %v25, 0
  %v64 = vsel %vm44, %v26, 0
  %v67 = vsel %vm44, %v27, 0
  %v70 = vsel %vm44, %v28, 0
  %v73 = vsel %vm44, %v29, 0
  %v76 = vsel %vm44, %v30, 0
  %v79 = vsel %vm44, %v31, 0
  %v82 = vsel %vm44, %v32, 0
  %v85 = vsel %vm44, %v33, 0
  %v88 = vsel %vm44, %v34, 0
  %v91 = vsel %vm44, %v35, 0
  %93 = vmatpush.msra.mxu0 0.0
  %94 = vmatpush.msra.mxu0 0.0
  %95 = vmatpush.msra.mxu0 0.0
  %96 = vmatpush.msra.mxu0 0.0
  %97 = vmatpush.msra.mxu0 0.0
  %98 = vmatpush.msra.mxu0 0.0
  %99 = vmatpush.msra.mxu0 0.0
  %100 = vmatpush.msra.mxu0 0.0
  %101 = vmatpush.msra.mxu0 0.0
  %102 = vmatpush.msra.mxu0 0.0
  %103 = vmatpush.msra.mxu0 0.0
  %104 = vmatpush.msra.mxu0 0.0
  %105 = vmatpush.msra.mxu0 %v39
  %106 = vmatpush.msra.mxu0 %v38
  %107 = vmatpush.msra.mxu0 %v37
  %108 = vmatpush.msra.mxu0 %v36
  %109 = vmatmul.f32.gmra.mxu0 %v46
  %v110 = vpop.f32.mrf.mxu0
  %v111 = vadd.f32 %v42, %v110
  %112 = vmatmul.f32.gmra.mxu0 %v49
  %v113 = vpop.f32.mrf.mxu0
  %v114 = vadd.f32 %v42, %v113
  %115 = vmatmul.f32.gmra.mxu0 %v52
  %v116 = vpop.f32.mrf.mxu0
  %v117 = vadd.f32 %v42, %v116
  %118 = vmatmul.f32.gmra.mxu0 %v55
  %v119 = vpop.f32.mrf.mxu0
  %v120 = vadd.f32 %v42, %v119
  %121 = vmatmul.f32.gmra.mxu0 %v58
  %v122 = vpop.f32.mrf.mxu0
  %v123 = vadd.f32 %v42, %v122
  %124 = vmatmul.f32.gmra.mxu0 %v61
  %v125 = vpop.f32.mrf.mxu0
  %v126 = vadd.f32 %v42, %v125
  %127 = vmatmul.f32.gmra.mxu0 %v64
  %v128 = vpop.f32.mrf.mxu0
  %v129 = vadd.f32 %v42, %v128
  %130 = vmatmul.f32.gmra.mxu0 %v67
  %v131 = vpop.f32.mrf.mxu0
  %v132 = vadd.f32 %v42, %v131
  %133 = vmatmul.f32.gmra.mxu0 %v70
  %v134 = vpop.f32.mrf.mxu0
  %v135 = vadd.f32 %v42, %v134
  %136 = vmatmul.f32.gmra.mxu0 %v73
  %v137 = vpop.f32.mrf.mxu0
  %v138 = vadd.f32 %v42, %v137
  %139 = vmatmul.f32.gmra.mxu0 %v76
  %v140 = vpop.f32.mrf.mxu0
  %v141 = vadd.f32 %v42, %v140
  %142 = vmatmul.f32.gmra.mxu0 %v79
  %v143 = vpop.f32.mrf.mxu0
  %v144 = vadd.f32 %v42, %v143
  %145 = vmatmul.f32.gmra.mxu0 %v82
  %v146 = vpop.f32.mrf.mxu0
  %v147 = vadd.f32 %v42, %v146
  %148 = vmatmul.f32.gmra.mxu0 %v85
  %v149 = vpop.f32.mrf.mxu0
  %v150 = vadd.f32 %v42, %v149
  %151 = vmatmul.f32.gmra.mxu0 %v88
  %v152 = vpop.f32.mrf.mxu0
  %v153 = vadd.f32 %v42, %v152
  %154 = vmatmul.f32.gmra.mxu0 %v91
  %v155 = vpop.f32.mrf.mxu0
  %v156 = vadd.f32 %v42, %v155
  %157 = vdwg.mxu0
  %166 = vrot.lane.b32.xlu0 %v111, 96
  %v167 = vpop.permute.xlu0 %166
  %168 = vrot.lane.b32.xlu0 %v114, 96
  %v169 = vpop.permute.xlu0 %168
  %170 = vrot.lane.b32.xlu0 %v117, 96
  %v171 = vpop.permute.xlu0 %170
  %172 = vrot.lane.b32.xlu0 %v120, 96
  %v173 = vpop.permute.xlu0 %172
  %174 = vrot.lane.b32.xlu0 %v123, 96
  %v175 = vpop.permute.xlu0 %174
  %176 = vrot.lane.b32.xlu0 %v126, 96
  %v177 = vpop.permute.xlu0 %176
  %178 = vrot.lane.b32.xlu0 %v129, 96
  %v179 = vpop.permute.xlu0 %178
  %180 = vrot.lane.b32.xlu0 %v132, 96
  %v181 = vpop.permute.xlu0 %180
  %vm182 = vcmask 64512
  %v183 = vsel %vm182, %v111, 0
  %v185 = vsel %vm182, %v114, 0
  %v187 = vsel %vm182, %v117, 0
  %v189 = vsel %vm182, %v120, 0
  %v191 = vsel %vm182, %v123, 0
  %v193 = vsel %vm182, %v126, 0
  %v195 = vsel %vm182, %v129, 0
  %v197 = vsel %vm182, %v132, 0
  %v199 = vsel %vm182, %v167, 0
  %v201 = vsel %vm182, %v169, 0
  %v203 = vsel %vm182, %v171, 0
  %v205 = vsel %vm182, %v173, 0
  %v207 = vsel %vm182, %v175, 0
  %v209 = vsel %vm182, %v177, 0
  %v211 = vsel %vm182, %v179, 0
  %v213 = vsel %vm182, %v181, 0
  %215 = vmatpush.xpose.msra.mxu0 0.0
  %216 = vmatpush.xpose.msra.mxu0 0.0
  %217 = vmatpush.xpose.msra.mxu0 0.0
  %218 = vmatpush.xpose.msra.mxu0 0.0
  %219 = vmatpush.xpose.msra.mxu0 0.0
  %220 = vmatpush.xpose.msra.mxu0 0.0
  %221 = vmatpush.xpose.msra.mxu0 0.0
  %222 = vmatpush.xpose.msra.mxu0 0.0
  %223 = vmatpush.xpose.msra.mxu0 %v213
  %224 = vmatpush.xpose.msra.mxu0 %v211
  %225 = vmatpush.xpose.msra.mxu0 %v209
  %226 = vmatpush.xpose.msra.mxu0 %v207
  %227 = vmatpush.xpose.msra.mxu0 %v205
  %228 = vmatpush.xpose.msra.mxu0 %v203
  %229 = vmatpush.xpose.msra.mxu0 %v201
  %230 = vmatpush.xpose.msra.mxu0 %v199
  %231 = vmatmul.f32.gmra.mxu0 %v183
  %v232 = vpop.f32.mrf.mxu0
  %v233 = vadd.f32 0.0, %v232
  %234 = vmatmul.f32.gmra.mxu0 %v185
  %v235 = vpop.f32.mrf.mxu0
  %v236 = vadd.f32 0.0, %v235
  %237 = vmatmul.f32.gmra.mxu0 %v187
  %v238 = vpop.f32.mrf.mxu0
  %v239 = vadd.f32 0.0, %v238
  %240 = vmatmul.f32.gmra.mxu0 %v189
  %v241 = vpop.f32.mrf.mxu0
  %v242 = vadd.f32 0.0, %v241
  %243 = vmatmul.f32.gmra.mxu0 %v191
  %v244 = vpop.f32.mrf.mxu0
  %v245 = vadd.f32 0.0, %v244
  %246 = vmatmul.f32.gmra.mxu0 %v193
  %v247 = vpop.f32.mrf.mxu0
  %v248 = vadd.f32 0.0, %v247
  %249 = vmatmul.f32.gmra.mxu0 %v195
  %v250 = vpop.f32.mrf.mxu0
  %v251 = vadd.f32 0.0, %v250
  %252 = vmatmul.f32.gmra.mxu0 %v197
  %v253 = vpop.f32.mrf.mxu0
  %v254 = vadd.f32 0.0, %v253
  %255 = vdwg.mxu0
  %264 = vrot.lane.b32.xlu0 %v135, 96
  %v265 = vpop.permute.xlu0 %264
  %266 = vrot.lane.b32.xlu0 %v138, 96
  %v267 = vpop.permute.xlu0 %266
  %268 = vrot.lane.b32.xlu0 %v141, 96
  %v269 = vpop.permute.xlu0 %268
  %270 = vrot.lane.b32.xlu0 %v144, 96
  %v271 = vpop.permute.xlu0 %270
  %272 = vrot.lane.b32.xlu0 %v147, 96
  %v273 = vpop.permute.xlu0 %272
  %274 = vrot.lane.b32.xlu0 %v150, 96
  %v275 = vpop.permute.xlu0 %274
  %276 = vrot.lane.b32.xlu0 %v153, 96
  %v277 = vpop.permute.xlu0 %276
  %278 = vrot.lane.b32.xlu0 %v156, 96
  %v279 = vpop.permute.xlu0 %278
  %v280 = vsel %vm182, %v135, 0
  %v282 = vsel %vm182, %v138, 0
  %v284 = vsel %vm182, %v141, 0
  %v286 = vsel %vm182, %v144, 0
  %v288 = vsel %vm182, %v147, 0
  %v290 = vsel %vm182, %v150, 0
  %v292 = vsel %vm182, %v153, 0
  %v294 = vsel %vm182, %v156, 0
  %v296 = vsel %vm182, %v265, 0
  %v298 = vsel %vm182, %v267, 0
  %v300 = vsel %vm182, %v269, 0
  %v302 = vsel %vm182, %v271, 0
  %v304 = vsel %vm182, %v273, 0
  %v306 = vsel %vm182, %v275, 0
  %v308 = vsel %vm182, %v277, 0
  %v310 = vsel %vm182, %v279, 0
  %312 = vmatpush.xpose.msra.mxu0 0.0
  %313 = vmatpush.xpose.msra.mxu0 0.0
  %314 = vmatpush.xpose.msra.mxu0 0.0
  %315 = vmatpush.xpose.msra.mxu0 0.0
  %316 = vmatpush.xpose.msra.mxu0 0.0
  %317 = vmatpush.xpose.msra.mxu0 0.0
  %318 = vmatpush.xpose.msra.mxu0 0.0
  %319 = vmatpush.xpose.msra.mxu0 0.0
  %320 = vmatpush.xpose.msra.mxu0 %v310
  %321 = vmatpush.xpose.msra.mxu0 %v308
  %322 = vmatpush.xpose.msra.mxu0 %v306
  %323 = vmatpush.xpose.msra.mxu0 %v304
  %324 = vmatpush.xpose.msra.mxu0 %v302
  %325 = vmatpush.xpose.msra.mxu0 %v300
  %326 = vmatpush.xpose.msra.mxu0 %v298
  %327 = vmatpush.xpose.msra.mxu0 %v296
  %328 = vmatmul.f32.gmra.mxu0 %v280
  %v329 = vpop.f32.mrf.mxu0
  %v330 = vadd.f32 0.0, %v329
  %331 = vmatmul.f32.gmra.mxu0 %v282
  %v332 = vpop.f32.mrf.mxu0
  %v333 = vadd.f32 0.0, %v332
  %334 = vmatmul.f32.gmra.mxu0 %v284
  %v335 = vpop.f32.mrf.mxu0
  %v336 = vadd.f32 0.0, %v335
  %337 = vmatmul.f32.gmra.mxu0 %v286
  %v338 = vpop.f32.mrf.mxu0
  %v339 = vadd.f32 0.0, %v338
  %340 = vmatmul.f32.gmra.mxu0 %v288
  %v341 = vpop.f32.mrf.mxu0
  %v342 = vadd.f32 0.0, %v341
  %343 = vmatmul.f32.gmra.mxu0 %v290
  %v344 = vpop.f32.mrf.mxu0
  %v345 = vadd.f32 0.0, %v344
  %346 = vmatmul.f32.gmra.mxu0 %v292
  %v347 = vpop.f32.mrf.mxu0
  %v348 = vadd.f32 0.0, %v347
  %349 = vmatmul.f32.gmra.mxu0 %v294
  %v350 = vpop.f32.mrf.mxu0
  %v351 = vadd.f32 0.0, %v350
  %352 = vdwg.mxu0
  %vm353 = vcmask 523264
  %v354 = vsel %vm353, %v233, -inf
  %355 = vmax.xlane.f32.xlu0 %v354
  %v356 = vpop.xlane.xlu0 %355
  %v357 = vsel %vm353, %v236, -inf
  %358 = vmax.xlane.f32.xlu0 %v357
  %v359 = vpop.xlane.xlu0 %358
  %v360 = vsel %vm353, %v239, -inf
  %361 = vmax.xlane.f32.xlu0 %v360
  %v362 = vpop.xlane.xlu0 %361
  %v363 = vsel %vm353, %v242, -inf
  %364 = vmax.xlane.f32.xlu0 %v363
  %v365 = vpop.xlane.xlu0 %364
  %v366 = vsel %vm353, %v245, -inf
  %367 = vmax.xlane.f32.xlu0 %v366
  %v368 = vpop.xlane.xlu0 %367
  %v369 = vsel %vm353, %v248, -inf
  %370 = vmax.xlane.f32.xlu0 %v369
  %v371 = vpop.xlane.xlu0 %370
  %v372 = vsel %vm353, %v251, -inf
  %373 = vmax.xlane.f32.xlu0 %v372
  %v374 = vpop.xlane.xlu0 %373
  %v375 = vsel %vm353, %v254, -inf
  %376 = vmax.xlane.f32.xlu0 %v375
  %v377 = vpop.xlane.xlu0 %376
  %v378 = vsel %vm353, %v330, -inf
  %379 = vmax.xlane.f32.xlu0 %v378
  %v380 = vpop.xlane.xlu0 %379
  %v381 = vsel %vm353, %v333, -inf
  %382 = vmax.xlane.f32.xlu0 %v381
  %v383 = vpop.xlane.xlu0 %382
  %v384 = vsel %vm353, %v336, -inf
  %385 = vmax.xlane.f32.xlu0 %v384
  %v386 = vpop.xlane.xlu0 %385
  %v387 = vsel %vm353, %v339, -inf
  %388 = vmax.xlane.f32.xlu0 %v387
  %v389 = vpop.xlane.xlu0 %388
  %v390 = vsel %vm353, %v342, -inf
  %391 = vmax.xlane.f32.xlu0 %v390
  %v392 = vpop.xlane.xlu0 %391
  %v393 = vsel %vm353, %v345, -inf
  %394 = vmax.xlane.f32.xlu0 %v393
  %v395 = vpop.xlane.xlu0 %394
  %v396 = vsel %vm353, %v348, -inf
  %397 = vmax.xlane.f32.xlu0 %v396
  %v398 = vpop.xlane.xlu0 %397
  %v399 = vsel %vm353, %v351, -inf
  %400 = vmax.xlane.f32.xlu0 %v399
  %v401 = vpop.xlane.xlu0 %400
  %v402 = vsub.f32 %v233, %v356
  %v403 = vsub.f32 %v236, %v359
  %v404 = vsub.f32 %v239, %v362
  %v405 = vsub.f32 %v242, %v365
  %v406 = vsub.f32 %v245, %v368
  %v407 = vsub.f32 %v248, %v371
  %v408 = vsub.f32 %v251, %v374
  %v409 = vsub.f32 %v254, %v377
  %v410 = vsub.f32 %v330, %v380
  %v411 = vsub.f32 %v333, %v383
  %v412 = vsub.f32 %v336, %v386
  %v413 = vsub.f32 %v339, %v389
  %v414 = vsub.f32 %v342, %v392
  %v415 = vsub.f32 %v345, %v395
  %v416 = vsub.f32 %v348, %v398
  %v417 = vsub.f32 %v351, %v401
  %v418 = vmul.f32 %v402, 1.442695
  %v419 = vpow.pop %v418
  %v420 = vmul.f32 %v403, 1.442695
  %v421 = vpow.pop %v420
  %v422 = vmul.f32 %v404, 1.442695
  %v423 = vpow.pop %v422
  %v424 = vmul.f32 %v405, 1.442695
  %v425 = vpow.pop %v424
  %v426 = vmul.f32 %v406, 1.442695
  %v427 = vpow.pop %v426
  %v428 = vmul.f32 %v407, 1.442695
  %v429 = vpow.pop %v428
  %v430 = vmul.f32 %v408, 1.442695
  %v431 = vpow.pop %v430
  %v432 = vmul.f32 %v409, 1.442695
  %v433 = vpow.pop %v432
  %v434 = vmul.f32 %v410, 1.442695
  %v435 = vpow.pop %v434
  %v436 = vmul.f32 %v411, 1.442695
  %v437 = vpow.pop %v436
  %v438 = vmul.f32 %v412, 1.442695
  %v439 = vpow.pop %v438
  %v440 = vmul.f32 %v413, 1.442695
  %v441 = vpow.pop %v440
  %v442 = vmul.f32 %v414, 1.442695
  %v443 = vpow.pop %v442
  %v444 = vmul.f32 %v415, 1.442695
  %v445 = vpow.pop %v444
  %v446 = vmul.f32 %v416, 1.442695
  %v447 = vpow.pop %v446
  %v448 = vmul.f32 %v417, 1.442695
  %v449 = vpow.pop %v448
  %v450 = vsel %vm353, %v419, 0.0
  %451 = vadd.xlane.f32.xlu0 %v450
  %v452 = vpop.xlane.xlu0 %451
  %v453 = vsel %vm353, %v421, 0.0
  %454 = vadd.xlane.f32.xlu0 %v453
  %v455 = vpop.xlane.xlu0 %454
  %v456 = vsel %vm353, %v423, 0.0
  %457 = vadd.xlane.f32.xlu0 %v456
  %v458 = vpop.xlane.xlu0 %457
  %v459 = vsel %vm353, %v425, 0.0
  %460 = vadd.xlane.f32.xlu0 %v459
  %v461 = vpop.xlane.xlu0 %460
  %v462 = vsel %vm353, %v427, 0.0
  %463 = vadd.xlane.f32.xlu0 %v462
  %v464 = vpop.xlane.xlu0 %463
  %v465 = vsel %vm353, %v429, 0.0
  %466 = vadd.xlane.f32.xlu0 %v465
  %v467 = vpop.xlane.xlu0 %466
  %v468 = vsel %vm353, %v431, 0.0
  %469 = vadd.xlane.f32.xlu0 %v468
  %v470 = vpop.xlane.xlu0 %469
  %v471 = vsel %vm353, %v433, 0.0
  %472 = vadd.xlane.f32.xlu0 %v471
  %v473 = vpop.xlane.xlu0 %472
  %v474 = vsel %vm353, %v435, 0.0
  %475 = vadd.xlane.f32.xlu0 %v474
  %v476 = vpop.xlane.xlu0 %475
  %v477 = vsel %vm353, %v437, 0.0
  %478 = vadd.xlane.f32.xlu0 %v477
  %v479 = vpop.xlane.xlu0 %478
  %v480 = vsel %vm353, %v439, 0.0
  %481 = vadd.xlane.f32.xlu0 %v480
  %v482 = vpop.xlane.xlu0 %481
  %v483 = vsel %vm353, %v441, 0.0
  %484 = vadd.xlane.f32.xlu0 %v483
  %v485 = vpop.xlane.xlu0 %484
  %v486 = vsel %vm353, %v443, 0.0
  %487 = vadd.xlane.f32.xlu0 %v486
  %v488 = vpop.xlane.xlu0 %487
  %v489 = vsel %vm353, %v445, 0.0
  %490 = vadd.xlane.f32.xlu0 %v489
  %v491 = vpop.xlane.xlu0 %490
  %v492 = vsel %vm353, %v447, 0.0
  %493 = vadd.xlane.f32.xlu0 %v492
  %v494 = vpop.xlane.xlu0 %493
  %v495 = vsel %vm353, %v449, 0.0
  %496 = vadd.xlane.f32.xlu0 %v495
  %v497 = vpop.xlane.xlu0 %496
  %v498 = vrcp.pop %v452
  %v499 = vmul.f32 %v452, %v498
  %v500 = vsub.f32 1.0, %v499
  %v501 = vmul.f32 %v498, %v500
  %v502 = vadd.f32 %v498, %v501
  %vm503 = vweird.f32 %v452
  %vm504 = vweird.f32 %v498
  %vm505 = vmor %vm503, %vm504
  %v506 = vsel %vm505, %v498, %v502
  %v507 = vand.u32 2147483647, %v452
  %vm508 = vcmp.eq.f32.partialorder %v507, 8.507059e+37
  %v509 = vand.u32 %v452, 2147483648
  %v510 = vor.u32 1.1754944e-38, %v509
  %v511 = vsel %vm508, %v510, %v506
  %v512 = vmul.f32 %v419, %v511
  %v513 = vrcp.pop %v455
  %v514 = vmul.f32 %v455, %v513
  %v515 = vsub.f32 1.0, %v514
  %v516 = vmul.f32 %v513, %v515
  %v517 = vadd.f32 %v513, %v516
  %vm518 = vweird.f32 %v455
  %vm519 = vweird.f32 %v513
  %vm520 = vmor %vm518, %vm519
  %v521 = vsel %vm520, %v513, %v517
  %v522 = vand.u32 2147483647, %v455
  %vm523 = vcmp.eq.f32.partialorder %v522, 8.507059e+37
  %v524 = vand.u32 %v455, 2147483648
  %v525 = vor.u32 1.1754944e-38, %v524
  %v526 = vsel %vm523, %v525, %v521
  %v527 = vmul.f32 %v421, %v526
  %v528 = vrcp.pop %v458
  %v529 = vmul.f32 %v458, %v528
  %v530 = vsub.f32 1.0, %v529
  %v531 = vmul.f32 %v528, %v530
  %v532 = vadd.f32 %v528, %v531
  %vm533 = vweird.f32 %v458
  %vm534 = vweird.f32 %v528
  %vm535 = vmor %vm533, %vm534
  %v536 = vsel %vm535, %v528, %v532
  %v537 = vand.u32 2147483647, %v458
  %vm538 = vcmp.eq.f32.partialorder %v537, 8.507059e+37
  %v539 = vand.u32 %v458, 2147483648
  %v540 = vor.u32 1.1754944e-38, %v539
  %v541 = vsel %vm538, %v540, %v536
  %v542 = vmul.f32 %v423, %v541
  %v543 = vrcp.pop %v461
  %v544 = vmul.f32 %v461, %v543
  %v545 = vsub.f32 1.0, %v544
  %v546 = vmul.f32 %v543, %v545
  %v547 = vadd.f32 %v543, %v546
  %vm548 = vweird.f32 %v461
  %vm549 = vweird.f32 %v543
  %vm550 = vmor %vm548, %vm549
  %v551 = vsel %vm550, %v543, %v547
  %v552 = vand.u32 2147483647, %v461
  %vm553 = vcmp.eq.f32.partialorder %v552, 8.507059e+37
  %v554 = vand.u32 %v461, 2147483648
  %v555 = vor.u32 1.1754944e-38, %v554
  %v556 = vsel %vm553, %v555, %v551
  %v557 = vmul.f32 %v425, %v556
  %v558 = vrcp.pop %v464
  %v559 = vmul.f32 %v464, %v558
  %v560 = vsub.f32 1.0, %v559
  %v561 = vmul.f32 %v558, %v560
  %v562 = vadd.f32 %v558, %v561
  %vm563 = vweird.f32 %v464
  %vm564 = vweird.f32 %v558
  %vm565 = vmor %vm563, %vm564
  %v566 = vsel %vm565, %v558, %v562
  %v567 = vand.u32 2147483647, %v464
  %vm568 = vcmp.eq.f32.partialorder %v567, 8.507059e+37
  %v569 = vand.u32 %v464, 2147483648
  %v570 = vor.u32 1.1754944e-38, %v569
  %v571 = vsel %vm568, %v570, %v566
  %v572 = vmul.f32 %v427, %v571
  %v573 = vrcp.pop %v467
  %v574 = vmul.f32 %v467, %v573
  %v575 = vsub.f32 1.0, %v574
  %v576 = vmul.f32 %v573, %v575
  %v577 = vadd.f32 %v573, %v576
  %vm578 = vweird.f32 %v467
  %vm579 = vweird.f32 %v573
  %vm580 = vmor %vm578, %vm579
  %v581 = vsel %vm580, %v573, %v577
  %v582 = vand.u32 2147483647, %v467
  %vm583 = vcmp.eq.f32.partialorder %v582, 8.507059e+37
  %v584 = vand.u32 %v467, 2147483648
  %v585 = vor.u32 1.1754944e-38, %v584
  %v586 = vsel %vm583, %v585, %v581
  %v587 = vmul.f32 %v429, %v586
  %v588 = vrcp.pop %v470
  %v589 = vmul.f32 %v470, %v588
  %v590 = vsub.f32 1.0, %v589
  %v591 = vmul.f32 %v588, %v590
  %v592 = vadd.f32 %v588, %v591
  %vm593 = vweird.f32 %v470
  %vm594 = vweird.f32 %v588
  %vm595 = vmor %vm593, %vm594
  %v596 = vsel %vm595, %v588, %v592
  %v597 = vand.u32 2147483647, %v470
  %vm598 = vcmp.eq.f32.partialorder %v597, 8.507059e+37
  %v599 = vand.u32 %v470, 2147483648
  %v600 = vor.u32 1.1754944e-38, %v599
  %v601 = vsel %vm598, %v600, %v596
  %v602 = vmul.f32 %v431, %v601
  %v603 = vrcp.pop %v473
  %v604 = vmul.f32 %v473, %v603
  %v605 = vsub.f32 1.0, %v604
  %v606 = vmul.f32 %v603, %v605
  %v607 = vadd.f32 %v603, %v606
  %vm608 = vweird.f32 %v473
  %vm609 = vweird.f32 %v603
  %vm610 = vmor %vm608, %vm609
  %v611 = vsel %vm610, %v603, %v607
  %v612 = vand.u32 2147483647, %v473
  %vm613 = vcmp.eq.f32.partialorder %v612, 8.507059e+37
  %v614 = vand.u32 %v473, 2147483648
  %v615 = vor.u32 1.1754944e-38, %v614
  %v616 = vsel %vm613, %v615, %v611
  %v617 = vmul.f32 %v433, %v616
  %v618 = vrcp.pop %v476
  %v619 = vmul.f32 %v476, %v618
  %v620 = vsub.f32 1.0, %v619
  %v621 = vmul.f32 %v618, %v620
  %v622 = vadd.f32 %v618, %v621
  %vm623 = vweird.f32 %v476
  %vm624 = vweird.f32 %v618
  %vm625 = vmor %vm623, %vm624
  %v626 = vsel %vm625, %v618, %v622
  %v627 = vand.u32 2147483647, %v476
  %vm628 = vcmp.eq.f32.partialorder %v627, 8.507059e+37
  %v629 = vand.u32 %v476, 2147483648
  %v630 = vor.u32 1.1754944e-38, %v629
  %v631 = vsel %vm628, %v630, %v626
  %v632 = vmul.f32 %v435, %v631
  %v633 = vrcp.pop %v479
  %v634 = vmul.f32 %v479, %v633
  %v635 = vsub.f32 1.0, %v634
  %v636 = vmul.f32 %v633, %v635
  %v637 = vadd.f32 %v633, %v636
  %vm638 = vweird.f32 %v479
  %vm639 = vweird.f32 %v633
  %vm640 = vmor %vm638, %vm639
  %v641 = vsel %vm640, %v633, %v637
  %v642 = vand.u32 2147483647, %v479
  %vm643 = vcmp.eq.f32.partialorder %v642, 8.507059e+37
  %v644 = vand.u32 %v479, 2147483648
  %v645 = vor.u32 1.1754944e-38, %v644
  %v646 = vsel %vm643, %v645, %v641
  %v647 = vmul.f32 %v437, %v646
  %v648 = vrcp.pop %v482
  %v649 = vmul.f32 %v482, %v648
  %v650 = vsub.f32 1.0, %v649
  %v651 = vmul.f32 %v648, %v650
  %v652 = vadd.f32 %v648, %v651
  %vm653 = vweird.f32 %v482
  %vm654 = vweird.f32 %v648
  %vm655 = vmor %vm653, %vm654
  %v656 = vsel %vm655, %v648, %v652
  %v657 = vand.u32 2147483647, %v482
  %vm658 = vcmp.eq.f32.partialorder %v657, 8.507059e+37
  %v659 = vand.u32 %v482, 2147483648
  %v660 = vor.u32 1.1754944e-38, %v659
  %v661 = vsel %vm658, %v660, %v656
  %v662 = vmul.f32 %v439, %v661
  %v663 = vrcp.pop %v485
  %v664 = vmul.f32 %v485, %v663
  %v665 = vsub.f32 1.0, %v664
  %v666 = vmul.f32 %v663, %v665
  %v667 = vadd.f32 %v663, %v666
  %vm668 = vweird.f32 %v485
  %vm669 = vweird.f32 %v663
  %vm670 = vmor %vm668, %vm669
  %v671 = vsel %vm670, %v663, %v667
  %v672 = vand.u32 2147483647, %v485
  %vm673 = vcmp.eq.f32.partialorder %v672, 8.507059e+37
  %v674 = vand.u32 %v485, 2147483648
  %v675 = vor.u32 1.1754944e-38, %v674
  %v676 = vsel %vm673, %v675, %v671
  %v677 = vmul.f32 %v441, %v676
  %v678 = vrcp.pop %v488
  %v679 = vmul.f32 %v488, %v678
  %v680 = vsub.f32 1.0, %v679
  %v681 = vmul.f32 %v678, %v680
  %v682 = vadd.f32 %v678, %v681
  %vm683 = vweird.f32 %v488
  %vm684 = vweird.f32 %v678
  %vm685 = vmor %vm683, %vm684
  %v686 = vsel %vm685, %v678, %v682
  %v687 = vand.u32 2147483647, %v488
  %vm688 = vcmp.eq.f32.partialorder %v687, 8.507059e+37
  %v689 = vand.u32 %v488, 2147483648
  %v690 = vor.u32 1.1754944e-38, %v689
  %v691 = vsel %vm688, %v690, %v686
  %v692 = vmul.f32 %v443, %v691
  %v693 = vrcp.pop %v491
  %v694 = vmul.f32 %v491, %v693
  %v695 = vsub.f32 1.0, %v694
  %v696 = vmul.f32 %v693, %v695
  %v697 = vadd.f32 %v693, %v696
  %vm698 = vweird.f32 %v491
  %vm699 = vweird.f32 %v693
  %vm700 = vmor %vm698, %vm699
  %v701 = vsel %vm700, %v693, %v697
  %v702 = vand.u32 2147483647, %v491
  %vm703 = vcmp.eq.f32.partialorder %v702, 8.507059e+37
  %v704 = vand.u32 %v491, 2147483648
  %v705 = vor.u32 1.1754944e-38, %v704
  %v706 = vsel %vm703, %v705, %v701
  %v707 = vmul.f32 %v445, %v706
  %v708 = vrcp.pop %v494
  %v709 = vmul.f32 %v494, %v708
  %v710 = vsub.f32 1.0, %v709
  %v711 = vmul.f32 %v708, %v710
  %v712 = vadd.f32 %v708, %v711
  %vm713 = vweird.f32 %v494
  %vm714 = vweird.f32 %v708
  %vm715 = vmor %vm713, %vm714
  %v716 = vsel %vm715, %v708, %v712
  %v717 = vand.u32 2147483647, %v494
  %vm718 = vcmp.eq.f32.partialorder %v717, 8.507059e+37
  %v719 = vand.u32 %v494, 2147483648
  %v720 = vor.u32 1.1754944e-38, %v719
  %v721 = vsel %vm718, %v720, %v716
  %v722 = vmul.f32 %v447, %v721
  %v723 = vrcp.pop %v497
  %v724 = vmul.f32 %v497, %v723
  %v725 = vsub.f32 1.0, %v724
  %v726 = vmul.f32 %v723, %v725
  %v727 = vadd.f32 %v723, %v726
  %vm728 = vweird.f32 %v497
  %vm729 = vweird.f32 %v723
  %vm730 = vmor %vm728, %vm729
  %v731 = vsel %vm730, %v723, %v727
  %v732 = vand.u32 2147483647, %v497
  %vm733 = vcmp.eq.f32.partialorder %v732, 8.507059e+37
  %v734 = vand.u32 %v497, 2147483648
  %v735 = vor.u32 1.1754944e-38, %v734
  %v736 = vsel %vm733, %v735, %v731
  %v737 = vmul.f32 %v449, %v736
  %738 = vrot.lane.b32.xlu0 %v111, 64
  %v739 = vpop.permute.xlu0 %738
  %740 = vrot.lane.b32.xlu0 %v114, 64
  %v741 = vpop.permute.xlu0 %740
  %742 = vrot.lane.b32.xlu0 %v117, 64
  %v743 = vpop.permute.xlu0 %742
  %744 = vrot.lane.b32.xlu0 %v120, 64
  %v745 = vpop.permute.xlu0 %744
  %746 = vrot.lane.b32.xlu0 %v123, 64
  %v747 = vpop.permute.xlu0 %746
  %748 = vrot.lane.b32.xlu0 %v126, 64
  %v749 = vpop.permute.xlu0 %748
  %750 = vrot.lane.b32.xlu0 %v129, 64
  %v751 = vpop.permute.xlu0 %750
  %752 = vrot.lane.b32.xlu0 %v132, 64
  %v753 = vpop.permute.xlu0 %752
  %v763 = vsel %vm353, %v512, 0
  %v766 = vsel %vm353, %v527, 0
  %v769 = vsel %vm353, %v542, 0
  %v772 = vsel %vm353, %v557, 0
  %v775 = vsel %vm353, %v572, 0
  %v778 = vsel %vm353, %v587, 0
  %v781 = vsel %vm353, %v602, 0
  %v784 = vsel %vm353, %v617, 0
  %786 = vmatpush.msra.mxu0 0.0
  %787 = vmatpush.msra.mxu0 0.0
  %788 = vmatpush.msra.mxu0 0.0
  %789 = vmatpush.msra.mxu0 0.0
  %790 = vmatpush.msra.mxu0 0.0
  %791 = vmatpush.msra.mxu0 0.0
  %792 = vmatpush.msra.mxu0 0.0
  %793 = vmatpush.msra.mxu0 0.0
  %794 = vmatpush.msra.mxu0 %v753
  %795 = vmatpush.msra.mxu0 %v751
  %796 = vmatpush.msra.mxu0 %v749
  %797 = vmatpush.msra.mxu0 %v747
  %798 = vmatpush.msra.mxu0 %v745
  %799 = vmatpush.msra.mxu0 %v743
  %800 = vmatpush.msra.mxu0 %v741
  %801 = vmatpush.msra.mxu0 %v739
  %802 = vmatmul.f32.gmra.mxu0 %v763
  %v803 = vpop.f32.mrf.mxu0
  %v804 = vadd.f32 0.0, %v803
  %805 = vmatmul.f32.gmra.mxu0 %v766
  %v806 = vpop.f32.mrf.mxu0
  %v807 = vadd.f32 0.0, %v806
  %808 = vmatmul.f32.gmra.mxu0 %v769
  %v809 = vpop.f32.mrf.mxu0
  %v810 = vadd.f32 0.0, %v809
  %811 = vmatmul.f32.gmra.mxu0 %v772
  %v812 = vpop.f32.mrf.mxu0
  %v813 = vadd.f32 0.0, %v812
  %814 = vmatmul.f32.gmra.mxu0 %v775
  %v815 = vpop.f32.mrf.mxu0
  %v816 = vadd.f32 0.0, %v815
  %817 = vmatmul.f32.gmra.mxu0 %v778
  %v818 = vpop.f32.mrf.mxu0
  %v819 = vadd.f32 0.0, %v818
  %820 = vmatmul.f32.gmra.mxu0 %v781
  %v821 = vpop.f32.mrf.mxu0
  %v822 = vadd.f32 0.0, %v821
  %823 = vmatmul.f32.gmra.mxu0 %v784
  %v824 = vpop.f32.mrf.mxu0
  %v825 = vadd.f32 0.0, %v824
  %826 = vdwg.mxu0
  %827 = vrot.lane.b32.xlu0 %v135, 64
  %v828 = vpop.permute.xlu0 %827
  %829 = vrot.lane.b32.xlu0 %v138, 64
  %v830 = vpop.permute.xlu0 %829
  %831 = vrot.lane.b32.xlu0 %v141, 64
  %v832 = vpop.permute.xlu0 %831
  %833 = vrot.lane.b32.xlu0 %v144, 64
  %v834 = vpop.permute.xlu0 %833
  %835 = vrot.lane.b32.xlu0 %v147, 64
  %v836 = vpop.permute.xlu0 %835
  %837 = vrot.lane.b32.xlu0 %v150, 64
  %v838 = vpop.permute.xlu0 %837
  %839 = vrot.lane.b32.xlu0 %v153, 64
  %v840 = vpop.permute.xlu0 %839
  %841 = vrot.lane.b32.xlu0 %v156, 64
  %v842 = vpop.permute.xlu0 %841
  %v852 = vsel %vm353, %v632, 0
  %v855 = vsel %vm353, %v647, 0
  %v858 = vsel %vm353, %v662, 0
  %v861 = vsel %vm353, %v677, 0
  %v864 = vsel %vm353, %v692, 0
  %v867 = vsel %vm353, %v707, 0
  %v870 = vsel %vm353, %v722, 0
  %v873 = vsel %vm353, %v737, 0
  %875 = vmatpush.msra.mxu0 0.0
  %876 = vmatpush.msra.mxu0 0.0
  %877 = vmatpush.msra.mxu0 0.0
  %878 = vmatpush.msra.mxu0 0.0
  %879 = vmatpush.msra.mxu0 0.0
  %880 = vmatpush.msra.mxu0 0.0
  %881 = vmatpush.msra.mxu0 0.0
  %882 = vmatpush.msra.mxu0 0.0
  %883 = vmatpush.msra.mxu0 %v842
  %884 = vmatpush.msra.mxu0 %v840
  %885 = vmatpush.msra.mxu0 %v838
  %886 = vmatpush.msra.mxu0 %v836
  %887 = vmatpush.msra.mxu0 %v834
  %888 = vmatpush.msra.mxu0 %v832
  %889 = vmatpush.msra.mxu0 %v830
  %890 = vmatpush.msra.mxu0 %v828
  %891 = vmatmul.f32.gmra.mxu0 %v852
  %v892 = vpop.f32.mrf.mxu0
  %v893 = vadd.f32 0.0, %v892
  %894 = vmatmul.f32.gmra.mxu0 %v855
  %v895 = vpop.f32.mrf.mxu0
  %v896 = vadd.f32 0.0, %v895
  %897 = vmatmul.f32.gmra.mxu0 %v858
  %v898 = vpop.f32.mrf.mxu0
  %v899 = vadd.f32 0.0, %v898
  %900 = vmatmul.f32.gmra.mxu0 %v861
  %v901 = vpop.f32.mrf.mxu0
  %v902 = vadd.f32 0.0, %v901
  %903 = vmatmul.f32.gmra.mxu0 %v864
  %v904 = vpop.f32.mrf.mxu0
  %v905 = vadd.f32 0.0, %v904
  %906 = vmatmul.f32.gmra.mxu0 %v867
  %v907 = vpop.f32.mrf.mxu0
  %v908 = vadd.f32 0.0, %v907
  %909 = vmatmul.f32.gmra.mxu0 %v870
  %v910 = vpop.f32.mrf.mxu0
  %v911 = vadd.f32 0.0, %v910
  %912 = vmatmul.f32.gmra.mxu0 %v873
  %v913 = vpop.f32.mrf.mxu0
  %v914 = vadd.f32 0.0, %v913
  %915 = vdwg.mxu0
  %916 = vst.msk [vmem:[#allocation2] sm:$0xff] %vm182, %v804
  %917 = vst.msk [vmem:[#allocation2 + $0x8] sm:$0xff] %vm182, %v807
  %918 = vst.msk [vmem:[#allocation2 + $0x10] sm:$0xff] %vm182, %v810
  %919 = vst.msk [vmem:[#allocation2 + $0x18] sm:$0xff] %vm182, %v813
  %920 = vst.msk [vmem:[#allocation2 + $0x20] sm:$0xff] %vm182, %v816
  %921 = vst.msk [vmem:[#allocation2 + $0x28] sm:$0xff] %vm182, %v819
  %922 = vst.msk [vmem:[#allocation2 + $0x30] sm:$0xff] %vm182, %v822
  %923 = vst.msk [vmem:[#allocation2 + $0x38] sm:$0xff] %vm182, %v825
  %924 = vst.msk [vmem:[#allocation2 + $0x40] sm:$0xff] %vm182, %v893
  %925 = vst.msk [vmem:[#allocation2 + $0x48] sm:$0xff] %vm182, %v896
  %926 = vst.msk [vmem:[#allocation2 + $0x50] sm:$0xff] %vm182, %v899
  %927 = vst.msk [vmem:[#allocation2 + $0x58] sm:$0xff] %vm182, %v902
  %928 = vst.msk [vmem:[#allocation2 + $0x60] sm:$0xff] %vm182, %v905
  %929 = vst.msk [vmem:[#allocation2 + $0x68] sm:$0xff] %vm182, %v908
  %930 = vst.msk [vmem:[#allocation2 + $0x70] sm:$0xff] %vm182, %v911
  %931 = vst.msk [vmem:[#allocation2 + $0x78] sm:$0xff] %vm182, %v914
  %932 = vrot.lane.b32.xlu0 %v111, 120
  %v933 = vpop.permute.xlu0 %932
  %934 = vrot.lane.b32.xlu0 %v114, 120
  %v935 = vpop.permute.xlu0 %934
  %936 = vrot.lane.b32.xlu0 %v117, 120
  %v937 = vpop.permute.xlu0 %936
  %938 = vrot.lane.b32.xlu0 %v120, 120
  %v939 = vpop.permute.xlu0 %938
  %940 = vrot.lane.b32.xlu0 %v123, 120
  %v941 = vpop.permute.xlu0 %940
  %942 = vrot.lane.b32.xlu0 %v126, 120
  %v943 = vpop.permute.xlu0 %942
  %944 = vrot.lane.b32.xlu0 %v129, 120
  %v945 = vpop.permute.xlu0 %944
  %946 = vrot.lane.b32.xlu0 %v132, 120
  %v947 = vpop.permute.xlu0 %946
  %948 = vrot.lane.b32.xlu0 %v111, 88
  %v949 = vpop.permute.xlu0 %948
  %950 = vrot.lane.b32.xlu0 %v114, 88
  %v951 = vpop.permute.xlu0 %950
  %952 = vrot.lane.b32.xlu0 %v117, 88
  %v953 = vpop.permute.xlu0 %952
  %954 = vrot.lane.b32.xlu0 %v120, 88
  %v955 = vpop.permute.xlu0 %954
  %956 = vrot.lane.b32.xlu0 %v123, 88
  %v957 = vpop.permute.xlu0 %956
  %958 = vrot.lane.b32.xlu0 %v126, 88
  %v959 = vpop.permute.xlu0 %958
  %960 = vrot.lane.b32.xlu0 %v129, 88
  %v961 = vpop.permute.xlu0 %960
  %962 = vrot.lane.b32.xlu0 %v132, 88
  %v963 = vpop.permute.xlu0 %962
  %v964 = vsel %vm182, %v933, 0
  %v966 = vsel %vm182, %v935, 0
  %v968 = vsel %vm182, %v937, 0
  %v970 = vsel %vm182, %v939, 0
  %v972 = vsel %vm182, %v941, 0
  %v974 = vsel %vm182, %v943, 0
  %v976 = vsel %vm182, %v945, 0
  %v978 = vsel %vm182, %v947, 0
  %v980 = vsel %vm182, %v949, 0
  %v982 = vsel %vm182, %v951, 0
  %v984 = vsel %vm182, %v953, 0
  %v986 = vsel %vm182, %v955, 0
  %v988 = vsel %vm182, %v957, 0
  %v990 = vsel %vm182, %v959, 0
  %v992 = vsel %vm182, %v961, 0
  %v994 = vsel %vm182, %v963, 0
  %996 = vmatpush.xpose.msra.mxu0 0.0
  %997 = vmatpush.xpose.msra.mxu0 0.0
  %998 = vmatpush.xpose.msra.mxu0 0.0
  %999 = vmatpush.xpose.msra.mxu0 0.0
  %1000 = vmatpush.xpose.msra.mxu0 0.0
  %1001 = vmatpush.xpose.msra.mxu0 0.0
  %1002 = vmatpush.xpose.msra.mxu0 0.0
  %1003 = vmatpush.xpose.msra.mxu0 0.0
  %1004 = vmatpush.xpose.msra.mxu0 %v994
  %1005 = vmatpush.xpose.msra.mxu0 %v992
  %1006 = vmatpush.xpose.msra.mxu0 %v990
  %1007 = vmatpush.xpose.msra.mxu0 %v988
  %1008 = vmatpush.xpose.msra.mxu0 %v986
  %1009 = vmatpush.xpose.msra.mxu0 %v984
  %1010 = vmatpush.xpose.msra.mxu0 %v982
  %1011 = vmatpush.xpose.msra.mxu0 %v980
  %1012 = vmatmul.f32.gmra.mxu0 %v964
  %v1013 = vpop.f32.mrf.mxu0
  %v1014 = vadd.f32 0.0, %v1013
  %1015 = vmatmul.f32.gmra.mxu0 %v966
  %v1016 = vpop.f32.mrf.mxu0
  %v1017 = vadd.f32 0.0, %v1016
  %1018 = vmatmul.f32.gmra.mxu0 %v968
  %v1019 = vpop.f32.mrf.mxu0
  %v1020 = vadd.f32 0.0, %v1019
  %1021 = vmatmul.f32.gmra.mxu0 %v970
  %v1022 = vpop.f32.mrf.mxu0
  %v1023 = vadd.f32 0.0, %v1022
  %1024 = vmatmul.f32.gmra.mxu0 %v972
  %v1025 = vpop.f32.mrf.mxu0
  %v1026 = vadd.f32 0.0, %v1025
  %1027 = vmatmul.f32.gmra.mxu0 %v974
  %v1028 = vpop.f32.mrf.mxu0
  %v1029 = vadd.f32 0.0, %v1028
  %1030 = vmatmul.f32.gmra.mxu0 %v976
  %v1031 = vpop.f32.mrf.mxu0
  %v1032 = vadd.f32 0.0, %v1031
  %1033 = vmatmul.f32.gmra.mxu0 %v978
  %v1034 = vpop.f32.mrf.mxu0
  %v1035 = vadd.f32 0.0, %v1034
  %1036 = vdwg.mxu0
  %1037 = vrot.lane.b32.xlu0 %v135, 120
  %v1038 = vpop.permute.xlu0 %1037
  %1039 = vrot.lane.b32.xlu0 %v138, 120
  %v1040 = vpop.permute.xlu0 %1039
  %1041 = vrot.lane.b32.xlu0 %v141, 120
  %v1042 = vpop.permute.xlu0 %1041
  %1043 = vrot.lane.b32.xlu0 %v144, 120
  %v1044 = vpop.permute.xlu0 %1043
  %1045 = vrot.lane.b32.xlu0 %v147, 120
  %v1046 = vpop.permute.xlu0 %1045
  %1047 = vrot.lane.b32.xlu0 %v150, 120
  %v1048 = vpop.permute.xlu0 %1047
  %1049 = vrot.lane.b32.xlu0 %v153, 120
  %v1050 = vpop.permute.xlu0 %1049
  %1051 = vrot.lane.b32.xlu0 %v156, 120
  %v1052 = vpop.permute.xlu0 %1051
  %1053 = vrot.lane.b32.xlu0 %v135, 88
  %v1054 = vpop.permute.xlu0 %1053
  %1055 = vrot.lane.b32.xlu0 %v138, 88
  %v1056 = vpop.permute.xlu0 %1055
  %1057 = vrot.lane.b32.xlu0 %v141, 88
  %v1058 = vpop.permute.xlu0 %1057
  %1059 = vrot.lane.b32.xlu0 %v144, 88
  %v1060 = vpop.permute.xlu0 %1059
  %1061 = vrot.lane.b32.xlu0 %v147, 88
  %v1062 = vpop.permute.xlu0 %1061
  %1063 = vrot.lane.b32.xlu0 %v150, 88
  %v1064 = vpop.permute.xlu0 %1063
  %1065 = vrot.lane.b32.xlu0 %v153, 88
  %v1066 = vpop.permute.xlu0 %1065
  %1067 = vrot.lane.b32.xlu0 %v156, 88
  %v1068 = vpop.permute.xlu0 %1067
  %v1069 = vsel %vm182, %v1038, 0
  %v1071 = vsel %vm182, %v1040, 0
  %v1073 = vsel %vm182, %v1042, 0
  %v1075 = vsel %vm182, %v1044, 0
  %v1077 = vsel %vm182, %v1046, 0
  %v1079 = vsel %vm182, %v1048, 0
  %v1081 = vsel %vm182, %v1050, 0
  %v1083 = vsel %vm182, %v1052, 0
  %v1085 = vsel %vm182, %v1054, 0
  %v1087 = vsel %vm182, %v1056, 0
  %v1089 = vsel %vm182, %v1058, 0
  %v1091 = vsel %vm182, %v1060, 0
  %v1093 = vsel %vm182, %v1062, 0
  %v1095 = vsel %vm182, %v1064, 0
  %v1097 = vsel %vm182, %v1066, 0
  %v1099 = vsel %vm182, %v1068, 0
  %1101 = vmatpush.xpose.msra.mxu0 0.0
  %1102 = vmatpush.xpose.msra.mxu0 0.0
  %1103 = vmatpush.xpose.msra.mxu0 0.0
  %1104 = vmatpush.xpose.msra.mxu0 0.0
  %1105 = vmatpush.xpose.msra.mxu0 0.0
  %1106 = vmatpush.xpose.msra.mxu0 0.0
  %1107 = vmatpush.xpose.msra.mxu0 0.0
  %1108 = vmatpush.xpose.msra.mxu0 0.0
  %1109 = vmatpush.xpose.msra.mxu0 %v1099
  %1110 = vmatpush.xpose.msra.mxu0 %v1097
  %1111 = vmatpush.xpose.msra.mxu0 %v1095
  %1112 = vmatpush.xpose.msra.mxu0 %v1093
  %1113 = vmatpush.xpose.msra.mxu0 %v1091
  %1114 = vmatpush.xpose.msra.mxu0 %v1089
  %1115 = vmatpush.xpose.msra.mxu0 %v1087
  %1116 = vmatpush.xpose.msra.mxu0 %v1085
  %1117 = vmatmul.f32.gmra.mxu0 %v1069
  %v1118 = vpop.f32.mrf.mxu0
  %v1119 = vadd.f32 0.0, %v1118
  %1120 = vmatmul.f32.gmra.mxu0 %v1071
  %v1121 = vpop.f32.mrf.mxu0
  %v1122 = vadd.f32 0.0, %v1121
  %1123 = vmatmul.f32.gmra.mxu0 %v1073
  %v1124 = vpop.f32.mrf.mxu0
  %v1125 = vadd.f32 0.0, %v1124
  %1126 = vmatmul.f32.gmra.mxu0 %v1075
  %v1127 = vpop.f32.mrf.mxu0
  %v1128 = vadd.f32 0.0, %v1127
  %1129 = vmatmul.f32.gmra.mxu0 %v1077
  %v1130 = vpop.f32.mrf.mxu0
  %v1131 = vadd.f32 0.0, %v1130
  %1132 = vmatmul.f32.gmra.mxu0 %v1079
  %v1133 = vpop.f32.mrf.mxu0
  %v1134 = vadd.f32 0.0, %v1133
  %1135 = vmatmul.f32.gmra.mxu0 %v1081
  %v1136 = vpop.f32.mrf.mxu0
  %v1137 = vadd.f32 0.0, %v1136
  %1138 = vmatmul.f32.gmra.mxu0 %v1083
  %v1139 = vpop.f32.mrf.mxu0
  %v1140 = vadd.f32 0.0, %v1139
  %1141 = vdwg.mxu0
  %v1142 = vsel %vm353, %v1014, -inf
  %1143 = vmax.xlane.f32.xlu0 %v1142
  %v1144 = vpop.xlane.xlu0 %1143
  %v1145 = vsel %vm353, %v1017, -inf
  %1146 = vmax.xlane.f32.xlu0 %v1145
  %v1147 = vpop.xlane.xlu0 %1146
  %v1148 = vsel %vm353, %v1020, -inf
  %1149 = vmax.xlane.f32.xlu0 %v1148
  %v1150 = vpop.xlane.xlu0 %1149
  %v1151 = vsel %vm353, %v1023, -inf
  %1152 = vmax.xlane.f32.xlu0 %v1151
  %v1153 = vpop.xlane.xlu0 %1152
  %v1154 = vsel %vm353, %v1026, -inf
  %1155 = vmax.xlane.f32.xlu0 %v1154
  %v1156 = vpop.xlane.xlu0 %1155
  %v1157 = vsel %vm353, %v1029, -inf
  %1158 = vmax.xlane.f32.xlu0 %v1157
  %v1159 = vpop.xlane.xlu0 %1158
  %v1160 = vsel %vm353, %v1032, -inf
  %1161 = vmax.xlane.f32.xlu0 %v1160
  %v1162 = vpop.xlane.xlu0 %1161
  %v1163 = vsel %vm353, %v1035, -inf
  %1164 = vmax.xlane.f32.xlu0 %v1163
  %v1165 = vpop.xlane.xlu0 %1164
  %v1166 = vsel %vm353, %v1119, -inf
  %1167 = vmax.xlane.f32.xlu0 %v1166
  %v1168 = vpop.xlane.xlu0 %1167
  %v1169 = vsel %vm353, %v1122, -inf
  %1170 = vmax.xlane.f32.xlu0 %v1169
  %v1171 = vpop.xlane.xlu0 %1170
  %v1172 = vsel %vm353, %v1125, -inf
  %1173 = vmax.xlane.f32.xlu0 %v1172
  %v1174 = vpop.xlane.xlu0 %1173
  %v1175 = vsel %vm353, %v1128, -inf
  %1176 = vmax.xlane.f32.xlu0 %v1175
  %v1177 = vpop.xlane.xlu0 %1176
  %v1178 = vsel %vm353, %v1131, -inf
  %1179 = vmax.xlane.f32.xlu0 %v1178
  %v1180 = vpop.xlane.xlu0 %1179
  %v1181 = vsel %vm353, %v1134, -inf
  %1182 = vmax.xlane.f32.xlu0 %v1181
  %v1183 = vpop.xlane.xlu0 %1182
  %v1184 = vsel %vm353, %v1137, -inf
  %1185 = vmax.xlane.f32.xlu0 %v1184
  %v1186 = vpop.xlane.xlu0 %1185
  %v1187 = vsel %vm353, %v1140, -inf
  %1188 = vmax.xlane.f32.xlu0 %v1187
  %v1189 = vpop.xlane.xlu0 %1188
  %v1190 = vsub.f32 %v1014, %v1144
  %v1191 = vsub.f32 %v1017, %v1147
  %v1192 = vsub.f32 %v1020, %v1150
  %v1193 = vsub.f32 %v1023, %v1153
  %v1194 = vsub.f32 %v1026, %v1156
  %v1195 = vsub.f32 %v1029, %v1159
  %v1196 = vsub.f32 %v1032, %v1162
  %v1197 = vsub.f32 %v1035, %v1165
  %v1198 = vsub.f32 %v1119, %v1168
  %v1199 = vsub.f32 %v1122, %v1171
  %v1200 = vsub.f32 %v1125, %v1174
  %v1201 = vsub.f32 %v1128, %v1177
  %v1202 = vsub.f32 %v1131, %v1180
  %v1203 = vsub.f32 %v1134, %v1183
  %v1204 = vsub.f32 %v1137, %v1186
  %v1205 = vsub.f32 %v1140, %v1189
  %v1206 = vmul.f32 %v1190, 1.442695
  %v1207 = vpow.pop %v1206
  %v1208 = vmul.f32 %v1191, 1.442695
  %v1209 = vpow.pop %v1208
  %v1210 = vmul.f32 %v1192, 1.442695
  %v1211 = vpow.pop %v1210
  %v1212 = vmul.f32 %v1193, 1.442695
  %v1213 = vpow.pop %v1212
  %v1214 = vmul.f32 %v1194, 1.442695
  %v1215 = vpow.pop %v1214
  %v1216 = vmul.f32 %v1195, 1.442695
  %v1217 = vpow.pop %v1216
  %v1218 = vmul.f32 %v1196, 1.442695
  %v1219 = vpow.pop %v1218
  %v1220 = vmul.f32 %v1197, 1.442695
  %v1221 = vpow.pop %v1220
  %v1222 = vmul.f32 %v1198, 1.442695
  %v1223 = vpow.pop %v1222
  %v1224 = vmul.f32 %v1199, 1.442695
  %v1225 = vpow.pop %v1224
  %v1226 = vmul.f32 %v1200, 1.442695
  %v1227 = vpow.pop %v1226
  %v1228 = vmul.f32 %v1201, 1.442695
  %v1229 = vpow.pop %v1228
  %v1230 = vmul.f32 %v1202, 1.442695
  %v1231 = vpow.pop %v1230
  %v1232 = vmul.f32 %v1203, 1.442695
  %v1233 = vpow.pop %v1232
  %v1234 = vmul.f32 %v1204, 1.442695
  %v1235 = vpow.pop %v1234
  %v1236 = vmul.f32 %v1205, 1.442695
  %v1237 = vpow.pop %v1236
  %v1238 = vsel %vm353, %v1207, 0.0
  %1239 = vadd.xlane.f32.xlu0 %v1238
  %v1240 = vpop.xlane.xlu0 %1239
  %v1241 = vsel %vm353, %v1209, 0.0
  %1242 = vadd.xlane.f32.xlu0 %v1241
  %v1243 = vpop.xlane.xlu0 %1242
  %v1244 = vsel %vm353, %v1211, 0.0
  %1245 = vadd.xlane.f32.xlu0 %v1244
  %v1246 = vpop.xlane.xlu0 %1245
  %v1247 = vsel %vm353, %v1213, 0.0
  %1248 = vadd.xlane.f32.xlu0 %v1247
  %v1249 = vpop.xlane.xlu0 %1248
  %v1250 = vsel %vm353, %v1215, 0.0
  %1251 = vadd.xlane.f32.xlu0 %v1250
  %v1252 = vpop.xlane.xlu0 %1251
  %v1253 = vsel %vm353, %v1217, 0.0
  %1254 = vadd.xlane.f32.xlu0 %v1253
  %v1255 = vpop.xlane.xlu0 %1254
  %v1256 = vsel %vm353, %v1219, 0.0
  %1257 = vadd.xlane.f32.xlu0 %v1256
  %v1258 = vpop.xlane.xlu0 %1257
  %v1259 = vsel %vm353, %v1221, 0.0
  %1260 = vadd.xlane.f32.xlu0 %v1259
  %v1261 = vpop.xlane.xlu0 %1260
  %v1262 = vsel %vm353, %v1223, 0.0
  %1263 = vadd.xlane.f32.xlu0 %v1262
  %v1264 = vpop.xlane.xlu0 %1263
  %v1265 = vsel %vm353, %v1225, 0.0
  %1266 = vadd.xlane.f32.xlu0 %v1265
  %v1267 = vpop.xlane.xlu0 %1266
  %v1268 = vsel %vm353, %v1227, 0.0
  %1269 = vadd.xlane.f32.xlu0 %v1268
  %v1270 = vpop.xlane.xlu0 %1269
  %v1271 = vsel %vm353, %v1229, 0.0
  %1272 = vadd.xlane.f32.xlu0 %v1271
  %v1273 = vpop.xlane.xlu0 %1272
  %v1274 = vsel %vm353, %v1231, 0.0
  %1275 = vadd.xlane.f32.xlu0 %v1274
  %v1276 = vpop.xlane.xlu0 %1275
  %v1277 = vsel %vm353, %v1233, 0.0
  %1278 = vadd.xlane.f32.xlu0 %v1277
  %v1279 = vpop.xlane.xlu0 %1278
  %v1280 = vsel %vm353, %v1235, 0.0
  %1281 = vadd.xlane.f32.xlu0 %v1280
  %v1282 = vpop.xlane.xlu0 %1281
  %v1283 = vsel %vm353, %v1237, 0.0
  %1284 = vadd.xlane.f32.xlu0 %v1283
  %v1285 = vpop.xlane.xlu0 %1284
  %v1286 = vrcp.pop %v1240
  %v1287 = vmul.f32 %v1240, %v1286
  %v1288 = vsub.f32 1.0, %v1287
  %v1289 = vmul.f32 %v1286, %v1288
  %v1290 = vadd.f32 %v1286, %v1289
  %vm1291 = vweird.f32 %v1240
  %vm1292 = vweird.f32 %v1286
  %vm1293 = vmor %vm1291, %vm1292
  %v1294 = vsel %vm1293, %v1286, %v1290
  %v1295 = vand.u32 2147483647, %v1240
  %vm1296 = vcmp.eq.f32.partialorder %v1295, 8.507059e+37
  %v1297 = vand.u32 %v1240, 2147483648
  %v1298 = vor.u32 1.1754944e-38, %v1297
  %v1299 = vsel %vm1296, %v1298, %v1294
  %v1300 = vmul.f32 %v1207, %v1299
  %v1301 = vrcp.pop %v1243
  %v1302 = vmul.f32 %v1243, %v1301
  %v1303 = vsub.f32 1.0, %v1302
  %v1304 = vmul.f32 %v1301, %v1303
  %v1305 = vadd.f32 %v1301, %v1304
  %vm1306 = vweird.f32 %v1243
  %vm1307 = vweird.f32 %v1301
  %vm1308 = vmor %vm1306, %vm1307
  %v1309 = vsel %vm1308, %v1301, %v1305
  %v1310 = vand.u32 2147483647, %v1243
  %vm1311 = vcmp.eq.f32.partialorder %v1310, 8.507059e+37
  %v1312 = vand.u32 %v1243, 2147483648
  %v1313 = vor.u32 1.1754944e-38, %v1312
  %v1314 = vsel %vm1311, %v1313, %v1309
  %v1315 = vmul.f32 %v1209, %v1314
  %v1316 = vrcp.pop %v1246
  %v1317 = vmul.f32 %v1246, %v1316
  %v1318 = vsub.f32 1.0, %v1317
  %v1319 = vmul.f32 %v1316, %v1318
  %v1320 = vadd.f32 %v1316, %v1319
  %vm1321 = vweird.f32 %v1246
  %vm1322 = vweird.f32 %v1316
  %vm1323 = vmor %vm1321, %vm1322
  %v1324 = vsel %vm1323, %v1316, %v1320
  %v1325 = vand.u32 2147483647, %v1246
  %vm1326 = vcmp.eq.f32.partialorder %v1325, 8.507059e+37
  %v1327 = vand.u32 %v1246, 2147483648
  %v1328 = vor.u32 1.1754944e-38, %v1327
  %v1329 = vsel %vm1326, %v1328, %v1324
  %v1330 = vmul.f32 %v1211, %v1329
  %v1331 = vrcp.pop %v1249
  %v1332 = vmul.f32 %v1249, %v1331
  %v1333 = vsub.f32 1.0, %v1332
  %v1334 = vmul.f32 %v1331, %v1333
  %v1335 = vadd.f32 %v1331, %v1334
  %vm1336 = vweird.f32 %v1249
  %vm1337 = vweird.f32 %v1331
  %vm1338 = vmor %vm1336, %vm1337
  %v1339 = vsel %vm1338, %v1331, %v1335
  %v1340 = vand.u32 2147483647, %v1249
  %vm1341 = vcmp.eq.f32.partialorder %v1340, 8.507059e+37
  %v1342 = vand.u32 %v1249, 2147483648
  %v1343 = vor.u32 1.1754944e-38, %v1342
  %v1344 = vsel %vm1341, %v1343, %v1339
  %v1345 = vmul.f32 %v1213, %v1344
  %v1346 = vrcp.pop %v1252
  %v1347 = vmul.f32 %v1252, %v1346
  %v1348 = vsub.f32 1.0, %v1347
  %v1349 = vmul.f32 %v1346, %v1348
  %v1350 = vadd.f32 %v1346, %v1349
  %vm1351 = vweird.f32 %v1252
  %vm1352 = vweird.f32 %v1346
  %vm1353 = vmor %vm1351, %vm1352
  %v1354 = vsel %vm1353, %v1346, %v1350
  %v1355 = vand.u32 2147483647, %v1252
  %vm1356 = vcmp.eq.f32.partialorder %v1355, 8.507059e+37
  %v1357 = vand.u32 %v1252, 2147483648
  %v1358 = vor.u32 1.1754944e-38, %v1357
  %v1359 = vsel %vm1356, %v1358, %v1354
  %v1360 = vmul.f32 %v1215, %v1359
  %v1361 = vrcp.pop %v1255
  %v1362 = vmul.f32 %v1255, %v1361
  %v1363 = vsub.f32 1.0, %v1362
  %v1364 = vmul.f32 %v1361, %v1363
  %v1365 = vadd.f32 %v1361, %v1364
  %vm1366 = vweird.f32 %v1255
  %vm1367 = vweird.f32 %v1361
  %vm1368 = vmor %vm1366, %vm1367
  %v1369 = vsel %vm1368, %v1361, %v1365
  %v1370 = vand.u32 2147483647, %v1255
  %vm1371 = vcmp.eq.f32.partialorder %v1370, 8.507059e+37
  %v1372 = vand.u32 %v1255, 2147483648
  %v1373 = vor.u32 1.1754944e-38, %v1372
  %v1374 = vsel %vm1371, %v1373, %v1369
  %v1375 = vmul.f32 %v1217, %v1374
  %v1376 = vrcp.pop %v1258
  %v1377 = vmul.f32 %v1258, %v1376
  %v1378 = vsub.f32 1.0, %v1377
  %v1379 = vmul.f32 %v1376, %v1378
  %v1380 = vadd.f32 %v1376, %v1379
  %vm1381 = vweird.f32 %v1258
  %vm1382 = vweird.f32 %v1376
  %vm1383 = vmor %vm1381, %vm1382
  %v1384 = vsel %vm1383, %v1376, %v1380
  %v1385 = vand.u32 2147483647, %v1258
  %vm1386 = vcmp.eq.f32.partialorder %v1385, 8.507059e+37
  %v1387 = vand.u32 %v1258, 2147483648
  %v1388 = vor.u32 1.1754944e-38, %v1387
  %v1389 = vsel %vm1386, %v1388, %v1384
  %v1390 = vmul.f32 %v1219, %v1389
  %v1391 = vrcp.pop %v1261
  %v1392 = vmul.f32 %v1261, %v1391
  %v1393 = vsub.f32 1.0, %v1392
  %v1394 = vmul.f32 %v1391, %v1393
  %v1395 = vadd.f32 %v1391, %v1394
  %vm1396 = vweird.f32 %v1261
  %vm1397 = vweird.f32 %v1391
  %vm1398 = vmor %vm1396, %vm1397
  %v1399 = vsel %vm1398, %v1391, %v1395
  %v1400 = vand.u32 2147483647, %v1261
  %vm1401 = vcmp.eq.f32.partialorder %v1400, 8.507059e+37
  %v1402 = vand.u32 %v1261, 2147483648
  %v1403 = vor.u32 1.1754944e-38, %v1402
  %v1404 = vsel %vm1401, %v1403, %v1399
  %v1405 = vmul.f32 %v1221, %v1404
  %v1406 = vrcp.pop %v1264
  %v1407 = vmul.f32 %v1264, %v1406
  %v1408 = vsub.f32 1.0, %v1407
  %v1409 = vmul.f32 %v1406, %v1408
  %v1410 = vadd.f32 %v1406, %v1409
  %vm1411 = vweird.f32 %v1264
  %vm1412 = vweird.f32 %v1406
  %vm1413 = vmor %vm1411, %vm1412
  %v1414 = vsel %vm1413, %v1406, %v1410
  %v1415 = vand.u32 2147483647, %v1264
  %vm1416 = vcmp.eq.f32.partialorder %v1415, 8.507059e+37
  %v1417 = vand.u32 %v1264, 2147483648
  %v1418 = vor.u32 1.1754944e-38, %v1417
  %v1419 = vsel %vm1416, %v1418, %v1414
  %v1420 = vmul.f32 %v1223, %v1419
  %v1421 = vrcp.pop %v1267
  %v1422 = vmul.f32 %v1267, %v1421
  %v1423 = vsub.f32 1.0, %v1422
  %v1424 = vmul.f32 %v1421, %v1423
  %v1425 = vadd.f32 %v1421, %v1424
  %vm1426 = vweird.f32 %v1267
  %vm1427 = vweird.f32 %v1421
  %vm1428 = vmor %vm1426, %vm1427
  %v1429 = vsel %vm1428, %v1421, %v1425
  %v1430 = vand.u32 2147483647, %v1267
  %vm1431 = vcmp.eq.f32.partialorder %v1430, 8.507059e+37
  %v1432 = vand.u32 %v1267, 2147483648
  %v1433 = vor.u32 1.1754944e-38, %v1432
  %v1434 = vsel %vm1431, %v1433, %v1429
  %v1435 = vmul.f32 %v1225, %v1434
  %v1436 = vrcp.pop %v1270
  %v1437 = vmul.f32 %v1270, %v1436
  %v1438 = vsub.f32 1.0, %v1437
  %v1439 = vmul.f32 %v1436, %v1438
  %v1440 = vadd.f32 %v1436, %v1439
  %vm1441 = vweird.f32 %v1270
  %vm1442 = vweird.f32 %v1436
  %vm1443 = vmor %vm1441, %vm1442
  %v1444 = vsel %vm1443, %v1436, %v1440
  %v1445 = vand.u32 2147483647, %v1270
  %vm1446 = vcmp.eq.f32.partialorder %v1445, 8.507059e+37
  %v1447 = vand.u32 %v1270, 2147483648
  %v1448 = vor.u32 1.1754944e-38, %v1447
  %v1449 = vsel %vm1446, %v1448, %v1444
  %v1450 = vmul.f32 %v1227, %v1449
  %v1451 = vrcp.pop %v1273
  %v1452 = vmul.f32 %v1273, %v1451
  %v1453 = vsub.f32 1.0, %v1452
  %v1454 = vmul.f32 %v1451, %v1453
  %v1455 = vadd.f32 %v1451, %v1454
  %vm1456 = vweird.f32 %v1273
  %vm1457 = vweird.f32 %v1451
  %vm1458 = vmor %vm1456, %vm1457
  %v1459 = vsel %vm1458, %v1451, %v1455
  %v1460 = vand.u32 2147483647, %v1273
  %vm1461 = vcmp.eq.f32.partialorder %v1460, 8.507059e+37
  %v1462 = vand.u32 %v1273, 2147483648
  %v1463 = vor.u32 1.1754944e-38, %v1462
  %v1464 = vsel %vm1461, %v1463, %v1459
  %v1465 = vmul.f32 %v1229, %v1464
  %v1466 = vrcp.pop %v1276
  %v1467 = vmul.f32 %v1276, %v1466
  %v1468 = vsub.f32 1.0, %v1467
  %v1469 = vmul.f32 %v1466, %v1468
  %v1470 = vadd.f32 %v1466, %v1469
  %vm1471 = vweird.f32 %v1276
  %vm1472 = vweird.f32 %v1466
  %vm1473 = vmor %vm1471, %vm1472
  %v1474 = vsel %vm1473, %v1466, %v1470
  %v1475 = vand.u32 2147483647, %v1276
  %vm1476 = vcmp.eq.f32.partialorder %v1475, 8.507059e+37
  %v1477 = vand.u32 %v1276, 2147483648
  %v1478 = vor.u32 1.1754944e-38, %v1477
  %v1479 = vsel %vm1476, %v1478, %v1474
  %v1480 = vmul.f32 %v1231, %v1479
  %v1481 = vrcp.pop %v1279
  %v1482 = vmul.f32 %v1279, %v1481
  %v1483 = vsub.f32 1.0, %v1482
  %v1484 = vmul.f32 %v1481, %v1483
  %v1485 = vadd.f32 %v1481, %v1484
  %vm1486 = vweird.f32 %v1279
  %vm1487 = vweird.f32 %v1481
  %vm1488 = vmor %vm1486, %vm1487
  %v1489 = vsel %vm1488, %v1481, %v1485
  %v1490 = vand.u32 2147483647, %v1279
  %vm1491 = vcmp.eq.f32.partialorder %v1490, 8.507059e+37
  %v1492 = vand.u32 %v1279, 2147483648
  %v1493 = vor.u32 1.1754944e-38, %v1492
  %v1494 = vsel %vm1491, %v1493, %v1489
  %v1495 = vmul.f32 %v1233, %v1494
  %v1496 = vrcp.pop %v1282
  %v1497 = vmul.f32 %v1282, %v1496
  %v1498 = vsub.f32 1.0, %v1497
  %v1499 = vmul.f32 %v1496, %v1498
  %v1500 = vadd.f32 %v1496, %v1499
  %vm1501 = vweird.f32 %v1282
  %vm1502 = vweird.f32 %v1496
  %vm1503 = vmor %vm1501, %vm1502
  %v1504 = vsel %vm1503, %v1496, %v1500
  %v1505 = vand.u32 2147483647, %v1282
  %vm1506 = vcmp.eq.f32.partialorder %v1505, 8.507059e+37
  %v1507 = vand.u32 %v1282, 2147483648
  %v1508 = vor.u32 1.1754944e-38, %v1507
  %v1509 = vsel %vm1506, %v1508, %v1504
  %v1510 = vmul.f32 %v1235, %v1509
  %v1511 = vrcp.pop %v1285
  %v1512 = vmul.f32 %v1285, %v1511
  %v1513 = vsub.f32 1.0, %v1512
  %v1514 = vmul.f32 %v1511, %v1513
  %v1515 = vadd.f32 %v1511, %v1514
  %vm1516 = vweird.f32 %v1285
  %vm1517 = vweird.f32 %v1511
  %vm1518 = vmor %vm1516, %vm1517
  %v1519 = vsel %vm1518, %v1511, %v1515
  %v1520 = vand.u32 2147483647, %v1285
  %vm1521 = vcmp.eq.f32.partialorder %v1520, 8.507059e+37
  %v1522 = vand.u32 %v1285, 2147483648
  %v1523 = vor.u32 1.1754944e-38, %v1522
  %v1524 = vsel %vm1521, %v1523, %v1519
  %v1525 = vmul.f32 %v1237, %v1524
  %1526 = vrot.lane.b32.xlu0 %v111, 56
  %v1527 = vpop.permute.xlu0 %1526
  %1528 = vrot.lane.b32.xlu0 %v114, 56
  %v1529 = vpop.permute.xlu0 %1528
  %1530 = vrot.lane.b32.xlu0 %v117, 56
  %v1531 = vpop.permute.xlu0 %1530
  %1532 = vrot.lane.b32.xlu0 %v120, 56
  %v1533 = vpop.permute.xlu0 %1532
  %1534 = vrot.lane.b32.xlu0 %v123, 56
  %v1535 = vpop.permute.xlu0 %1534
  %1536 = vrot.lane.b32.xlu0 %v126, 56
  %v1537 = vpop.permute.xlu0 %1536
  %1538 = vrot.lane.b32.xlu0 %v129, 56
  %v1539 = vpop.permute.xlu0 %1538
  %1540 = vrot.lane.b32.xlu0 %v132, 56
  %v1541 = vpop.permute.xlu0 %1540
  %v1551 = vsel %vm353, %v1300, 0
  %v1554 = vsel %vm353, %v1315, 0
  %v1557 = vsel %vm353, %v1330, 0
  %v1560 = vsel %vm353, %v1345, 0
  %v1563 = vsel %vm353, %v1360, 0
  %v1566 = vsel %vm353, %v1375, 0
  %v1569 = vsel %vm353, %v1390, 0
  %v1572 = vsel %vm353, %v1405, 0
  %1574 = vmatpush.msra.mxu0 0.0
  %1575 = vmatpush.msra.mxu0 0.0
  %1576 = vmatpush.msra.mxu0 0.0
  %1577 = vmatpush.msra.mxu0 0.0
  %1578 = vmatpush.msra.mxu0 0.0
  %1579 = vmatpush.msra.mxu0 0.0
  %1580 = vmatpush.msra.mxu0 0.0
  %1581 = vmatpush.msra.mxu0 0.0
  %1582 = vmatpush.msra.mxu0 %v1541
  %1583 = vmatpush.msra.mxu0 %v1539
  %1584 = vmatpush.msra.mxu0 %v1537
  %1585 = vmatpush.msra.mxu0 %v1535
  %1586 = vmatpush.msra.mxu0 %v1533
  %1587 = vmatpush.msra.mxu0 %v1531
  %1588 = vmatpush.msra.mxu0 %v1529
  %1589 = vmatpush.msra.mxu0 %v1527
  %1590 = vmatmul.f32.gmra.mxu0 %v1551
  %v1591 = vpop.f32.mrf.mxu0
  %v1592 = vadd.f32 0.0, %v1591
  %1593 = vmatmul.f32.gmra.mxu0 %v1554
  %v1594 = vpop.f32.mrf.mxu0
  %v1595 = vadd.f32 0.0, %v1594
  %1596 = vmatmul.f32.gmra.mxu0 %v1557
  %v1597 = vpop.f32.mrf.mxu0
  %v1598 = vadd.f32 0.0, %v1597
  %1599 = vmatmul.f32.gmra.mxu0 %v1560
  %v1600 = vpop.f32.mrf.mxu0
  %v1601 = vadd.f32 0.0, %v1600
  %1602 = vmatmul.f32.gmra.mxu0 %v1563
  %v1603 = vpop.f32.mrf.mxu0
  %v1604 = vadd.f32 0.0, %v1603
  %1605 = vmatmul.f32.gmra.mxu0 %v1566
  %v1606 = vpop.f32.mrf.mxu0
  %v1607 = vadd.f32 0.0, %v1606
  %1608 = vmatmul.f32.gmra.mxu0 %v1569
  %v1609 = vpop.f32.mrf.mxu0
  %v1610 = vadd.f32 0.0, %v1609
  %1611 = vmatmul.f32.gmra.mxu0 %v1572
  %v1612 = vpop.f32.mrf.mxu0
  %v1613 = vadd.f32 0.0, %v1612
  %1614 = vdwg.mxu0
  %1615 = vrot.lane.b32.xlu0 %v135, 56
  %v1616 = vpop.permute.xlu0 %1615
  %1617 = vrot.lane.b32.xlu0 %v138, 56
  %v1618 = vpop.permute.xlu0 %1617
  %1619 = vrot.lane.b32.xlu0 %v141, 56
  %v1620 = vpop.permute.xlu0 %1619
  %1621 = vrot.lane.b32.xlu0 %v144, 56
  %v1622 = vpop.permute.xlu0 %1621
  %1623 = vrot.lane.b32.xlu0 %v147, 56
  %v1624 = vpop.permute.xlu0 %1623
  %1625 = vrot.lane.b32.xlu0 %v150, 56
  %v1626 = vpop.permute.xlu0 %1625
  %1627 = vrot.lane.b32.xlu0 %v153, 56
  %v1628 = vpop.permute.xlu0 %1627
  %1629 = vrot.lane.b32.xlu0 %v156, 56
  %v1630 = vpop.permute.xlu0 %1629
  %v1640 = vsel %vm353, %v1420, 0
  %v1643 = vsel %vm353, %v1435, 0
  %v1646 = vsel %vm353, %v1450, 0
  %v1649 = vsel %vm353, %v1465, 0
  %v1652 = vsel %vm353, %v1480, 0
  %v1655 = vsel %vm353, %v1495, 0
  %v1658 = vsel %vm353, %v1510, 0
  %v1661 = vsel %vm353, %v1525, 0
  %1663 = vmatpush.msra.mxu0 0.0
  %1664 = vmatpush.msra.mxu0 0.0
  %1665 = vmatpush.msra.mxu0 0.0
  %1666 = vmatpush.msra.mxu0 0.0
  %1667 = vmatpush.msra.mxu0 0.0
  %1668 = vmatpush.msra.mxu0 0.0
  %1669 = vmatpush.msra.mxu0 0.0
  %1670 = vmatpush.msra.mxu0 0.0
  %1671 = vmatpush.msra.mxu0 %v1630
  %1672 = vmatpush.msra.mxu0 %v1628
  %1673 = vmatpush.msra.mxu0 %v1626
  %1674 = vmatpush.msra.mxu0 %v1624
  %1675 = vmatpush.msra.mxu0 %v1622
  %1676 = vmatpush.msra.mxu0 %v1620
  %1677 = vmatpush.msra.mxu0 %v1618
  %1678 = vmatpush.msra.mxu0 %v1616
  %1679 = vmatmul.f32.gmra.mxu0 %v1640
  %v1680 = vpop.f32.mrf.mxu0
  %v1681 = vadd.f32 0.0, %v1680
  %1682 = vmatmul.f32.gmra.mxu0 %v1643
  %v1683 = vpop.f32.mrf.mxu0
  %v1684 = vadd.f32 0.0, %v1683
  %1685 = vmatmul.f32.gmra.mxu0 %v1646
  %v1686 = vpop.f32.mrf.mxu0
  %v1687 = vadd.f32 0.0, %v1686
  %1688 = vmatmul.f32.gmra.mxu0 %v1649
  %v1689 = vpop.f32.mrf.mxu0
  %v1690 = vadd.f32 0.0, %v1689
  %1691 = vmatmul.f32.gmra.mxu0 %v1652
  %v1692 = vpop.f32.mrf.mxu0
  %v1693 = vadd.f32 0.0, %v1692
  %1694 = vmatmul.f32.gmra.mxu0 %v1655
  %v1695 = vpop.f32.mrf.mxu0
  %v1696 = vadd.f32 0.0, %v1695
  %1697 = vmatmul.f32.gmra.mxu0 %v1658
  %v1698 = vpop.f32.mrf.mxu0
  %v1699 = vadd.f32 0.0, %v1698
  %1700 = vmatmul.f32.gmra.mxu0 %v1661
  %v1701 = vpop.f32.mrf.mxu0
  %v1702 = vadd.f32 0.0, %v1701
  %1703 = vdwg.mxu0
  %1720 = vrot.lane.b32.xlu0 %v1592, 8
  %v1721 = vpop.permute.xlu0 %1720
  %1722 = vrot.lane.b32.xlu0 %v1595, 8
  %v1723 = vpop.permute.xlu0 %1722
  %1724 = vrot.lane.b32.xlu0 %v1598, 8
  %v1725 = vpop.permute.xlu0 %1724
  %1726 = vrot.lane.b32.xlu0 %v1601, 8
  %v1727 = vpop.permute.xlu0 %1726
  %1728 = vrot.lane.b32.xlu0 %v1604, 8
  %v1729 = vpop.permute.xlu0 %1728
  %1730 = vrot.lane.b32.xlu0 %v1607, 8
  %v1731 = vpop.permute.xlu0 %1730
  %1732 = vrot.lane.b32.xlu0 %v1610, 8
  %v1733 = vpop.permute.xlu0 %1732
  %1734 = vrot.lane.b32.xlu0 %v1613, 8
  %v1735 = vpop.permute.xlu0 %1734
  %1736 = vrot.lane.b32.xlu0 %v1681, 8
  %v1737 = vpop.permute.xlu0 %1736
  %1738 = vrot.lane.b32.xlu0 %v1684, 8
  %v1739 = vpop.permute.xlu0 %1738
  %1740 = vrot.lane.b32.xlu0 %v1687, 8
  %v1741 = vpop.permute.xlu0 %1740
  %1742 = vrot.lane.b32.xlu0 %v1690, 8
  %v1743 = vpop.permute.xlu0 %1742
  %1744 = vrot.lane.b32.xlu0 %v1693, 8
  %v1745 = vpop.permute.xlu0 %1744
  %1746 = vrot.lane.b32.xlu0 %v1696, 8
  %v1747 = vpop.permute.xlu0 %1746
  %1748 = vrot.lane.b32.xlu0 %v1699, 8
  %v1749 = vpop.permute.xlu0 %1748
  %1750 = vrot.lane.b32.xlu0 %v1702, 8
  %v1751 = vpop.permute.xlu0 %1750
  %vm1768 = vcmask 130112
  %1769 = vst.msk [vmem:[#allocation2] sm:$0xff] %vm1768, %v1721
  %1770 = vst.msk [vmem:[#allocation2 + $0x8] sm:$0xff] %vm1768, %v1723
  %1771 = vst.msk [vmem:[#allocation2 + $0x10] sm:$0xff] %vm1768, %v1725
  %1772 = vst.msk [vmem:[#allocation2 + $0x18] sm:$0xff] %vm1768, %v1727
  %1773 = vst.msk [vmem:[#allocation2 + $0x20] sm:$0xff] %vm1768, %v1729
  %1774 = vst.msk [vmem:[#allocation2 + $0x28] sm:$0xff] %vm1768, %v1731
  %1775 = vst.msk [vmem:[#allocation2 + $0x30] sm:$0xff] %vm1768, %v1733
  %1776 = vst.msk [vmem:[#allocation2 + $0x38] sm:$0xff] %vm1768, %v1735
  %1777 = vst.msk [vmem:[#allocation2 + $0x40] sm:$0xff] %vm1768, %v1737
  %1778 = vst.msk [vmem:[#allocation2 + $0x48] sm:$0xff] %vm1768, %v1739
  %1779 = vst.msk [vmem:[#allocation2 + $0x50] sm:$0xff] %vm1768, %v1741
  %1780 = vst.msk [vmem:[#allocation2 + $0x58] sm:$0xff] %vm1768, %v1743
  %1781 = vst.msk [vmem:[#allocation2 + $0x60] sm:$0xff] %vm1768, %v1745
  %1782 = vst.msk [vmem:[#allocation2 + $0x68] sm:$0xff] %vm1768, %v1747
  %1783 = vst.msk [vmem:[#allocation2 + $0x70] sm:$0xff] %vm1768, %v1749
  %1784 = vst.msk [vmem:[#allocation2 + $0x78] sm:$0xff] %vm1768, %v1751
  %1785 = vrot.lane.b32.xlu0 %v111, 112
  %v1786 = vpop.permute.xlu0 %1785
  %1787 = vrot.lane.b32.xlu0 %v114, 112
  %v1788 = vpop.permute.xlu0 %1787
  %1789 = vrot.lane.b32.xlu0 %v117, 112
  %v1790 = vpop.permute.xlu0 %1789
  %1791 = vrot.lane.b32.xlu0 %v120, 112
  %v1792 = vpop.permute.xlu0 %1791
  %1793 = vrot.lane.b32.xlu0 %v123, 112
  %v1794 = vpop.permute.xlu0 %1793
  %1795 = vrot.lane.b32.xlu0 %v126, 112
  %v1796 = vpop.permute.xlu0 %1795
  %1797 = vrot.lane.b32.xlu0 %v129, 112
  %v1798 = vpop.permute.xlu0 %1797
  %1799 = vrot.lane.b32.xlu0 %v132, 112
  %v1800 = vpop.permute.xlu0 %1799
  %1801 = vrot.lane.b32.xlu0 %v111, 80
  %v1802 = vpop.permute.xlu0 %1801
  %1803 = vrot.lane.b32.xlu0 %v114, 80
  %v1804 = vpop.permute.xlu0 %1803
  %1805 = vrot.lane.b32.xlu0 %v117, 80
  %v1806 = vpop.permute.xlu0 %1805
  %1807 = vrot.lane.b32.xlu0 %v120, 80
  %v1808 = vpop.permute.xlu0 %1807
  %1809 = vrot.lane.b32.xlu0 %v123, 80
  %v1810 = vpop.permute.xlu0 %1809
  %1811 = vrot.lane.b32.xlu0 %v126, 80
  %v1812 = vpop.permute.xlu0 %1811
  %1813 = vrot.lane.b32.xlu0 %v129, 80
  %v1814 = vpop.permute.xlu0 %1813
  %1815 = vrot.lane.b32.xlu0 %v132, 80
  %v1816 = vpop.permute.xlu0 %1815
  %v1817 = vsel %vm182, %v1786, 0
  %v1819 = vsel %vm182, %v1788, 0
  %v1821 = vsel %vm182, %v1790, 0
  %v1823 = vsel %vm182, %v1792, 0
  %v1825 = vsel %vm182, %v1794, 0
  %v1827 = vsel %vm182, %v1796, 0
  %v1829 = vsel %vm182, %v1798, 0
  %v1831 = vsel %vm182, %v1800, 0
  %v1833 = vsel %vm182, %v1802, 0
  %v1835 = vsel %vm182, %v1804, 0
  %v1837 = vsel %vm182, %v1806, 0
  %v1839 = vsel %vm182, %v1808, 0
  %v1841 = vsel %vm182, %v1810, 0
  %v1843 = vsel %vm182, %v1812, 0
  %v1845 = vsel %vm182, %v1814, 0
  %v1847 = vsel %vm182, %v1816, 0
  %1849 = vmatpush.xpose.msra.mxu0 0.0
  %1850 = vmatpush.xpose.msra.mxu0 0.0
  %1851 = vmatpush.xpose.msra.mxu0 0.0
  %1852 = vmatpush.xpose.msra.mxu0 0.0
  %1853 = vmatpush.xpose.msra.mxu0 0.0
  %1854 = vmatpush.xpose.msra.mxu0 0.0
  %1855 = vmatpush.xpose.msra.mxu0 0.0
  %1856 = vmatpush.xpose.msra.mxu0 0.0
  %1857 = vmatpush.xpose.msra.mxu0 %v1847
  %1858 = vmatpush.xpose.msra.mxu0 %v1845
  %1859 = vmatpush.xpose.msra.mxu0 %v1843
  %1860 = vmatpush.xpose.msra.mxu0 %v1841
  %1861 = vmatpush.xpose.msra.mxu0 %v1839
  %1862 = vmatpush.xpose.msra.mxu0 %v1837
  %1863 = vmatpush.xpose.msra.mxu0 %v1835
  %1864 = vmatpush.xpose.msra.mxu0 %v1833
  %1865 = vmatmul.f32.gmra.mxu0 %v1817
  %v1866 = vpop.f32.mrf.mxu0
  %v1867 = vadd.f32 0.0, %v1866
  %1868 = vmatmul.f32.gmra.mxu0 %v1819
  %v1869 = vpop.f32.mrf.mxu0
  %v1870 = vadd.f32 0.0, %v1869
  %1871 = vmatmul.f32.gmra.mxu0 %v1821
  %v1872 = vpop.f32.mrf.mxu0
  %v1873 = vadd.f32 0.0, %v1872
  %1874 = vmatmul.f32.gmra.mxu0 %v1823
  %v1875 = vpop.f32.mrf.mxu0
  %v1876 = vadd.f32 0.0, %v1875
  %1877 = vmatmul.f32.gmra.mxu0 %v1825
  %v1878 = vpop.f32.mrf.mxu0
  %v1879 = vadd.f32 0.0, %v1878
  %1880 = vmatmul.f32.gmra.mxu0 %v1827
  %v1881 = vpop.f32.mrf.mxu0
  %v1882 = vadd.f32 0.0, %v1881
  %1883 = vmatmul.f32.gmra.mxu0 %v1829
  %v1884 = vpop.f32.mrf.mxu0
  %v1885 = vadd.f32 0.0, %v1884
  %1886 = vmatmul.f32.gmra.mxu0 %v1831
  %v1887 = vpop.f32.mrf.mxu0
  %v1888 = vadd.f32 0.0, %v1887
  %1889 = vdwg.mxu0
  %1890 = vrot.lane.b32.xlu0 %v135, 112
  %v1891 = vpop.permute.xlu0 %1890
  %1892 = vrot.lane.b32.xlu0 %v138, 112
  %v1893 = vpop.permute.xlu0 %1892
  %1894 = vrot.lane.b32.xlu0 %v141, 112
  %v1895 = vpop.permute.xlu0 %1894
  %1896 = vrot.lane.b32.xlu0 %v144, 112
  %v1897 = vpop.permute.xlu0 %1896
  %1898 = vrot.lane.b32.xlu0 %v147, 112
  %v1899 = vpop.permute.xlu0 %1898
  %1900 = vrot.lane.b32.xlu0 %v150, 112
  %v1901 = vpop.permute.xlu0 %1900
  %1902 = vrot.lane.b32.xlu0 %v153, 112
  %v1903 = vpop.permute.xlu0 %1902
  %1904 = vrot.lane.b32.xlu0 %v156, 112
  %v1905 = vpop.permute.xlu0 %1904
  %1906 = vrot.lane.b32.xlu0 %v135, 80
  %v1907 = vpop.permute.xlu0 %1906
  %1908 = vrot.lane.b32.xlu0 %v138, 80
  %v1909 = vpop.permute.xlu0 %1908
  %1910 = vrot.lane.b32.xlu0 %v141, 80
  %v1911 = vpop.permute.xlu0 %1910
  %1912 = vrot.lane.b32.xlu0 %v144, 80
  %v1913 = vpop.permute.xlu0 %1912
  %1914 = vrot.lane.b32.xlu0 %v147, 80
  %v1915 = vpop.permute.xlu0 %1914
  %1916 = vrot.lane.b32.xlu0 %v150, 80
  %v1917 = vpop.permute.xlu0 %1916
  %1918 = vrot.lane.b32.xlu0 %v153, 80
  %v1919 = vpop.permute.xlu0 %1918
  %1920 = vrot.lane.b32.xlu0 %v156, 80
  %v1921 = vpop.permute.xlu0 %1920
  %v1922 = vsel %vm182, %v1891, 0
  %v1924 = vsel %vm182, %v1893, 0
  %v1926 = vsel %vm182, %v1895, 0
  %v1928 = vsel %vm182, %v1897, 0
  %v1930 = vsel %vm182, %v1899, 0
  %v1932 = vsel %vm182, %v1901, 0
  %v1934 = vsel %vm182, %v1903, 0
  %v1936 = vsel %vm182, %v1905, 0
  %v1938 = vsel %vm182, %v1907, 0
  %v1940 = vsel %vm182, %v1909, 0
  %v1942 = vsel %vm182, %v1911, 0
  %v1944 = vsel %vm182, %v1913, 0
  %v1946 = vsel %vm182, %v1915, 0
  %v1948 = vsel %vm182, %v1917, 0
  %v1950 = vsel %vm182, %v1919, 0
  %v1952 = vsel %vm182, %v1921, 0
  %1954 = vmatpush.xpose.msra.mxu0 0.0
  %1955 = vmatpush.xpose.msra.mxu0 0.0
  %1956 = vmatpush.xpose.msra.mxu0 0.0
  %1957 = vmatpush.xpose.msra.mxu0 0.0
  %1958 = vmatpush.xpose.msra.mxu0 0.0
  %1959 = vmatpush.xpose.msra.mxu0 0.0
  %1960 = vmatpush.xpose.msra.mxu0 0.0
  %1961 = vmatpush.xpose.msra.mxu0 0.0
  %1962 = vmatpush.xpose.msra.mxu0 %v1952
  %1963 = vmatpush.xpose.msra.mxu0 %v1950
  %1964 = vmatpush.xpose.msra.mxu0 %v1948
  %1965 = vmatpush.xpose.msra.mxu0 %v1946
  %1966 = vmatpush.xpose.msra.mxu0 %v1944
  %1967 = vmatpush.xpose.msra.mxu0 %v1942
  %1968 = vmatpush.xpose.msra.mxu0 %v1940
  %1969 = vmatpush.xpose.msra.mxu0 %v1938
  %1970 = vmatmul.f32.gmra.mxu0 %v1922
  %v1971 = vpop.f32.mrf.mxu0
  %v1972 = vadd.f32 0.0, %v1971
  %1973 = vmatmul.f32.gmra.mxu0 %v1924
  %v1974 = vpop.f32.mrf.mxu0
  %v1975 = vadd.f32 0.0, %v1974
  %1976 = vmatmul.f32.gmra.mxu0 %v1926
  %v1977 = vpop.f32.mrf.mxu0
  %v1978 = vadd.f32 0.0, %v1977
  %1979 = vmatmul.f32.gmra.mxu0 %v1928
  %v1980 = vpop.f32.mrf.mxu0
  %v1981 = vadd.f32 0.0, %v1980
  %1982 = vmatmul.f32.gmra.mxu0 %v1930
  %v1983 = vpop.f32.mrf.mxu0
  %v1984 = vadd.f32 0.0, %v1983
  %1985 = vmatmul.f32.gmra.mxu0 %v1932
  %v1986 = vpop.f32.mrf.mxu0
  %v1987 = vadd.f32 0.0, %v1986
  %1988 = vmatmul.f32.gmra.mxu0 %v1934
  %v1989 = vpop.f32.mrf.mxu0
  %v1990 = vadd.f32 0.0, %v1989
  %1991 = vmatmul.f32.gmra.mxu0 %v1936
  %v1992 = vpop.f32.mrf.mxu0
  %v1993 = vadd.f32 0.0, %v1992
  %1994 = vdwg.mxu0
  %v1995 = vsel %vm353, %v1867, -inf
  %1996 = vmax.xlane.f32.xlu0 %v1995
  %v1997 = vpop.xlane.xlu0 %1996
  %v1998 = vsel %vm353, %v1870, -inf
  %1999 = vmax.xlane.f32.xlu0 %v1998
  %v2000 = vpop.xlane.xlu0 %1999
  %v2001 = vsel %vm353, %v1873, -inf
  %2002 = vmax.xlane.f32.xlu0 %v2001
  %v2003 = vpop.xlane.xlu0 %2002
  %v2004 = vsel %vm353, %v1876, -inf
  %2005 = vmax.xlane.f32.xlu0 %v2004
  %v2006 = vpop.xlane.xlu0 %2005
  %v2007 = vsel %vm353, %v1879, -inf
  %2008 = vmax.xlane.f32.xlu0 %v2007
  %v2009 = vpop.xlane.xlu0 %2008
  %v2010 = vsel %vm353, %v1882, -inf
  %2011 = vmax.xlane.f32.xlu0 %v2010
  %v2012 = vpop.xlane.xlu0 %2011
  %v2013 = vsel %vm353, %v1885, -inf
  %2014 = vmax.xlane.f32.xlu0 %v2013
  %v2015 = vpop.xlane.xlu0 %2014
  %v2016 = vsel %vm353, %v1888, -inf
  %2017 = vmax.xlane.f32.xlu0 %v2016
  %v2018 = vpop.xlane.xlu0 %2017
  %v2019 = vsel %vm353, %v1972, -inf
  %2020 = vmax.xlane.f32.xlu0 %v2019
  %v2021 = vpop.xlane.xlu0 %2020
  %v2022 = vsel %vm353, %v1975, -inf
  %2023 = vmax.xlane.f32.xlu0 %v2022
  %v2024 = vpop.xlane.xlu0 %2023
  %v2025 = vsel %vm353, %v1978, -inf
  %2026 = vmax.xlane.f32.xlu0 %v2025
  %v2027 = vpop.xlane.xlu0 %2026
  %v2028 = vsel %vm353, %v1981, -inf
  %2029 = vmax.xlane.f32.xlu0 %v2028
  %v2030 = vpop.xlane.xlu0 %2029
  %v2031 = vsel %vm353, %v1984, -inf
  %2032 = vmax.xlane.f32.xlu0 %v2031
  %v2033 = vpop.xlane.xlu0 %2032
  %v2034 = vsel %vm353, %v1987, -inf
  %2035 = vmax.xlane.f32.xlu0 %v2034
  %v2036 = vpop.xlane.xlu0 %2035
  %v2037 = vsel %vm353, %v1990, -inf
  %2038 = vmax.xlane.f32.xlu0 %v2037
  %v2039 = vpop.xlane.xlu0 %2038
  %v2040 = vsel %vm353, %v1993, -inf
  %2041 = vmax.xlane.f32.xlu0 %v2040
  %v2042 = vpop.xlane.xlu0 %2041
  %v2043 = vsub.f32 %v1867, %v1997
  %v2044 = vsub.f32 %v1870, %v2000
  %v2045 = vsub.f32 %v1873, %v2003
  %v2046 = vsub.f32 %v1876, %v2006
  %v2047 = vsub.f32 %v1879, %v2009
  %v2048 = vsub.f32 %v1882, %v2012
  %v2049 = vsub.f32 %v1885, %v2015
  %v2050 = vsub.f32 %v1888, %v2018
  %v2051 = vsub.f32 %v1972, %v2021
  %v2052 = vsub.f32 %v1975, %v2024
  %v2053 = vsub.f32 %v1978, %v2027
  %v2054 = vsub.f32 %v1981, %v2030
  %v2055 = vsub.f32 %v1984, %v2033
  %v2056 = vsub.f32 %v1987, %v2036
  %v2057 = vsub.f32 %v1990, %v2039
  %v2058 = vsub.f32 %v1993, %v2042
  %v2059 = vmul.f32 %v2043, 1.442695
  %v2060 = vpow.pop %v2059
  %v2061 = vmul.f32 %v2044, 1.442695
  %v2062 = vpow.pop %v2061
  %v2063 = vmul.f32 %v2045, 1.442695
  %v2064 = vpow.pop %v2063
  %v2065 = vmul.f32 %v2046, 1.442695
  %v2066 = vpow.pop %v2065
  %v2067 = vmul.f32 %v2047, 1.442695
  %v2068 = vpow.pop %v2067
  %v2069 = vmul.f32 %v2048, 1.442695
  %v2070 = vpow.pop %v2069
  %v2071 = vmul.f32 %v2049, 1.442695
  %v2072 = vpow.pop %v2071
  %v2073 = vmul.f32 %v2050, 1.442695
  %v2074 = vpow.pop %v2073
  %v2075 = vmul.f32 %v2051, 1.442695
  %v2076 = vpow.pop %v2075
  %v2077 = vmul.f32 %v2052, 1.442695
  %v2078 = vpow.pop %v2077
  %v2079 = vmul.f32 %v2053, 1.442695
  %v2080 = vpow.pop %v2079
  %v2081 = vmul.f32 %v2054, 1.442695
  %v2082 = vpow.pop %v2081
  %v2083 = vmul.f32 %v2055, 1.442695
  %v2084 = vpow.pop %v2083
  %v2085 = vmul.f32 %v2056, 1.442695
  %v2086 = vpow.pop %v2085
  %v2087 = vmul.f32 %v2057, 1.442695
  %v2088 = vpow.pop %v2087
  %v2089 = vmul.f32 %v2058, 1.442695
  %v2090 = vpow.pop %v2089
  %v2091 = vsel %vm353, %v2060, 0.0
  %2092 = vadd.xlane.f32.xlu0 %v2091
  %v2093 = vpop.xlane.xlu0 %2092
  %v2094 = vsel %vm353, %v2062, 0.0
  %2095 = vadd.xlane.f32.xlu0 %v2094
  %v2096 = vpop.xlane.xlu0 %2095
  %v2097 = vsel %vm353, %v2064, 0.0
  %2098 = vadd.xlane.f32.xlu0 %v2097
  %v2099 = vpop.xlane.xlu0 %2098
  %v2100 = vsel %vm353, %v2066, 0.0
  %2101 = vadd.xlane.f32.xlu0 %v2100
  %v2102 = vpop.xlane.xlu0 %2101
  %v2103 = vsel %vm353, %v2068, 0.0
  %2104 = vadd.xlane.f32.xlu0 %v2103
  %v2105 = vpop.xlane.xlu0 %2104
  %v2106 = vsel %vm353, %v2070, 0.0
  %2107 = vadd.xlane.f32.xlu0 %v2106
  %v2108 = vpop.xlane.xlu0 %2107
  %v2109 = vsel %vm353, %v2072, 0.0
  %2110 = vadd.xlane.f32.xlu0 %v2109
  %v2111 = vpop.xlane.xlu0 %2110
  %v2112 = vsel %vm353, %v2074, 0.0
  %2113 = vadd.xlane.f32.xlu0 %v2112
  %v2114 = vpop.xlane.xlu0 %2113
  %v2115 = vsel %vm353, %v2076, 0.0
  %2116 = vadd.xlane.f32.xlu0 %v2115
  %v2117 = vpop.xlane.xlu0 %2116
  %v2118 = vsel %vm353, %v2078, 0.0
  %2119 = vadd.xlane.f32.xlu0 %v2118
  %v2120 = vpop.xlane.xlu0 %2119
  %v2121 = vsel %vm353, %v2080, 0.0
  %2122 = vadd.xlane.f32.xlu0 %v2121
  %v2123 = vpop.xlane.xlu0 %2122
  %v2124 = vsel %vm353, %v2082, 0.0
  %2125 = vadd.xlane.f32.xlu0 %v2124
  %v2126 = vpop.xlane.xlu0 %2125
  %v2127 = vsel %vm353, %v2084, 0.0
  %2128 = vadd.xlane.f32.xlu0 %v2127
  %v2129 = vpop.xlane.xlu0 %2128
  %v2130 = vsel %vm353, %v2086, 0.0
  %2131 = vadd.xlane.f32.xlu0 %v2130
  %v2132 = vpop.xlane.xlu0 %2131
  %v2133 = vsel %vm353, %v2088, 0.0
  %2134 = vadd.xlane.f32.xlu0 %v2133
  %v2135 = vpop.xlane.xlu0 %2134
  %v2136 = vsel %vm353, %v2090, 0.0
  %2137 = vadd.xlane.f32.xlu0 %v2136
  %v2138 = vpop.xlane.xlu0 %2137
  %v2139 = vrcp.pop %v2093
  %v2140 = vmul.f32 %v2093, %v2139
  %v2141 = vsub.f32 1.0, %v2140
  %v2142 = vmul.f32 %v2139, %v2141
  %v2143 = vadd.f32 %v2139, %v2142
  %vm2144 = vweird.f32 %v2093
  %vm2145 = vweird.f32 %v2139
  %vm2146 = vmor %vm2144, %vm2145
  %v2147 = vsel %vm2146, %v2139, %v2143
  %v2148 = vand.u32 2147483647, %v2093
  %vm2149 = vcmp.eq.f32.partialorder %v2148, 8.507059e+37
  %v2150 = vand.u32 %v2093, 2147483648
  %v2151 = vor.u32 1.1754944e-38, %v2150
  %v2152 = vsel %vm2149, %v2151, %v2147
  %v2153 = vmul.f32 %v2060, %v2152
  %v2154 = vrcp.pop %v2096
  %v2155 = vmul.f32 %v2096, %v2154
  %v2156 = vsub.f32 1.0, %v2155
  %v2157 = vmul.f32 %v2154, %v2156
  %v2158 = vadd.f32 %v2154, %v2157
  %vm2159 = vweird.f32 %v2096
  %vm2160 = vweird.f32 %v2154
  %vm2161 = vmor %vm2159, %vm2160
  %v2162 = vsel %vm2161, %v2154, %v2158
  %v2163 = vand.u32 2147483647, %v2096
  %vm2164 = vcmp.eq.f32.partialorder %v2163, 8.507059e+37
  %v2165 = vand.u32 %v2096, 2147483648
  %v2166 = vor.u32 1.1754944e-38, %v2165
  %v2167 = vsel %vm2164, %v2166, %v2162
  %v2168 = vmul.f32 %v2062, %v2167
  %v2169 = vrcp.pop %v2099
  %v2170 = vmul.f32 %v2099, %v2169
  %v2171 = vsub.f32 1.0, %v2170
  %v2172 = vmul.f32 %v2169, %v2171
  %v2173 = vadd.f32 %v2169, %v2172
  %vm2174 = vweird.f32 %v2099
  %vm2175 = vweird.f32 %v2169
  %vm2176 = vmor %vm2174, %vm2175
  %v2177 = vsel %vm2176, %v2169, %v2173
  %v2178 = vand.u32 2147483647, %v2099
  %vm2179 = vcmp.eq.f32.partialorder %v2178, 8.507059e+37
  %v2180 = vand.u32 %v2099, 2147483648
  %v2181 = vor.u32 1.1754944e-38, %v2180
  %v2182 = vsel %vm2179, %v2181, %v2177
  %v2183 = vmul.f32 %v2064, %v2182
  %v2184 = vrcp.pop %v2102
  %v2185 = vmul.f32 %v2102, %v2184
  %v2186 = vsub.f32 1.0, %v2185
  %v2187 = vmul.f32 %v2184, %v2186
  %v2188 = vadd.f32 %v2184, %v2187
  %vm2189 = vweird.f32 %v2102
  %vm2190 = vweird.f32 %v2184
  %vm2191 = vmor %vm2189, %vm2190
  %v2192 = vsel %vm2191, %v2184, %v2188
  %v2193 = vand.u32 2147483647, %v2102
  %vm2194 = vcmp.eq.f32.partialorder %v2193, 8.507059e+37
  %v2195 = vand.u32 %v2102, 2147483648
  %v2196 = vor.u32 1.1754944e-38, %v2195
  %v2197 = vsel %vm2194, %v2196, %v2192
  %v2198 = vmul.f32 %v2066, %v2197
  %v2199 = vrcp.pop %v2105
  %v2200 = vmul.f32 %v2105, %v2199
  %v2201 = vsub.f32 1.0, %v2200
  %v2202 = vmul.f32 %v2199, %v2201
  %v2203 = vadd.f32 %v2199, %v2202
  %vm2204 = vweird.f32 %v2105
  %vm2205 = vweird.f32 %v2199
  %vm2206 = vmor %vm2204, %vm2205
  %v2207 = vsel %vm2206, %v2199, %v2203
  %v2208 = vand.u32 2147483647, %v2105
  %vm2209 = vcmp.eq.f32.partialorder %v2208, 8.507059e+37
  %v2210 = vand.u32 %v2105, 2147483648
  %v2211 = vor.u32 1.1754944e-38, %v2210
  %v2212 = vsel %vm2209, %v2211, %v2207
  %v2213 = vmul.f32 %v2068, %v2212
  %v2214 = vrcp.pop %v2108
  %v2215 = vmul.f32 %v2108, %v2214
  %v2216 = vsub.f32 1.0, %v2215
  %v2217 = vmul.f32 %v2214, %v2216
  %v2218 = vadd.f32 %v2214, %v2217
  %vm2219 = vweird.f32 %v2108
  %vm2220 = vweird.f32 %v2214
  %vm2221 = vmor %vm2219, %vm2220
  %v2222 = vsel %vm2221, %v2214, %v2218
  %v2223 = vand.u32 2147483647, %v2108
  %vm2224 = vcmp.eq.f32.partialorder %v2223, 8.507059e+37
  %v2225 = vand.u32 %v2108, 2147483648
  %v2226 = vor.u32 1.1754944e-38, %v2225
  %v2227 = vsel %vm2224, %v2226, %v2222
  %v2228 = vmul.f32 %v2070, %v2227
  %v2229 = vrcp.pop %v2111
  %v2230 = vmul.f32 %v2111, %v2229
  %v2231 = vsub.f32 1.0, %v2230
  %v2232 = vmul.f32 %v2229, %v2231
  %v2233 = vadd.f32 %v2229, %v2232
  %vm2234 = vweird.f32 %v2111
  %vm2235 = vweird.f32 %v2229
  %vm2236 = vmor %vm2234, %vm2235
  %v2237 = vsel %vm2236, %v2229, %v2233
  %v2238 = vand.u32 2147483647, %v2111
  %vm2239 = vcmp.eq.f32.partialorder %v2238, 8.507059e+37
  %v2240 = vand.u32 %v2111, 2147483648
  %v2241 = vor.u32 1.1754944e-38, %v2240
  %v2242 = vsel %vm2239, %v2241, %v2237
  %v2243 = vmul.f32 %v2072, %v2242
  %v2244 = vrcp.pop %v2114
  %v2245 = vmul.f32 %v2114, %v2244
  %v2246 = vsub.f32 1.0, %v2245
  %v2247 = vmul.f32 %v2244, %v2246
  %v2248 = vadd.f32 %v2244, %v2247
  %vm2249 = vweird.f32 %v2114
  %vm2250 = vweird.f32 %v2244
  %vm2251 = vmor %vm2249, %vm2250
  %v2252 = vsel %vm2251, %v2244, %v2248
  %v2253 = vand.u32 2147483647, %v2114
  %vm2254 = vcmp.eq.f32.partialorder %v2253, 8.507059e+37
  %v2255 = vand.u32 %v2114, 2147483648
  %v2256 = vor.u32 1.1754944e-38, %v2255
  %v2257 = vsel %vm2254, %v2256, %v2252
  %v2258 = vmul.f32 %v2074, %v2257
  %v2259 = vrcp.pop %v2117
  %v2260 = vmul.f32 %v2117, %v2259
  %v2261 = vsub.f32 1.0, %v2260
  %v2262 = vmul.f32 %v2259, %v2261
  %v2263 = vadd.f32 %v2259, %v2262
  %vm2264 = vweird.f32 %v2117
  %vm2265 = vweird.f32 %v2259
  %vm2266 = vmor %vm2264, %vm2265
  %v2267 = vsel %vm2266, %v2259, %v2263
  %v2268 = vand.u32 2147483647, %v2117
  %vm2269 = vcmp.eq.f32.partialorder %v2268, 8.507059e+37
  %v2270 = vand.u32 %v2117, 2147483648
  %v2271 = vor.u32 1.1754944e-38, %v2270
  %v2272 = vsel %vm2269, %v2271, %v2267
  %v2273 = vmul.f32 %v2076, %v2272
  %v2274 = vrcp.pop %v2120
  %v2275 = vmul.f32 %v2120, %v2274
  %v2276 = vsub.f32 1.0, %v2275
  %v2277 = vmul.f32 %v2274, %v2276
  %v2278 = vadd.f32 %v2274, %v2277
  %vm2279 = vweird.f32 %v2120
  %vm2280 = vweird.f32 %v2274
  %vm2281 = vmor %vm2279, %vm2280
  %v2282 = vsel %vm2281, %v2274, %v2278
  %v2283 = vand.u32 2147483647, %v2120
  %vm2284 = vcmp.eq.f32.partialorder %v2283, 8.507059e+37
  %v2285 = vand.u32 %v2120, 2147483648
  %v2286 = vor.u32 1.1754944e-38, %v2285
  %v2287 = vsel %vm2284, %v2286, %v2282
  %v2288 = vmul.f32 %v2078, %v2287
  %v2289 = vrcp.pop %v2123
  %v2290 = vmul.f32 %v2123, %v2289
  %v2291 = vsub.f32 1.0, %v2290
  %v2292 = vmul.f32 %v2289, %v2291
  %v2293 = vadd.f32 %v2289, %v2292
  %vm2294 = vweird.f32 %v2123
  %vm2295 = vweird.f32 %v2289
  %vm2296 = vmor %vm2294, %vm2295
  %v2297 = vsel %vm2296, %v2289, %v2293
  %v2298 = vand.u32 2147483647, %v2123
  %vm2299 = vcmp.eq.f32.partialorder %v2298, 8.507059e+37
  %v2300 = vand.u32 %v2123, 2147483648
  %v2301 = vor.u32 1.1754944e-38, %v2300
  %v2302 = vsel %vm2299, %v2301, %v2297
  %v2303 = vmul.f32 %v2080, %v2302
  %v2304 = vrcp.pop %v2126
  %v2305 = vmul.f32 %v2126, %v2304
  %v2306 = vsub.f32 1.0, %v2305
  %v2307 = vmul.f32 %v2304, %v2306
  %v2308 = vadd.f32 %v2304, %v2307
  %vm2309 = vweird.f32 %v2126
  %vm2310 = vweird.f32 %v2304
  %vm2311 = vmor %vm2309, %vm2310
  %v2312 = vsel %vm2311, %v2304, %v2308
  %v2313 = vand.u32 2147483647, %v2126
  %vm2314 = vcmp.eq.f32.partialorder %v2313, 8.507059e+37
  %v2315 = vand.u32 %v2126, 2147483648
  %v2316 = vor.u32 1.1754944e-38, %v2315
  %v2317 = vsel %vm2314, %v2316, %v2312
  %v2318 = vmul.f32 %v2082, %v2317
  %v2319 = vrcp.pop %v2129
  %v2320 = vmul.f32 %v2129, %v2319
  %v2321 = vsub.f32 1.0, %v2320
  %v2322 = vmul.f32 %v2319, %v2321
  %v2323 = vadd.f32 %v2319, %v2322
  %vm2324 = vweird.f32 %v2129
  %vm2325 = vweird.f32 %v2319
  %vm2326 = vmor %vm2324, %vm2325
  %v2327 = vsel %vm2326, %v2319, %v2323
  %v2328 = vand.u32 2147483647, %v2129
  %vm2329 = vcmp.eq.f32.partialorder %v2328, 8.507059e+37
  %v2330 = vand.u32 %v2129, 2147483648
  %v2331 = vor.u32 1.1754944e-38, %v2330
  %v2332 = vsel %vm2329, %v2331, %v2327
  %v2333 = vmul.f32 %v2084, %v2332
  %v2334 = vrcp.pop %v2132
  %v2335 = vmul.f32 %v2132, %v2334
  %v2336 = vsub.f32 1.0, %v2335
  %v2337 = vmul.f32 %v2334, %v2336
  %v2338 = vadd.f32 %v2334, %v2337
  %vm2339 = vweird.f32 %v2132
  %vm2340 = vweird.f32 %v2334
  %vm2341 = vmor %vm2339, %vm2340
  %v2342 = vsel %vm2341, %v2334, %v2338
  %v2343 = vand.u32 2147483647, %v2132
  %vm2344 = vcmp.eq.f32.partialorder %v2343, 8.507059e+37
  %v2345 = vand.u32 %v2132, 2147483648
  %v2346 = vor.u32 1.1754944e-38, %v2345
  %v2347 = vsel %vm2344, %v2346, %v2342
  %v2348 = vmul.f32 %v2086, %v2347
  %v2349 = vrcp.pop %v2135
  %v2350 = vmul.f32 %v2135, %v2349
  %v2351 = vsub.f32 1.0, %v2350
  %v2352 = vmul.f32 %v2349, %v2351
  %v2353 = vadd.f32 %v2349, %v2352
  %vm2354 = vweird.f32 %v2135
  %vm2355 = vweird.f32 %v2349
  %vm2356 = vmor %vm2354, %vm2355
  %v2357 = vsel %vm2356, %v2349, %v2353
  %v2358 = vand.u32 2147483647, %v2135
  %vm2359 = vcmp.eq.f32.partialorder %v2358, 8.507059e+37
  %v2360 = vand.u32 %v2135, 2147483648
  %v2361 = vor.u32 1.1754944e-38, %v2360
  %v2362 = vsel %vm2359, %v2361, %v2357
  %v2363 = vmul.f32 %v2088, %v2362
  %v2364 = vrcp.pop %v2138
  %v2365 = vmul.f32 %v2138, %v2364
  %v2366 = vsub.f32 1.0, %v2365
  %v2367 = vmul.f32 %v2364, %v2366
  %v2368 = vadd.f32 %v2364, %v2367
  %vm2369 = vweird.f32 %v2138
  %vm2370 = vweird.f32 %v2364
  %vm2371 = vmor %vm2369, %vm2370
  %v2372 = vsel %vm2371, %v2364, %v2368
  %v2373 = vand.u32 2147483647, %v2138
  %vm2374 = vcmp.eq.f32.partialorder %v2373, 8.507059e+37
  %v2375 = vand.u32 %v2138, 2147483648
  %v2376 = vor.u32 1.1754944e-38, %v2375
  %v2377 = vsel %vm2374, %v2376, %v2372
  %v2378 = vmul.f32 %v2090, %v2377
  %2379 = vrot.lane.b32.xlu0 %v111, 48
  %v2380 = vpop.permute.xlu0 %2379
  %2381 = vrot.lane.b32.xlu0 %v114, 48
  %v2382 = vpop.permute.xlu0 %2381
  %2383 = vrot.lane.b32.xlu0 %v117, 48
  %v2384 = vpop.permute.xlu0 %2383
  %2385 = vrot.lane.b32.xlu0 %v120, 48
  %v2386 = vpop.permute.xlu0 %2385
  %2387 = vrot.lane.b32.xlu0 %v123, 48
  %v2388 = vpop.permute.xlu0 %2387
  %2389 = vrot.lane.b32.xlu0 %v126, 48
  %v2390 = vpop.permute.xlu0 %2389
  %2391 = vrot.lane.b32.xlu0 %v129, 48
  %v2392 = vpop.permute.xlu0 %2391
  %2393 = vrot.lane.b32.xlu0 %v132, 48
  %v2394 = vpop.permute.xlu0 %2393
  %v2404 = vsel %vm353, %v2153, 0
  %v2407 = vsel %vm353, %v2168, 0
  %v2410 = vsel %vm353, %v2183, 0
  %v2413 = vsel %vm353, %v2198, 0
  %v2416 = vsel %vm353, %v2213, 0
  %v2419 = vsel %vm353, %v2228, 0
  %v2422 = vsel %vm353, %v2243, 0
  %v2425 = vsel %vm353, %v2258, 0
  %2427 = vmatpush.msra.mxu0 0.0
  %2428 = vmatpush.msra.mxu0 0.0
  %2429 = vmatpush.msra.mxu0 0.0
  %2430 = vmatpush.msra.mxu0 0.0
  %2431 = vmatpush.msra.mxu0 0.0
  %2432 = vmatpush.msra.mxu0 0.0
  %2433 = vmatpush.msra.mxu0 0.0
  %2434 = vmatpush.msra.mxu0 0.0
  %2435 = vmatpush.msra.mxu0 %v2394
  %2436 = vmatpush.msra.mxu0 %v2392
  %2437 = vmatpush.msra.mxu0 %v2390
  %2438 = vmatpush.msra.mxu0 %v2388
  %2439 = vmatpush.msra.mxu0 %v2386
  %2440 = vmatpush.msra.mxu0 %v2384
  %2441 = vmatpush.msra.mxu0 %v2382
  %2442 = vmatpush.msra.mxu0 %v2380
  %2443 = vmatmul.f32.gmra.mxu0 %v2404
  %v2444 = vpop.f32.mrf.mxu0
  %v2445 = vadd.f32 0.0, %v2444
  %2446 = vmatmul.f32.gmra.mxu0 %v2407
  %v2447 = vpop.f32.mrf.mxu0
  %v2448 = vadd.f32 0.0, %v2447
  %2449 = vmatmul.f32.gmra.mxu0 %v2410
  %v2450 = vpop.f32.mrf.mxu0
  %v2451 = vadd.f32 0.0, %v2450
  %2452 = vmatmul.f32.gmra.mxu0 %v2413
  %v2453 = vpop.f32.mrf.mxu0
  %v2454 = vadd.f32 0.0, %v2453
  %2455 = vmatmul.f32.gmra.mxu0 %v2416
  %v2456 = vpop.f32.mrf.mxu0
  %v2457 = vadd.f32 0.0, %v2456
  %2458 = vmatmul.f32.gmra.mxu0 %v2419
  %v2459 = vpop.f32.mrf.mxu0
  %v2460 = vadd.f32 0.0, %v2459
  %2461 = vmatmul.f32.gmra.mxu0 %v2422
  %v2462 = vpop.f32.mrf.mxu0
  %v2463 = vadd.f32 0.0, %v2462
  %2464 = vmatmul.f32.gmra.mxu0 %v2425
  %v2465 = vpop.f32.mrf.mxu0
  %v2466 = vadd.f32 0.0, %v2465
  %2467 = vdwg.mxu0
  %2468 = vrot.lane.b32.xlu0 %v135, 48
  %v2469 = vpop.permute.xlu0 %2468
  %2470 = vrot.lane.b32.xlu0 %v138, 48
  %v2471 = vpop.permute.xlu0 %2470
  %2472 = vrot.lane.b32.xlu0 %v141, 48
  %v2473 = vpop.permute.xlu0 %2472
  %2474 = vrot.lane.b32.xlu0 %v144, 48
  %v2475 = vpop.permute.xlu0 %2474
  %2476 = vrot.lane.b32.xlu0 %v147, 48
  %v2477 = vpop.permute.xlu0 %2476
  %2478 = vrot.lane.b32.xlu0 %v150, 48
  %v2479 = vpop.permute.xlu0 %2478
  %2480 = vrot.lane.b32.xlu0 %v153, 48
  %v2481 = vpop.permute.xlu0 %2480
  %2482 = vrot.lane.b32.xlu0 %v156, 48
  %v2483 = vpop.permute.xlu0 %2482
  %v2493 = vsel %vm353, %v2273, 0
  %v2496 = vsel %vm353, %v2288, 0
  %v2499 = vsel %vm353, %v2303, 0
  %v2502 = vsel %vm353, %v2318, 0
  %v2505 = vsel %vm353, %v2333, 0
  %v2508 = vsel %vm353, %v2348, 0
  %v2511 = vsel %vm353, %v2363, 0
  %v2514 = vsel %vm353, %v2378, 0
  %2516 = vmatpush.msra.mxu0 0.0
  %2517 = vmatpush.msra.mxu0 0.0
  %2518 = vmatpush.msra.mxu0 0.0
  %2519 = vmatpush.msra.mxu0 0.0
  %2520 = vmatpush.msra.mxu0 0.0
  %2521 = vmatpush.msra.mxu0 0.0
  %2522 = vmatpush.msra.mxu0 0.0
  %2523 = vmatpush.msra.mxu0 0.0
  %2524 = vmatpush.msra.mxu0 %v2483
  %2525 = vmatpush.msra.mxu0 %v2481
  %2526 = vmatpush.msra.mxu0 %v2479
  %2527 = vmatpush.msra.mxu0 %v2477
  %2528 = vmatpush.msra.mxu0 %v2475
  %2529 = vmatpush.msra.mxu0 %v2473
  %2530 = vmatpush.msra.mxu0 %v2471
  %2531 = vmatpush.msra.mxu0 %v2469
  %2532 = vmatmul.f32.gmra.mxu0 %v2493
  %v2533 = vpop.f32.mrf.mxu0
  %v2534 = vadd.f32 0.0, %v2533
  %2535 = vmatmul.f32.gmra.mxu0 %v2496
  %v2536 = vpop.f32.mrf.mxu0
  %v2537 = vadd.f32 0.0, %v2536
  %2538 = vmatmul.f32.gmra.mxu0 %v2499
  %v2539 = vpop.f32.mrf.mxu0
  %v2540 = vadd.f32 0.0, %v2539
  %2541 = vmatmul.f32.gmra.mxu0 %v2502
  %v2542 = vpop.f32.mrf.mxu0
  %v2543 = vadd.f32 0.0, %v2542
  %2544 = vmatmul.f32.gmra.mxu0 %v2505
  %v2545 = vpop.f32.mrf.mxu0
  %v2546 = vadd.f32 0.0, %v2545
  %2547 = vmatmul.f32.gmra.mxu0 %v2508
  %v2548 = vpop.f32.mrf.mxu0
  %v2549 = vadd.f32 0.0, %v2548
  %2550 = vmatmul.f32.gmra.mxu0 %v2511
  %v2551 = vpop.f32.mrf.mxu0
  %v2552 = vadd.f32 0.0, %v2551
  %2553 = vmatmul.f32.gmra.mxu0 %v2514
  %v2554 = vpop.f32.mrf.mxu0
  %v2555 = vadd.f32 0.0, %v2554
  %2556 = vdwg.mxu0
  %2573 = vrot.lane.b32.xlu0 %v2445, 16
  %v2574 = vpop.permute.xlu0 %2573
  %2575 = vrot.lane.b32.xlu0 %v2448, 16
  %v2576 = vpop.permute.xlu0 %2575
  %2577 = vrot.lane.b32.xlu0 %v2451, 16
  %v2578 = vpop.permute.xlu0 %2577
  %2579 = vrot.lane.b32.xlu0 %v2454, 16
  %v2580 = vpop.permute.xlu0 %2579
  %2581 = vrot.lane.b32.xlu0 %v2457, 16
  %v2582 = vpop.permute.xlu0 %2581
  %2583 = vrot.lane.b32.xlu0 %v2460, 16
  %v2584 = vpop.permute.xlu0 %2583
  %2585 = vrot.lane.b32.xlu0 %v2463, 16
  %v2586 = vpop.permute.xlu0 %2585
  %2587 = vrot.lane.b32.xlu0 %v2466, 16
  %v2588 = vpop.permute.xlu0 %2587
  %2589 = vrot.lane.b32.xlu0 %v2534, 16
  %v2590 = vpop.permute.xlu0 %2589
  %2591 = vrot.lane.b32.xlu0 %v2537, 16
  %v2592 = vpop.permute.xlu0 %2591
  %2593 = vrot.lane.b32.xlu0 %v2540, 16
  %v2594 = vpop.permute.xlu0 %2593
  %2595 = vrot.lane.b32.xlu0 %v2543, 16
  %v2596 = vpop.permute.xlu0 %2595
  %2597 = vrot.lane.b32.xlu0 %v2546, 16
  %v2598 = vpop.permute.xlu0 %2597
  %2599 = vrot.lane.b32.xlu0 %v2549, 16
  %v2600 = vpop.permute.xlu0 %2599
  %2601 = vrot.lane.b32.xlu0 %v2552, 16
  %v2602 = vpop.permute.xlu0 %2601
  %2603 = vrot.lane.b32.xlu0 %v2555, 16
  %v2604 = vpop.permute.xlu0 %2603
  %vm2621 = vcmask 195712
  %2622 = vst.msk [vmem:[#allocation2] sm:$0xff] %vm2621, %v2574
  %2623 = vst.msk [vmem:[#allocation2 + $0x8] sm:$0xff] %vm2621, %v2576
  %2624 = vst.msk [vmem:[#allocation2 + $0x10] sm:$0xff] %vm2621, %v2578
  %2625 = vst.msk [vmem:[#allocation2 + $0x18] sm:$0xff] %vm2621, %v2580
  %2626 = vst.msk [vmem:[#allocation2 + $0x20] sm:$0xff] %vm2621, %v2582
  %2627 = vst.msk [vmem:[#allocation2 + $0x28] sm:$0xff] %vm2621, %v2584
  %2628 = vst.msk [vmem:[#allocation2 + $0x30] sm:$0xff] %vm2621, %v2586
  %2629 = vst.msk [vmem:[#allocation2 + $0x38] sm:$0xff] %vm2621, %v2588
  %2630 = vst.msk [vmem:[#allocation2 + $0x40] sm:$0xff] %vm2621, %v2590
  %2631 = vst.msk [vmem:[#allocation2 + $0x48] sm:$0xff] %vm2621, %v2592
  %2632 = vst.msk [vmem:[#allocation2 + $0x50] sm:$0xff] %vm2621, %v2594
  %2633 = vst.msk [vmem:[#allocation2 + $0x58] sm:$0xff] %vm2621, %v2596
  %2634 = vst.msk [vmem:[#allocation2 + $0x60] sm:$0xff] %vm2621, %v2598
  %2635 = vst.msk [vmem:[#allocation2 + $0x68] sm:$0xff] %vm2621, %v2600
  %2636 = vst.msk [vmem:[#allocation2 + $0x70] sm:$0xff] %vm2621, %v2602
  %2637 = vst.msk [vmem:[#allocation2 + $0x78] sm:$0xff] %vm2621, %v2604
  %2638 = vrot.lane.b32.xlu0 %v111, 104
  %v2639 = vpop.permute.xlu0 %2638
  %2640 = vrot.lane.b32.xlu0 %v114, 104
  %v2641 = vpop.permute.xlu0 %2640
  %2642 = vrot.lane.b32.xlu0 %v117, 104
  %v2643 = vpop.permute.xlu0 %2642
  %2644 = vrot.lane.b32.xlu0 %v120, 104
  %v2645 = vpop.permute.xlu0 %2644
  %2646 = vrot.lane.b32.xlu0 %v123, 104
  %v2647 = vpop.permute.xlu0 %2646
  %2648 = vrot.lane.b32.xlu0 %v126, 104
  %v2649 = vpop.permute.xlu0 %2648
  %2650 = vrot.lane.b32.xlu0 %v129, 104
  %v2651 = vpop.permute.xlu0 %2650
  %2652 = vrot.lane.b32.xlu0 %v132, 104
  %v2653 = vpop.permute.xlu0 %2652
  %2654 = vrot.lane.b32.xlu0 %v111, 72
  %v2655 = vpop.permute.xlu0 %2654
  %2656 = vrot.lane.b32.xlu0 %v114, 72
  %v2657 = vpop.permute.xlu0 %2656
  %2658 = vrot.lane.b32.xlu0 %v117, 72
  %v2659 = vpop.permute.xlu0 %2658
  %2660 = vrot.lane.b32.xlu0 %v120, 72
  %v2661 = vpop.permute.xlu0 %2660
  %2662 = vrot.lane.b32.xlu0 %v123, 72
  %v2663 = vpop.permute.xlu0 %2662
  %2664 = vrot.lane.b32.xlu0 %v126, 72
  %v2665 = vpop.permute.xlu0 %2664
  %2666 = vrot.lane.b32.xlu0 %v129, 72
  %v2667 = vpop.permute.xlu0 %2666
  %2668 = vrot.lane.b32.xlu0 %v132, 72
  %v2669 = vpop.permute.xlu0 %2668
  %v2670 = vsel %vm182, %v2639, 0
  %v2672 = vsel %vm182, %v2641, 0
  %v2674 = vsel %vm182, %v2643, 0
  %v2676 = vsel %vm182, %v2645, 0
  %v2678 = vsel %vm182, %v2647, 0
  %v2680 = vsel %vm182, %v2649, 0
  %v2682 = vsel %vm182, %v2651, 0
  %v2684 = vsel %vm182, %v2653, 0
  %v2686 = vsel %vm182, %v2655, 0
  %v2688 = vsel %vm182, %v2657, 0
  %v2690 = vsel %vm182, %v2659, 0
  %v2692 = vsel %vm182, %v2661, 0
  %v2694 = vsel %vm182, %v2663, 0
  %v2696 = vsel %vm182, %v2665, 0
  %v2698 = vsel %vm182, %v2667, 0
  %v2700 = vsel %vm182, %v2669, 0
  %2702 = vmatpush.xpose.msra.mxu0 0.0
  %2703 = vmatpush.xpose.msra.mxu0 0.0
  %2704 = vmatpush.xpose.msra.mxu0 0.0
  %2705 = vmatpush.xpose.msra.mxu0 0.0
  %2706 = vmatpush.xpose.msra.mxu0 0.0
  %2707 = vmatpush.xpose.msra.mxu0 0.0
  %2708 = vmatpush.xpose.msra.mxu0 0.0
  %2709 = vmatpush.xpose.msra.mxu0 0.0
  %2710 = vmatpush.xpose.msra.mxu0 %v2700
  %2711 = vmatpush.xpose.msra.mxu0 %v2698
  %2712 = vmatpush.xpose.msra.mxu0 %v2696
  %2713 = vmatpush.xpose.msra.mxu0 %v2694
  %2714 = vmatpush.xpose.msra.mxu0 %v2692
  %2715 = vmatpush.xpose.msra.mxu0 %v2690
  %2716 = vmatpush.xpose.msra.mxu0 %v2688
  %2717 = vmatpush.xpose.msra.mxu0 %v2686
  %2718 = vmatmul.f32.gmra.mxu0 %v2670
  %v2719 = vpop.f32.mrf.mxu0
  %v2720 = vadd.f32 0.0, %v2719
  %2721 = vmatmul.f32.gmra.mxu0 %v2672
  %v2722 = vpop.f32.mrf.mxu0
  %v2723 = vadd.f32 0.0, %v2722
  %2724 = vmatmul.f32.gmra.mxu0 %v2674
  %v2725 = vpop.f32.mrf.mxu0
  %v2726 = vadd.f32 0.0, %v2725
  %2727 = vmatmul.f32.gmra.mxu0 %v2676
  %v2728 = vpop.f32.mrf.mxu0
  %v2729 = vadd.f32 0.0, %v2728
  %2730 = vmatmul.f32.gmra.mxu0 %v2678
  %v2731 = vpop.f32.mrf.mxu0
  %v2732 = vadd.f32 0.0, %v2731
  %2733 = vmatmul.f32.gmra.mxu0 %v2680
  %v2734 = vpop.f32.mrf.mxu0
  %v2735 = vadd.f32 0.0, %v2734
  %2736 = vmatmul.f32.gmra.mxu0 %v2682
  %v2737 = vpop.f32.mrf.mxu0
  %v2738 = vadd.f32 0.0, %v2737
  %2739 = vmatmul.f32.gmra.mxu0 %v2684
  %v2740 = vpop.f32.mrf.mxu0
  %v2741 = vadd.f32 0.0, %v2740
  %2742 = vdwg.mxu0
  %2743 = vrot.lane.b32.xlu0 %v135, 104
  %v2744 = vpop.permute.xlu0 %2743
  %2745 = vrot.lane.b32.xlu0 %v138, 104
  %v2746 = vpop.permute.xlu0 %2745
  %2747 = vrot.lane.b32.xlu0 %v141, 104
  %v2748 = vpop.permute.xlu0 %2747
  %2749 = vrot.lane.b32.xlu0 %v144, 104
  %v2750 = vpop.permute.xlu0 %2749
  %2751 = vrot.lane.b32.xlu0 %v147, 104
  %v2752 = vpop.permute.xlu0 %2751
  %2753 = vrot.lane.b32.xlu0 %v150, 104
  %v2754 = vpop.permute.xlu0 %2753
  %2755 = vrot.lane.b32.xlu0 %v153, 104
  %v2756 = vpop.permute.xlu0 %2755
  %2757 = vrot.lane.b32.xlu0 %v156, 104
  %v2758 = vpop.permute.xlu0 %2757
  %2759 = vrot.lane.b32.xlu0 %v135, 72
  %v2760 = vpop.permute.xlu0 %2759
  %2761 = vrot.lane.b32.xlu0 %v138, 72
  %v2762 = vpop.permute.xlu0 %2761
  %2763 = vrot.lane.b32.xlu0 %v141, 72
  %v2764 = vpop.permute.xlu0 %2763
  %2765 = vrot.lane.b32.xlu0 %v144, 72
  %v2766 = vpop.permute.xlu0 %2765
  %2767 = vrot.lane.b32.xlu0 %v147, 72
  %v2768 = vpop.permute.xlu0 %2767
  %2769 = vrot.lane.b32.xlu0 %v150, 72
  %v2770 = vpop.permute.xlu0 %2769
  %2771 = vrot.lane.b32.xlu0 %v153, 72
  %v2772 = vpop.permute.xlu0 %2771
  %2773 = vrot.lane.b32.xlu0 %v156, 72
  %v2774 = vpop.permute.xlu0 %2773
  %v2775 = vsel %vm182, %v2744, 0
  %v2777 = vsel %vm182, %v2746, 0
  %v2779 = vsel %vm182, %v2748, 0
  %v2781 = vsel %vm182, %v2750, 0
  %v2783 = vsel %vm182, %v2752, 0
  %v2785 = vsel %vm182, %v2754, 0
  %v2787 = vsel %vm182, %v2756, 0
  %v2789 = vsel %vm182, %v2758, 0
  %v2791 = vsel %vm182, %v2760, 0
  %v2793 = vsel %vm182, %v2762, 0
  %v2795 = vsel %vm182, %v2764, 0
  %v2797 = vsel %vm182, %v2766, 0
  %v2799 = vsel %vm182, %v2768, 0
  %v2801 = vsel %vm182, %v2770, 0
  %v2803 = vsel %vm182, %v2772, 0
  %v2805 = vsel %vm182, %v2774, 0
  %2807 = vmatpush.xpose.msra.mxu0 0.0
  %2808 = vmatpush.xpose.msra.mxu0 0.0
  %2809 = vmatpush.xpose.msra.mxu0 0.0
  %2810 = vmatpush.xpose.msra.mxu0 0.0
  %2811 = vmatpush.xpose.msra.mxu0 0.0
  %2812 = vmatpush.xpose.msra.mxu0 0.0
  %2813 = vmatpush.xpose.msra.mxu0 0.0
  %2814 = vmatpush.xpose.msra.mxu0 0.0
  %2815 = vmatpush.xpose.msra.mxu0 %v2805
  %2816 = vmatpush.xpose.msra.mxu0 %v2803
  %2817 = vmatpush.xpose.msra.mxu0 %v2801
  %2818 = vmatpush.xpose.msra.mxu0 %v2799
  %2819 = vmatpush.xpose.msra.mxu0 %v2797
  %2820 = vmatpush.xpose.msra.mxu0 %v2795
  %2821 = vmatpush.xpose.msra.mxu0 %v2793
  %2822 = vmatpush.xpose.msra.mxu0 %v2791
  %2823 = vmatmul.f32.gmra.mxu0 %v2775
  %v2824 = vpop.f32.mrf.mxu0
  %v2825 = vadd.f32 0.0, %v2824
  %2826 = vmatmul.f32.gmra.mxu0 %v2777
  %v2827 = vpop.f32.mrf.mxu0
  %v2828 = vadd.f32 0.0, %v2827
  %2829 = vmatmul.f32.gmra.mxu0 %v2779
  %v2830 = vpop.f32.mrf.mxu0
  %v2831 = vadd.f32 0.0, %v2830
  %2832 = vmatmul.f32.gmra.mxu0 %v2781
  %v2833 = vpop.f32.mrf.mxu0
  %v2834 = vadd.f32 0.0, %v2833
  %2835 = vmatmul.f32.gmra.mxu0 %v2783
  %v2836 = vpop.f32.mrf.mxu0
  %v2837 = vadd.f32 0.0, %v2836
  %2838 = vmatmul.f32.gmra.mxu0 %v2785
  %v2839 = vpop.f32.mrf.mxu0
  %v2840 = vadd.f32 0.0, %v2839
  %2841 = vmatmul.f32.gmra.mxu0 %v2787
  %v2842 = vpop.f32.mrf.mxu0
  %v2843 = vadd.f32 0.0, %v2842
  %2844 = vmatmul.f32.gmra.mxu0 %v2789
  %v2845 = vpop.f32.mrf.mxu0
  %v2846 = vadd.f32 0.0, %v2845
  %2847 = vdwg.mxu0
  %v2848 = vsel %vm353, %v2720, -inf
  %2849 = vmax.xlane.f32.xlu0 %v2848
  %v2850 = vpop.xlane.xlu0 %2849
  %v2851 = vsel %vm353, %v2723, -inf
  %2852 = vmax.xlane.f32.xlu0 %v2851
  %v2853 = vpop.xlane.xlu0 %2852
  %v2854 = vsel %vm353, %v2726, -inf
  %2855 = vmax.xlane.f32.xlu0 %v2854
  %v2856 = vpop.xlane.xlu0 %2855
  %v2857 = vsel %vm353, %v2729, -inf
  %2858 = vmax.xlane.f32.xlu0 %v2857
  %v2859 = vpop.xlane.xlu0 %2858
  %v2860 = vsel %vm353, %v2732, -inf
  %2861 = vmax.xlane.f32.xlu0 %v2860
  %v2862 = vpop.xlane.xlu0 %2861
  %v2863 = vsel %vm353, %v2735, -inf
  %2864 = vmax.xlane.f32.xlu0 %v2863
  %v2865 = vpop.xlane.xlu0 %2864
  %v2866 = vsel %vm353, %v2738, -inf
  %2867 = vmax.xlane.f32.xlu0 %v2866
  %v2868 = vpop.xlane.xlu0 %2867
  %v2869 = vsel %vm353, %v2741, -inf
  %2870 = vmax.xlane.f32.xlu0 %v2869
  %v2871 = vpop.xlane.xlu0 %2870
  %v2872 = vsel %vm353, %v2825, -inf
  %2873 = vmax.xlane.f32.xlu0 %v2872
  %v2874 = vpop.xlane.xlu0 %2873
  %v2875 = vsel %vm353, %v2828, -inf
  %2876 = vmax.xlane.f32.xlu0 %v2875
  %v2877 = vpop.xlane.xlu0 %2876
  %v2878 = vsel %vm353, %v2831, -inf
  %2879 = vmax.xlane.f32.xlu0 %v2878
  %v2880 = vpop.xlane.xlu0 %2879
  %v2881 = vsel %vm353, %v2834, -inf
  %2882 = vmax.xlane.f32.xlu0 %v2881
  %v2883 = vpop.xlane.xlu0 %2882
  %v2884 = vsel %vm353, %v2837, -inf
  %2885 = vmax.xlane.f32.xlu0 %v2884
  %v2886 = vpop.xlane.xlu0 %2885
  %v2887 = vsel %vm353, %v2840, -inf
  %2888 = vmax.xlane.f32.xlu0 %v2887
  %v2889 = vpop.xlane.xlu0 %2888
  %v2890 = vsel %vm353, %v2843, -inf
  %2891 = vmax.xlane.f32.xlu0 %v2890
  %v2892 = vpop.xlane.xlu0 %2891
  %v2893 = vsel %vm353, %v2846, -inf
  %2894 = vmax.xlane.f32.xlu0 %v2893
  %v2895 = vpop.xlane.xlu0 %2894
  %v2896 = vsub.f32 %v2720, %v2850
  %v2897 = vsub.f32 %v2723, %v2853
  %v2898 = vsub.f32 %v2726, %v2856
  %v2899 = vsub.f32 %v2729, %v2859
  %v2900 = vsub.f32 %v2732, %v2862
  %v2901 = vsub.f32 %v2735, %v2865
  %v2902 = vsub.f32 %v2738, %v2868
  %v2903 = vsub.f32 %v2741, %v2871
  %v2904 = vsub.f32 %v2825, %v2874
  %v2905 = vsub.f32 %v2828, %v2877
  %v2906 = vsub.f32 %v2831, %v2880
  %v2907 = vsub.f32 %v2834, %v2883
  %v2908 = vsub.f32 %v2837, %v2886
  %v2909 = vsub.f32 %v2840, %v2889
  %v2910 = vsub.f32 %v2843, %v2892
  %v2911 = vsub.f32 %v2846, %v2895
  %v2912 = vmul.f32 %v2896, 1.442695
  %v2913 = vpow.pop %v2912
  %v2914 = vmul.f32 %v2897, 1.442695
  %v2915 = vpow.pop %v2914
  %v2916 = vmul.f32 %v2898, 1.442695
  %v2917 = vpow.pop %v2916
  %v2918 = vmul.f32 %v2899, 1.442695
  %v2919 = vpow.pop %v2918
  %v2920 = vmul.f32 %v2900, 1.442695
  %v2921 = vpow.pop %v2920
  %v2922 = vmul.f32 %v2901, 1.442695
  %v2923 = vpow.pop %v2922
  %v2924 = vmul.f32 %v2902, 1.442695
  %v2925 = vpow.pop %v2924
  %v2926 = vmul.f32 %v2903, 1.442695
  %v2927 = vpow.pop %v2926
  %v2928 = vmul.f32 %v2904, 1.442695
  %v2929 = vpow.pop %v2928
  %v2930 = vmul.f32 %v2905, 1.442695
  %v2931 = vpow.pop %v2930
  %v2932 = vmul.f32 %v2906, 1.442695
  %v2933 = vpow.pop %v2932
  %v2934 = vmul.f32 %v2907, 1.442695
  %v2935 = vpow.pop %v2934
  %v2936 = vmul.f32 %v2908, 1.442695
  %v2937 = vpow.pop %v2936
  %v2938 = vmul.f32 %v2909, 1.442695
  %v2939 = vpow.pop %v2938
  %v2940 = vmul.f32 %v2910, 1.442695
  %v2941 = vpow.pop %v2940
  %v2942 = vmul.f32 %v2911, 1.442695
  %v2943 = vpow.pop %v2942
  %v2944 = vsel %vm353, %v2913, 0.0
  %2945 = vadd.xlane.f32.xlu0 %v2944
  %v2946 = vpop.xlane.xlu0 %2945
  %v2947 = vsel %vm353, %v2915, 0.0
  %2948 = vadd.xlane.f32.xlu0 %v2947
  %v2949 = vpop.xlane.xlu0 %2948
  %v2950 = vsel %vm353, %v2917, 0.0
  %2951 = vadd.xlane.f32.xlu0 %v2950
  %v2952 = vpop.xlane.xlu0 %2951
  %v2953 = vsel %vm353, %v2919, 0.0
  %2954 = vadd.xlane.f32.xlu0 %v2953
  %v2955 = vpop.xlane.xlu0 %2954
  %v2956 = vsel %vm353, %v2921, 0.0
  %2957 = vadd.xlane.f32.xlu0 %v2956
  %v2958 = vpop.xlane.xlu0 %2957
  %v2959 = vsel %vm353, %v2923, 0.0
  %2960 = vadd.xlane.f32.xlu0 %v2959
  %v2961 = vpop.xlane.xlu0 %2960
  %v2962 = vsel %vm353, %v2925, 0.0
  %2963 = vadd.xlane.f32.xlu0 %v2962
  %v2964 = vpop.xlane.xlu0 %2963
  %v2965 = vsel %vm353, %v2927, 0.0
  %2966 = vadd.xlane.f32.xlu0 %v2965
  %v2967 = vpop.xlane.xlu0 %2966
  %v2968 = vsel %vm353, %v2929, 0.0
  %2969 = vadd.xlane.f32.xlu0 %v2968
  %v2970 = vpop.xlane.xlu0 %2969
  %v2971 = vsel %vm353, %v2931, 0.0
  %2972 = vadd.xlane.f32.xlu0 %v2971
  %v2973 = vpop.xlane.xlu0 %2972
  %v2974 = vsel %vm353, %v2933, 0.0
  %2975 = vadd.xlane.f32.xlu0 %v2974
  %v2976 = vpop.xlane.xlu0 %2975
  %v2977 = vsel %vm353, %v2935, 0.0
  %2978 = vadd.xlane.f32.xlu0 %v2977
  %v2979 = vpop.xlane.xlu0 %2978
  %v2980 = vsel %vm353, %v2937, 0.0
  %2981 = vadd.xlane.f32.xlu0 %v2980
  %v2982 = vpop.xlane.xlu0 %2981
  %v2983 = vsel %vm353, %v2939, 0.0
  %2984 = vadd.xlane.f32.xlu0 %v2983
  %v2985 = vpop.xlane.xlu0 %2984
  %v2986 = vsel %vm353, %v2941, 0.0
  %2987 = vadd.xlane.f32.xlu0 %v2986
  %v2988 = vpop.xlane.xlu0 %2987
  %v2989 = vsel %vm353, %v2943, 0.0
  %2990 = vadd.xlane.f32.xlu0 %v2989
  %v2991 = vpop.xlane.xlu0 %2990
  %v2992 = vrcp.pop %v2946
  %v2993 = vmul.f32 %v2946, %v2992
  %v2994 = vsub.f32 1.0, %v2993
  %v2995 = vmul.f32 %v2992, %v2994
  %v2996 = vadd.f32 %v2992, %v2995
  %vm2997 = vweird.f32 %v2946
  %vm2998 = vweird.f32 %v2992
  %vm2999 = vmor %vm2997, %vm2998
  %v3000 = vsel %vm2999, %v2992, %v2996
  %v3001 = vand.u32 2147483647, %v2946
  %vm3002 = vcmp.eq.f32.partialorder %v3001, 8.507059e+37
  %v3003 = vand.u32 %v2946, 2147483648
  %v3004 = vor.u32 1.1754944e-38, %v3003
  %v3005 = vsel %vm3002, %v3004, %v3000
  %v3006 = vmul.f32 %v2913, %v3005
  %v3007 = vrcp.pop %v2949
  %v3008 = vmul.f32 %v2949, %v3007
  %v3009 = vsub.f32 1.0, %v3008
  %v3010 = vmul.f32 %v3007, %v3009
  %v3011 = vadd.f32 %v3007, %v3010
  %vm3012 = vweird.f32 %v2949
  %vm3013 = vweird.f32 %v3007
  %vm3014 = vmor %vm3012, %vm3013
  %v3015 = vsel %vm3014, %v3007, %v3011
  %v3016 = vand.u32 2147483647, %v2949
  %vm3017 = vcmp.eq.f32.partialorder %v3016, 8.507059e+37
  %v3018 = vand.u32 %v2949, 2147483648
  %v3019 = vor.u32 1.1754944e-38, %v3018
  %v3020 = vsel %vm3017, %v3019, %v3015
  %v3021 = vmul.f32 %v2915, %v3020
  %v3022 = vrcp.pop %v2952
  %v3023 = vmul.f32 %v2952, %v3022
  %v3024 = vsub.f32 1.0, %v3023
  %v3025 = vmul.f32 %v3022, %v3024
  %v3026 = vadd.f32 %v3022, %v3025
  %vm3027 = vweird.f32 %v2952
  %vm3028 = vweird.f32 %v3022
  %vm3029 = vmor %vm3027, %vm3028
  %v3030 = vsel %vm3029, %v3022, %v3026
  %v3031 = vand.u32 2147483647, %v2952
  %vm3032 = vcmp.eq.f32.partialorder %v3031, 8.507059e+37
  %v3033 = vand.u32 %v2952, 2147483648
  %v3034 = vor.u32 1.1754944e-38, %v3033
  %v3035 = vsel %vm3032, %v3034, %v3030
  %v3036 = vmul.f32 %v2917, %v3035
  %v3037 = vrcp.pop %v2955
  %v3038 = vmul.f32 %v2955, %v3037
  %v3039 = vsub.f32 1.0, %v3038
  %v3040 = vmul.f32 %v3037, %v3039
  %v3041 = vadd.f32 %v3037, %v3040
  %vm3042 = vweird.f32 %v2955
  %vm3043 = vweird.f32 %v3037
  %vm3044 = vmor %vm3042, %vm3043
  %v3045 = vsel %vm3044, %v3037, %v3041
  %v3046 = vand.u32 2147483647, %v2955
  %vm3047 = vcmp.eq.f32.partialorder %v3046, 8.507059e+37
  %v3048 = vand.u32 %v2955, 2147483648
  %v3049 = vor.u32 1.1754944e-38, %v3048
  %v3050 = vsel %vm3047, %v3049, %v3045
  %v3051 = vmul.f32 %v2919, %v3050
  %v3052 = vrcp.pop %v2958
  %v3053 = vmul.f32 %v2958, %v3052
  %v3054 = vsub.f32 1.0, %v3053
  %v3055 = vmul.f32 %v3052, %v3054
  %v3056 = vadd.f32 %v3052, %v3055
  %vm3057 = vweird.f32 %v2958
  %vm3058 = vweird.f32 %v3052
  %vm3059 = vmor %vm3057, %vm3058
  %v3060 = vsel %vm3059, %v3052, %v3056
  %v3061 = vand.u32 2147483647, %v2958
  %vm3062 = vcmp.eq.f32.partialorder %v3061, 8.507059e+37
  %v3063 = vand.u32 %v2958, 2147483648
  %v3064 = vor.u32 1.1754944e-38, %v3063
  %v3065 = vsel %vm3062, %v3064, %v3060
  %v3066 = vmul.f32 %v2921, %v3065
  %v3067 = vrcp.pop %v2961
  %v3068 = vmul.f32 %v2961, %v3067
  %v3069 = vsub.f32 1.0, %v3068
  %v3070 = vmul.f32 %v3067, %v3069
  %v3071 = vadd.f32 %v3067, %v3070
  %vm3072 = vweird.f32 %v2961
  %vm3073 = vweird.f32 %v3067
  %vm3074 = vmor %vm3072, %vm3073
  %v3075 = vsel %vm3074, %v3067, %v3071
  %v3076 = vand.u32 2147483647, %v2961
  %vm3077 = vcmp.eq.f32.partialorder %v3076, 8.507059e+37
  %v3078 = vand.u32 %v2961, 2147483648
  %v3079 = vor.u32 1.1754944e-38, %v3078
  %v3080 = vsel %vm3077, %v3079, %v3075
  %v3081 = vmul.f32 %v2923, %v3080
  %v3082 = vrcp.pop %v2964
  %v3083 = vmul.f32 %v2964, %v3082
  %v3084 = vsub.f32 1.0, %v3083
  %v3085 = vmul.f32 %v3082, %v3084
  %v3086 = vadd.f32 %v3082, %v3085
  %vm3087 = vweird.f32 %v2964
  %vm3088 = vweird.f32 %v3082
  %vm3089 = vmor %vm3087, %vm3088
  %v3090 = vsel %vm3089, %v3082, %v3086
  %v3091 = vand.u32 2147483647, %v2964
  %vm3092 = vcmp.eq.f32.partialorder %v3091, 8.507059e+37
  %v3093 = vand.u32 %v2964, 2147483648
  %v3094 = vor.u32 1.1754944e-38, %v3093
  %v3095 = vsel %vm3092, %v3094, %v3090
  %v3096 = vmul.f32 %v2925, %v3095
  %v3097 = vrcp.pop %v2967
  %v3098 = vmul.f32 %v2967, %v3097
  %v3099 = vsub.f32 1.0, %v3098
  %v3100 = vmul.f32 %v3097, %v3099
  %v3101 = vadd.f32 %v3097, %v3100
  %vm3102 = vweird.f32 %v2967
  %vm3103 = vweird.f32 %v3097
  %vm3104 = vmor %vm3102, %vm3103
  %v3105 = vsel %vm3104, %v3097, %v3101
  %v3106 = vand.u32 2147483647, %v2967
  %vm3107 = vcmp.eq.f32.partialorder %v3106, 8.507059e+37
  %v3108 = vand.u32 %v2967, 2147483648
  %v3109 = vor.u32 1.1754944e-38, %v3108
  %v3110 = vsel %vm3107, %v3109, %v3105
  %v3111 = vmul.f32 %v2927, %v3110
  %v3112 = vrcp.pop %v2970
  %v3113 = vmul.f32 %v2970, %v3112
  %v3114 = vsub.f32 1.0, %v3113
  %v3115 = vmul.f32 %v3112, %v3114
  %v3116 = vadd.f32 %v3112, %v3115
  %vm3117 = vweird.f32 %v2970
  %vm3118 = vweird.f32 %v3112
  %vm3119 = vmor %vm3117, %vm3118
  %v3120 = vsel %vm3119, %v3112, %v3116
  %v3121 = vand.u32 2147483647, %v2970
  %vm3122 = vcmp.eq.f32.partialorder %v3121, 8.507059e+37
  %v3123 = vand.u32 %v2970, 2147483648
  %v3124 = vor.u32 1.1754944e-38, %v3123
  %v3125 = vsel %vm3122, %v3124, %v3120
  %v3126 = vmul.f32 %v2929, %v3125
  %v3127 = vrcp.pop %v2973
  %v3128 = vmul.f32 %v2973, %v3127
  %v3129 = vsub.f32 1.0, %v3128
  %v3130 = vmul.f32 %v3127, %v3129
  %v3131 = vadd.f32 %v3127, %v3130
  %vm3132 = vweird.f32 %v2973
  %vm3133 = vweird.f32 %v3127
  %vm3134 = vmor %vm3132, %vm3133
  %v3135 = vsel %vm3134, %v3127, %v3131
  %v3136 = vand.u32 2147483647, %v2973
  %vm3137 = vcmp.eq.f32.partialorder %v3136, 8.507059e+37
  %v3138 = vand.u32 %v2973, 2147483648
  %v3139 = vor.u32 1.1754944e-38, %v3138
  %v3140 = vsel %vm3137, %v3139, %v3135
  %v3141 = vmul.f32 %v2931, %v3140
  %v3142 = vrcp.pop %v2976
  %v3143 = vmul.f32 %v2976, %v3142
  %v3144 = vsub.f32 1.0, %v3143
  %v3145 = vmul.f32 %v3142, %v3144
  %v3146 = vadd.f32 %v3142, %v3145
  %vm3147 = vweird.f32 %v2976
  %vm3148 = vweird.f32 %v3142
  %vm3149 = vmor %vm3147, %vm3148
  %v3150 = vsel %vm3149, %v3142, %v3146
  %v3151 = vand.u32 2147483647, %v2976
  %vm3152 = vcmp.eq.f32.partialorder %v3151, 8.507059e+37
  %v3153 = vand.u32 %v2976, 2147483648
  %v3154 = vor.u32 1.1754944e-38, %v3153
  %v3155 = vsel %vm3152, %v3154, %v3150
  %v3156 = vmul.f32 %v2933, %v3155
  %v3157 = vrcp.pop %v2979
  %v3158 = vmul.f32 %v2979, %v3157
  %v3159 = vsub.f32 1.0, %v3158
  %v3160 = vmul.f32 %v3157, %v3159
  %v3161 = vadd.f32 %v3157, %v3160
  %vm3162 = vweird.f32 %v2979
  %vm3163 = vweird.f32 %v3157
  %vm3164 = vmor %vm3162, %vm3163
  %v3165 = vsel %vm3164, %v3157, %v3161
  %v3166 = vand.u32 2147483647, %v2979
  %vm3167 = vcmp.eq.f32.partialorder %v3166, 8.507059e+37
  %v3168 = vand.u32 %v2979, 2147483648
  %v3169 = vor.u32 1.1754944e-38, %v3168
  %v3170 = vsel %vm3167, %v3169, %v3165
  %v3171 = vmul.f32 %v2935, %v3170
  %v3172 = vrcp.pop %v2982
  %v3173 = vmul.f32 %v2982, %v3172
  %v3174 = vsub.f32 1.0, %v3173
  %v3175 = vmul.f32 %v3172, %v3174
  %v3176 = vadd.f32 %v3172, %v3175
  %vm3177 = vweird.f32 %v2982
  %vm3178 = vweird.f32 %v3172
  %vm3179 = vmor %vm3177, %vm3178
  %v3180 = vsel %vm3179, %v3172, %v3176
  %v3181 = vand.u32 2147483647, %v2982
  %vm3182 = vcmp.eq.f32.partialorder %v3181, 8.507059e+37
  %v3183 = vand.u32 %v2982, 2147483648
  %v3184 = vor.u32 1.1754944e-38, %v3183
  %v3185 = vsel %vm3182, %v3184, %v3180
  %v3186 = vmul.f32 %v2937, %v3185
  %v3187 = vrcp.pop %v2985
  %v3188 = vmul.f32 %v2985, %v3187
  %v3189 = vsub.f32 1.0, %v3188
  %v3190 = vmul.f32 %v3187, %v3189
  %v3191 = vadd.f32 %v3187, %v3190
  %vm3192 = vweird.f32 %v2985
  %vm3193 = vweird.f32 %v3187
  %vm3194 = vmor %vm3192, %vm3193
  %v3195 = vsel %vm3194, %v3187, %v3191
  %v3196 = vand.u32 2147483647, %v2985
  %vm3197 = vcmp.eq.f32.partialorder %v3196, 8.507059e+37
  %v3198 = vand.u32 %v2985, 2147483648
  %v3199 = vor.u32 1.1754944e-38, %v3198
  %v3200 = vsel %vm3197, %v3199, %v3195
  %v3201 = vmul.f32 %v2939, %v3200
  %v3202 = vrcp.pop %v2988
  %v3203 = vmul.f32 %v2988, %v3202
  %v3204 = vsub.f32 1.0, %v3203
  %v3205 = vmul.f32 %v3202, %v3204
  %v3206 = vadd.f32 %v3202, %v3205
  %vm3207 = vweird.f32 %v2988
  %vm3208 = vweird.f32 %v3202
  %vm3209 = vmor %vm3207, %vm3208
  %v3210 = vsel %vm3209, %v3202, %v3206
  %v3211 = vand.u32 2147483647, %v2988
  %vm3212 = vcmp.eq.f32.partialorder %v3211, 8.507059e+37
  %v3213 = vand.u32 %v2988, 2147483648
  %v3214 = vor.u32 1.1754944e-38, %v3213
  %v3215 = vsel %vm3212, %v3214, %v3210
  %v3216 = vmul.f32 %v2941, %v3215
  %v3217 = vrcp.pop %v2991
  %v3218 = vmul.f32 %v2991, %v3217
  %v3219 = vsub.f32 1.0, %v3218
  %v3220 = vmul.f32 %v3217, %v3219
  %v3221 = vadd.f32 %v3217, %v3220
  %vm3222 = vweird.f32 %v2991
  %vm3223 = vweird.f32 %v3217
  %vm3224 = vmor %vm3222, %vm3223
  %v3225 = vsel %vm3224, %v3217, %v3221
  %v3226 = vand.u32 2147483647, %v2991
  %vm3227 = vcmp.eq.f32.partialorder %v3226, 8.507059e+37
  %v3228 = vand.u32 %v2991, 2147483648
  %v3229 = vor.u32 1.1754944e-38, %v3228
  %v3230 = vsel %vm3227, %v3229, %v3225
  %v3231 = vmul.f32 %v2943, %v3230
  %3232 = vrot.lane.b32.xlu0 %v111, 40
  %v3233 = vpop.permute.xlu0 %3232
  %3234 = vrot.lane.b32.xlu0 %v114, 40
  %v3235 = vpop.permute.xlu0 %3234
  %3236 = vrot.lane.b32.xlu0 %v117, 40
  %v3237 = vpop.permute.xlu0 %3236
  %3238 = vrot.lane.b32.xlu0 %v120, 40
  %v3239 = vpop.permute.xlu0 %3238
  %3240 = vrot.lane.b32.xlu0 %v123, 40
  %v3241 = vpop.permute.xlu0 %3240
  %3242 = vrot.lane.b32.xlu0 %v126, 40
  %v3243 = vpop.permute.xlu0 %3242
  %3244 = vrot.lane.b32.xlu0 %v129, 40
  %v3245 = vpop.permute.xlu0 %3244
  %3246 = vrot.lane.b32.xlu0 %v132, 40
  %v3247 = vpop.permute.xlu0 %3246
  %v3257 = vsel %vm353, %v3006, 0
  %v3260 = vsel %vm353, %v3021, 0
  %v3263 = vsel %vm353, %v3036, 0
  %v3266 = vsel %vm353, %v3051, 0
  %v3269 = vsel %vm353, %v3066, 0
  %v3272 = vsel %vm353, %v3081, 0
  %v3275 = vsel %vm353, %v3096, 0
  %v3278 = vsel %vm353, %v3111, 0
  %3280 = vmatpush.msra.mxu0 0.0
  %3281 = vmatpush.msra.mxu0 0.0
  %3282 = vmatpush.msra.mxu0 0.0
  %3283 = vmatpush.msra.mxu0 0.0
  %3284 = vmatpush.msra.mxu0 0.0
  %3285 = vmatpush.msra.mxu0 0.0
  %3286 = vmatpush.msra.mxu0 0.0
  %3287 = vmatpush.msra.mxu0 0.0
  %3288 = vmatpush.msra.mxu0 %v3247
  %3289 = vmatpush.msra.mxu0 %v3245
  %3290 = vmatpush.msra.mxu0 %v3243
  %3291 = vmatpush.msra.mxu0 %v3241
  %3292 = vmatpush.msra.mxu0 %v3239
  %3293 = vmatpush.msra.mxu0 %v3237
  %3294 = vmatpush.msra.mxu0 %v3235
  %3295 = vmatpush.msra.mxu0 %v3233
  %3296 = vmatmul.f32.gmra.mxu0 %v3257
  %v3297 = vpop.f32.mrf.mxu0
  %v3298 = vadd.f32 0.0, %v3297
  %3299 = vmatmul.f32.gmra.mxu0 %v3260
  %v3300 = vpop.f32.mrf.mxu0
  %v3301 = vadd.f32 0.0, %v3300
  %3302 = vmatmul.f32.gmra.mxu0 %v3263
  %v3303 = vpop.f32.mrf.mxu0
  %v3304 = vadd.f32 0.0, %v3303
  %3305 = vmatmul.f32.gmra.mxu0 %v3266
  %v3306 = vpop.f32.mrf.mxu0
  %v3307 = vadd.f32 0.0, %v3306
  %3308 = vmatmul.f32.gmra.mxu0 %v3269
  %v3309 = vpop.f32.mrf.mxu0
  %v3310 = vadd.f32 0.0, %v3309
  %3311 = vmatmul.f32.gmra.mxu0 %v3272
  %v3312 = vpop.f32.mrf.mxu0
  %v3313 = vadd.f32 0.0, %v3312
  %3314 = vmatmul.f32.gmra.mxu0 %v3275
  %v3315 = vpop.f32.mrf.mxu0
  %v3316 = vadd.f32 0.0, %v3315
  %3317 = vmatmul.f32.gmra.mxu0 %v3278
  %v3318 = vpop.f32.mrf.mxu0
  %v3319 = vadd.f32 0.0, %v3318
  %3320 = vdwg.mxu0
  %3321 = vrot.lane.b32.xlu0 %v135, 40
  %v3322 = vpop.permute.xlu0 %3321
  %3323 = vrot.lane.b32.xlu0 %v138, 40
  %v3324 = vpop.permute.xlu0 %3323
  %3325 = vrot.lane.b32.xlu0 %v141, 40
  %v3326 = vpop.permute.xlu0 %3325
  %3327 = vrot.lane.b32.xlu0 %v144, 40
  %v3328 = vpop.permute.xlu0 %3327
  %3329 = vrot.lane.b32.xlu0 %v147, 40
  %v3330 = vpop.permute.xlu0 %3329
  %3331 = vrot.lane.b32.xlu0 %v150, 40
  %v3332 = vpop.permute.xlu0 %3331
  %3333 = vrot.lane.b32.xlu0 %v153, 40
  %v3334 = vpop.permute.xlu0 %3333
  %3335 = vrot.lane.b32.xlu0 %v156, 40
  %v3336 = vpop.permute.xlu0 %3335
  %v3346 = vsel %vm353, %v3126, 0
  %v3349 = vsel %vm353, %v3141, 0
  %v3352 = vsel %vm353, %v3156, 0
  %v3355 = vsel %vm353, %v3171, 0
  %v3358 = vsel %vm353, %v3186, 0
  %v3361 = vsel %vm353, %v3201, 0
  %v3364 = vsel %vm353, %v3216, 0
  %v3367 = vsel %vm353, %v3231, 0
  %3369 = vmatpush.msra.mxu0 0.0
  %3370 = vmatpush.msra.mxu0 0.0
  %3371 = vmatpush.msra.mxu0 0.0
  %3372 = vmatpush.msra.mxu0 0.0
  %3373 = vmatpush.msra.mxu0 0.0
  %3374 = vmatpush.msra.mxu0 0.0
  %3375 = vmatpush.msra.mxu0 0.0
  %3376 = vmatpush.msra.mxu0 0.0
  %3377 = vmatpush.msra.mxu0 %v3336
  %3378 = vmatpush.msra.mxu0 %v3334
  %3379 = vmatpush.msra.mxu0 %v3332
  %3380 = vmatpush.msra.mxu0 %v3330
  %3381 = vmatpush.msra.mxu0 %v3328
  %3382 = vmatpush.msra.mxu0 %v3326
  %3383 = vmatpush.msra.mxu0 %v3324
  %3384 = vmatpush.msra.mxu0 %v3322
  %3385 = vmatmul.f32.gmra.mxu0 %v3346
  %v3386 = vpop.f32.mrf.mxu0
  %v3387 = vadd.f32 0.0, %v3386
  %3388 = vmatmul.f32.gmra.mxu0 %v3349
  %v3389 = vpop.f32.mrf.mxu0
  %v3390 = vadd.f32 0.0, %v3389
  %3391 = vmatmul.f32.gmra.mxu0 %v3352
  %v3392 = vpop.f32.mrf.mxu0
  %v3393 = vadd.f32 0.0, %v3392
  %3394 = vmatmul.f32.gmra.mxu0 %v3355
  %v3395 = vpop.f32.mrf.mxu0
  %v3396 = vadd.f32 0.0, %v3395
  %3397 = vmatmul.f32.gmra.mxu0 %v3358
  %v3398 = vpop.f32.mrf.mxu0
  %v3399 = vadd.f32 0.0, %v3398
  %3400 = vmatmul.f32.gmra.mxu0 %v3361
  %v3401 = vpop.f32.mrf.mxu0
  %v3402 = vadd.f32 0.0, %v3401
  %3403 = vmatmul.f32.gmra.mxu0 %v3364
  %v3404 = vpop.f32.mrf.mxu0
  %v3405 = vadd.f32 0.0, %v3404
  %3406 = vmatmul.f32.gmra.mxu0 %v3367
  %v3407 = vpop.f32.mrf.mxu0
  %v3408 = vadd.f32 0.0, %v3407
  %3409 = vdwg.mxu0
  %3426 = vrot.lane.b32.xlu0 %v3298, 24
  %v3427 = vpop.permute.xlu0 %3426
  %3428 = vrot.lane.b32.xlu0 %v3301, 24
  %v3429 = vpop.permute.xlu0 %3428
  %3430 = vrot.lane.b32.xlu0 %v3304, 24
  %v3431 = vpop.permute.xlu0 %3430
  %3432 = vrot.lane.b32.xlu0 %v3307, 24
  %v3433 = vpop.permute.xlu0 %3432
  %3434 = vrot.lane.b32.xlu0 %v3310, 24
  %v3435 = vpop.permute.xlu0 %3434
  %3436 = vrot.lane.b32.xlu0 %v3313, 24
  %v3437 = vpop.permute.xlu0 %3436
  %3438 = vrot.lane.b32.xlu0 %v3316, 24
  %v3439 = vpop.permute.xlu0 %3438
  %3440 = vrot.lane.b32.xlu0 %v3319, 24
  %v3441 = vpop.permute.xlu0 %3440
  %3442 = vrot.lane.b32.xlu0 %v3387, 24
  %v3443 = vpop.permute.xlu0 %3442
  %3444 = vrot.lane.b32.xlu0 %v3390, 24
  %v3445 = vpop.permute.xlu0 %3444
  %3446 = vrot.lane.b32.xlu0 %v3393, 24
  %v3447 = vpop.permute.xlu0 %3446
  %3448 = vrot.lane.b32.xlu0 %v3396, 24
  %v3449 = vpop.permute.xlu0 %3448
  %3450 = vrot.lane.b32.xlu0 %v3399, 24
  %v3451 = vpop.permute.xlu0 %3450
  %3452 = vrot.lane.b32.xlu0 %v3402, 24
  %v3453 = vpop.permute.xlu0 %3452
  %3454 = vrot.lane.b32.xlu0 %v3405, 24
  %v3455 = vpop.permute.xlu0 %3454
  %3456 = vrot.lane.b32.xlu0 %v3408, 24
  %v3457 = vpop.permute.xlu0 %3456
  %vm3474 = vcmask 261312
  %3475 = vst.msk [vmem:[#allocation2] sm:$0xff] %vm3474, %v3427
  %3476 = vst.msk [vmem:[#allocation2 + $0x8] sm:$0xff] %vm3474, %v3429
  %3477 = vst.msk [vmem:[#allocation2 + $0x10] sm:$0xff] %vm3474, %v3431
  %3478 = vst.msk [vmem:[#allocation2 + $0x18] sm:$0xff] %vm3474, %v3433
  %3479 = vst.msk [vmem:[#allocation2 + $0x20] sm:$0xff] %vm3474, %v3435
  %3480 = vst.msk [vmem:[#allocation2 + $0x28] sm:$0xff] %vm3474, %v3437
  %3481 = vst.msk [vmem:[#allocation2 + $0x30] sm:$0xff] %vm3474, %v3439
  %3482 = vst.msk [vmem:[#allocation2 + $0x38] sm:$0xff] %vm3474, %v3441
  %3483 = vst.msk [vmem:[#allocation2 + $0x40] sm:$0xff] %vm3474, %v3443
  %3484 = vst.msk [vmem:[#allocation2 + $0x48] sm:$0xff] %vm3474, %v3445
  %3485 = vst.msk [vmem:[#allocation2 + $0x50] sm:$0xff] %vm3474, %v3447
  %3486 = vst.msk [vmem:[#allocation2 + $0x58] sm:$0xff] %vm3474, %v3449
  %3487 = vst.msk [vmem:[#allocation2 + $0x60] sm:$0xff] %vm3474, %v3451
  %3488 = vst.msk [vmem:[#allocation2 + $0x68] sm:$0xff] %vm3474, %v3453
  %3489 = vst.msk [vmem:[#allocation2 + $0x70] sm:$0xff] %vm3474, %v3455
  %3490 = vst.msk [vmem:[#allocation2 + $0x78] sm:$0xff] %vm3474, %v3457
  %v3491 = vld [vmem:[#allocation2] sm:$0xff]
  %v3492 = vld [vmem:[#allocation2 + $0x8] sm:$0xff]
  %v3493 = vld [vmem:[#allocation2 + $0x10] sm:$0xff]
  %v3494 = vld [vmem:[#allocation2 + $0x18] sm:$0xff]
  %v3495 = vld [vmem:[#allocation2 + $0x20] sm:$0xff]
  %v3496 = vld [vmem:[#allocation2 + $0x28] sm:$0xff]
  %v3497 = vld [vmem:[#allocation2 + $0x30] sm:$0xff]
  %v3498 = vld [vmem:[#allocation2 + $0x38] sm:$0xff]
  %v3499 = vld [vmem:[#allocation2 + $0x40] sm:$0xff]
  %v3500 = vld [vmem:[#allocation2 + $0x48] sm:$0xff]
  %v3501 = vld [vmem:[#allocation2 + $0x50] sm:$0xff]
  %v3502 = vld [vmem:[#allocation2 + $0x58] sm:$0xff]
  %v3503 = vld [vmem:[#allocation2 + $0x60] sm:$0xff]
  %v3504 = vld [vmem:[#allocation2 + $0x68] sm:$0xff]
  %v3505 = vld [vmem:[#allocation2 + $0x70] sm:$0xff]
  %v3506 = vld [vmem:[#allocation2 + $0x78] sm:$0xff]
  %v3507 = vld [vmem:[%s3] sm:$0xff]
  %v3508 = vld [vmem:[%s3 + $0x8] sm:$0xff]
  %v3509 = vld [vmem:[%s3 + $0x10] sm:$0xff]
  %v3510 = vld [vmem:[%s3 + $0x18] sm:$0xff]
  %v3511 = vld [vmem:[%s4] sm:$0x1]
  %v3513 = vperm.slane %v3511, 0
  %v3516 = vsel %vm44, %v3491, 0
  %v3519 = vsel %vm44, %v3492, 0
  %v3522 = vsel %vm44, %v3493, 0
  %v3525 = vsel %vm44, %v3494, 0
  %v3528 = vsel %vm44, %v3495, 0
  %v3531 = vsel %vm44, %v3496, 0
  %v3534 = vsel %vm44, %v3497, 0
  %v3537 = vsel %vm44, %v3498, 0
  %v3540 = vsel %vm44, %v3499, 0
  %v3543 = vsel %vm44, %v3500, 0
  %v3546 = vsel %vm44, %v3501, 0
  %v3549 = vsel %vm44, %v3502, 0
  %v3552 = vsel %vm44, %v3503, 0
  %v3555 = vsel %vm44, %v3504, 0
  %v3558 = vsel %vm44, %v3505, 0
  %v3561 = vsel %vm44, %v3506, 0
  %3563 = vmatpush.msra.mxu0 0.0
  %3564 = vmatpush.msra.mxu0 0.0
  %3565 = vmatpush.msra.mxu0 0.0
  %3566 = vmatpush.msra.mxu0 0.0
  %3567 = vmatpush.msra.mxu0 0.0
  %3568 = vmatpush.msra.mxu0 0.0
  %3569 = vmatpush.msra.mxu0 0.0
  %3570 = vmatpush.msra.mxu0 0.0
  %3571 = vmatpush.msra.mxu0 0.0
  %3572 = vmatpush.msra.mxu0 0.0
  %3573 = vmatpush.msra.mxu0 0.0
  %3574 = vmatpush.msra.mxu0 0.0
  %3575 = vmatpush.msra.mxu0 %v3510
  %3576 = vmatpush.msra.mxu0 %v3509
  %3577 = vmatpush.msra.mxu0 %v3508
  %3578 = vmatpush.msra.mxu0 %v3507
  %3579 = vmatmul.f32.gmra.mxu0 %v3516
  %v3580 = vpop.f32.mrf.mxu0
  %v3581 = vadd.f32 %v3513, %v3580
  %3582 = vmatmul.f32.gmra.mxu0 %v3519
  %v3583 = vpop.f32.mrf.mxu0
  %v3584 = vadd.f32 %v3513, %v3583
  %3585 = vmatmul.f32.gmra.mxu0 %v3522
  %v3586 = vpop.f32.mrf.mxu0
  %v3587 = vadd.f32 %v3513, %v3586
  %3588 = vmatmul.f32.gmra.mxu0 %v3525
  %v3589 = vpop.f32.mrf.mxu0
  %v3590 = vadd.f32 %v3513, %v3589
  %3591 = vmatmul.f32.gmra.mxu0 %v3528
  %v3592 = vpop.f32.mrf.mxu0
  %v3593 = vadd.f32 %v3513, %v3592
  %3594 = vmatmul.f32.gmra.mxu0 %v3531
  %v3595 = vpop.f32.mrf.mxu0
  %v3596 = vadd.f32 %v3513, %v3595
  %3597 = vmatmul.f32.gmra.mxu0 %v3534
  %v3598 = vpop.f32.mrf.mxu0
  %v3599 = vadd.f32 %v3513, %v3598
  %3600 = vmatmul.f32.gmra.mxu0 %v3537
  %v3601 = vpop.f32.mrf.mxu0
  %v3602 = vadd.f32 %v3513, %v3601
  %3603 = vmatmul.f32.gmra.mxu0 %v3540
  %v3604 = vpop.f32.mrf.mxu0
  %v3605 = vadd.f32 %v3513, %v3604
  %3606 = vmatmul.f32.gmra.mxu0 %v3543
  %v3607 = vpop.f32.mrf.mxu0
  %v3608 = vadd.f32 %v3513, %v3607
  %3609 = vmatmul.f32.gmra.mxu0 %v3546
  %v3610 = vpop.f32.mrf.mxu0
  %v3611 = vadd.f32 %v3513, %v3610
  %3612 = vmatmul.f32.gmra.mxu0 %v3549
  %v3613 = vpop.f32.mrf.mxu0
  %v3614 = vadd.f32 %v3513, %v3613
  %3615 = vmatmul.f32.gmra.mxu0 %v3552
  %v3616 = vpop.f32.mrf.mxu0
  %v3617 = vadd.f32 %v3513, %v3616
  %3618 = vmatmul.f32.gmra.mxu0 %v3555
  %v3619 = vpop.f32.mrf.mxu0
  %v3620 = vadd.f32 %v3513, %v3619
  %3621 = vmatmul.f32.gmra.mxu0 %v3558
  %v3622 = vpop.f32.mrf.mxu0
  %v3623 = vadd.f32 %v3513, %v3622
  %3624 = vmatmul.f32.gmra.mxu0 %v3561
  %v3625 = vpop.f32.mrf.mxu0
  %v3626 = vadd.f32 %v3513, %v3625
  %3627 = vdwg.mxu0
  %3628 = vst.msk [vmem:[%s5] sm:$0xff] %vm44, %v3581
  %3629 = vst.msk [vmem:[%s5 + $0x8] sm:$0xff] %vm44, %v3584
  %3630 = vst.msk [vmem:[%s5 + $0x10] sm:$0xff] %vm44, %v3587
  %3631 = vst.msk [vmem:[%s5 + $0x18] sm:$0xff] %vm44, %v3590
  %3632 = vst.msk [vmem:[%s5 + $0x20] sm:$0xff] %vm44, %v3593
  %3633 = vst.msk [vmem:[%s5 + $0x28] sm:$0xff] %vm44, %v3596
  %3634 = vst.msk [vmem:[%s5 + $0x30] sm:$0xff] %vm44, %v3599
  %3635 = vst.msk [vmem:[%s5 + $0x38] sm:$0xff] %vm44, %v3602
  %3636 = vst.msk [vmem:[%s5 + $0x40] sm:$0xff] %vm44, %v3605
  %3637 = vst.msk [vmem:[%s5 + $0x48] sm:$0xff] %vm44, %v3608
  %3638 = vst.msk [vmem:[%s5 + $0x50] sm:$0xff] %vm44, %v3611
  %3639 = vst.msk [vmem:[%s5 + $0x58] sm:$0xff] %vm44, %v3614
  %3640 = vst.msk [vmem:[%s5 + $0x60] sm:$0xff] %vm44, %v3617
  %3641 = vst.msk [vmem:[%s5 + $0x68] sm:$0xff] %vm44, %v3620
  %3642 = vst.msk [vmem:[%s5 + $0x70] sm:$0xff] %vm44, %v3623
  %3643 = vst.msk [vmem:[%s5 + $0x78] sm:$0xff] %vm44, %v3626
  // Predicated region
  $region22: #{tpu_custom_call.1} parent=0 // pred_check
    _
  $region23: #{tpu_custom_call.1} parent=0 // pred_check_branch
    %3645 = sbr.rel (0) target = $region25
  $region24: #{tpu_custom_call.1} parent=0 // pred_region
    _
  $region25: #{tpu_custom_call.1} parent=0 // pred_fallthru
    _
  // Predicated region
  $region26: #{tpu_custom_call.1} parent=0 // pred_check
    _
  $region27: #{tpu_custom_call.1} parent=0 // pred_check_branch
    %3647 = sbr.rel (0) target = $region29
  $region28: #{tpu_custom_call.1} parent=0 // pred_region
    _
  $region29: #{tpu_custom_call.1} parent=0 // pred_fallthru
    _

</llo_original>
